<compile_context>
chip_gen: v7x
topology: tpu7x:2x2x1
jax: 0.10.0
libtpu: 0.0.40
codegen_flags: <defaults>
</compile_context>

<pallas_src>
import jax
import jax.numpy as jnp
from jax.experimental import pallas as pl
from jax.experimental.pallas import tpu as pltpu

M, K, N = 1, 768, 2048


def _select_tiling():
    """Pick column-tile width / grid semantics per TPU generation.

    v7x has 2 TensorCores -> keep two 1024-wide tiles and shard them across
    cores. v5e/v6e are single-TC -> one 2048-wide tile, no per-step overhead.
    """
    try:
        kind = jax.devices()[0].device_kind.lower()
    except Exception:  # pragma: no cover - defensive, e.g. no devices yet
        kind = ""
    if "v7" in kind:
        return 1024, ("parallel",)
    return 2048, ("arbitrary",)


TN, DIM_SEMANTICS = _select_tiling()


def linear_add_relu_kernel(x_ref, w_ref, bo_ref, out_ref):
    # Full-K GEMV for this output-column tile on the MXU.
    # bf16 operands, f32 accumulation.
    x_bf16 = x_ref[...].astype(jnp.bfloat16)
    acc = jnp.dot(x_bf16, w_ref[...], preferred_element_type=jnp.float32)
    out_ref[...] = jnp.maximum(acc + bo_ref[...], 0.0).astype(out_ref.dtype)


def linear_add_relu(x, w_t, bias_plus_other):
    """x: (M, K) f32; w_t: (K, N) bf16 pre-transposed; bias_plus_other: (1, N) f32."""
    num_tiles = N // TN
    grid = (num_tiles,)

    if num_tiles == 1:
        # Single grid step (v5e / v6e): no point double-buffering the weight.
        w_spec = pl.BlockSpec((K, TN), lambda j: (0, j),
                              pipeline_mode=pl.Buffered(1))
    else:
        # Two steps (v7x): default double-buffering, tiles shard across TCs.
        w_spec = pl.BlockSpec((K, TN), lambda j: (0, j))

    bytes_accessed = (
        4 * x.size            # x1, f32
        + 2 * w_t.size        # W^T, bf16
        + 4 * bias_plus_other.size
        + 4 * M * N           # output, f32
    )

    return pl.pallas_call(
        linear_add_relu_kernel,
        out_shape=jax.ShapeDtypeStruct((M, N), jnp.float32),
        grid_spec=pltpu.PrefetchScalarGridSpec(
            num_scalar_prefetch=0,
            grid=grid,
            in_specs=[
                pl.BlockSpec((M, K), lambda j: (0, 0)),   # x: whole row
                w_spec,                                   # W^T column tile (bf16)
                pl.BlockSpec((1, TN), lambda j: (0, j)),  # fused (bias + other)
            ],
            out_specs=pl.BlockSpec((M, TN), lambda j: (0, j)),
        ),
        compiler_params=pltpu.CompilerParams(
            dimension_semantics=DIM_SEMANTICS,
        ),
        cost_estimate=pl.CostEstimate(
            flops=2 * M * K * N,
            transcendentals=0,
            bytes_accessed=bytes_accessed,
        ),
    )(x, w_t, bias_plus_other)


def prepare_params(w, b, other):
    """One-time parameter prep (outside the hot path):
       pre-transpose W to (K, N), cast to bf16 (halves the dominant HBM read),
       and fold bias + other into one (1, N) f32 row."""
    w_t = jnp.asarray(w).T.astype(jnp.bfloat16)          # (K, N) bf16
    bo = (jnp.asarray(b) + jnp.asarray(other)).astype(jnp.float32).reshape(1, N)
    return w_t, bo


def reference(x, w, b, other):
    """Reference tied to the ORIGINAL (N, K) weight; emulates the kernel's
    bf16 operands with f32 accumulation."""
    xb = x.astype(jnp.bfloat16).astype(jnp.float32)
    wb = w.astype(jnp.bfloat16).astype(jnp.float32)
    return jnp.maximum(xb @ wb.T + b + other, 0.0)


if __name__ == "__main__":
    key = jax.random.PRNGKey(0)
    k_x, k_o, k_w, k_b = jax.random.split(key, 4)

    # Inputs (shapes implied by the module's forward pass).
    x1 = jax.random.normal(k_x, (M, K), dtype=jnp.float32)
    other = jax.random.normal(k_o, (N,), dtype=jnp.float32)

    # Deterministic Linear(768, 2048) parameters (PyTorch-style uniform init).
    bound = 1.0 / (K ** 0.5)
    w = jax.random.uniform(k_w, (N, K), dtype=jnp.float32,
                           minval=-bound, maxval=bound)   # PyTorch (out, in)
    b = jax.random.uniform(k_b, (N,), dtype=jnp.float32,
                           minval=-bound, maxval=bound)

    # One-time prep: transpose + bf16 cast + bias/other fold (not per-call).
    w_t, bias_plus_other = prepare_params(w, b, other)
    w_t = jax.block_until_ready(w_t)
    bias_plus_other = jax.block_until_ready(bias_plus_other)

    run = jax.jit(linear_add_relu)
    out = run(x1, w_t, bias_plus_other)
    out = jax.block_until_ready(out)

    ref = reference(x1, w, b, other)
    assert out.shape == (M, N)
    # bf16 weights -> relaxed tolerance vs the bf16-emulating reference.
    assert jnp.allclose(out, ref, atol=1e-2, rtol=1e-2)

    print("KERNEL_OK")
</pallas_src>

<mosaic_0001>
module attributes {stable_mosaic.version = 11 : i64} {
  func.func @linear_add_relu_kernel(%arg0: i32, %arg1: memref<1x768xf32, #tpu.memory_space<vmem>>, %arg2: memref<768x2048xbf16, #tpu.memory_space<vmem>>, %arg3: memref<1x2048xf32, #tpu.memory_space<vmem>>, %arg4: memref<1x2048xf32, #tpu.memory_space<vmem>>) attributes {dimension_semantics = [#tpu.dimension_semantics<arbitrary>], iteration_bounds = array<i64: 1>, scalar_prefetch = 0 : i64, scratch_operands = 0 : i64, tpu.core_type = #tpu.core_type<tc>, window_params = [{pipeline_mode = #tpu.pipeline_mode<synchronous>, transform_indices = @transform_0, window_bounds = array<i64: 1, 768>}, {pipeline_mode = #tpu.pipeline_mode<synchronous>, transform_indices = @transform_1, window_bounds = array<i64: 768, 2048>}, {transform_indices = @transform_2, window_bounds = array<i64: 1, 2048>}, {transform_indices = @transform_3, window_bounds = array<i64: 1, 2048>}]} {
    %c0 = arith.constant 0 : index
    %c0_0 = arith.constant 0 : index
    %0 = vector.load %arg1[%c0, %c0_0] : memref<1x768xf32, #tpu.memory_space<vmem>>, vector<1x768xf32>
    %1 = arith.truncf %0 : vector<1x768xf32> to vector<1x768xbf16>
    %c0_1 = arith.constant 0 : index
    %c0_2 = arith.constant 0 : index
    %2 = vector.load %arg2[%c0_1, %c0_2] : memref<768x2048xbf16, #tpu.memory_space<vmem>>, vector<768x2048xbf16>
    %cst = arith.constant dense<0.000000e+00> : vector<1x2048xf32>
    %3 = tpu.matmul %1, %2, %cst {dimension_numbers = #tpu.dot_dimension_numbers<[1], [0], [0], [1], [0, 0, 1, 1], [], []>} : vector<1x768xbf16>, vector<768x2048xbf16>, vector<1x2048xf32> -> vector<1x2048xf32>
    %c0_3 = arith.constant 0 : index
    %c0_4 = arith.constant 0 : index
    %4 = vector.load %arg3[%c0_3, %c0_4] : memref<1x2048xf32, #tpu.memory_space<vmem>>, vector<1x2048xf32>
    %5 = arith.addf %3, %4 : vector<1x2048xf32>
    %cst_5 = arith.constant 0.000000e+00 : f32
    %6 = vector.broadcast %cst_5 : f32 to vector<1x2048xf32>
    %7 = arith.maximumf %5, %6 : vector<1x2048xf32>
    %c0_6 = arith.constant 0 : index
    %c0_7 = arith.constant 0 : index
    %8 = vector.load %arg4[%c0_6, %c0_7] : memref<1x2048xf32, #tpu.memory_space<vmem>>, vector<1x2048xf32>
    tpu.vector_store %arg4[%c0_6, %c0_7], %7 {strides = array<i32>} : memref<1x2048xf32, #tpu.memory_space<vmem>>, vector<1x2048xf32>,
    return
  }
  func.func @transform_0(%arg0: i32) -> (i32, i32) {
    %c0_i32 = arith.constant 0 : i32
    %c0_i32_0 = arith.constant 0 : i32
    %c0_i32_1 = arith.constant 0 : i32
    return %c0_i32, %c0_i32_0 : i32, i32
  }
  func.func @transform_1(%arg0: i32) -> (i32, i32) {
    %c0_i32 = arith.constant 0 : i32
    %c0_i32_0 = arith.constant 0 : i32
    return %c0_i32, %arg0 : i32, i32
  }
  func.func @transform_2(%arg0: i32) -> (i32, i32) {
    %c0_i32 = arith.constant 0 : i32
    %c0_i32_0 = arith.constant 0 : i32
    return %c0_i32, %arg0 : i32, i32
  }
  func.func @transform_3(%arg0: i32) -> (i32, i32) {
    %c0_i32 = arith.constant 0 : i32
    %c0_i32_0 = arith.constant 0 : i32
    return %c0_i32, %arg0 : i32, i32
  }
}

</mosaic_0001>

<llo_original>
// kernel: linear_add_relu.1
$region0: #{linear_add_relu.1}
  #allocation0 [shape = 'u32[]', space=smem, size = 0x4, offset = 0x4, fixed_abs, tag = 'smem constant byte address 0x4 - core index']
  #allocation1 [shape = 'u32[144,128]{1,0:T(1,128)}', space=vmem, size = 0x12000, scoped, tag = 'internal scratch']
  %s0 = inlined_call_operand.hbm [shape: f32[1,768], index: 0, kind: input, shape index: {}]
  %s1 = inlined_call_operand.hbm [shape: bf16[768,2048], index: 1, kind: input, shape index: {}]
  %s2 = inlined_call_operand.hbm [shape: f32[1,2048], index: 2, kind: input, shape index: {}]
  %s3 = inlined_call_operand.hbm [shape: f32[1,2048], index: 3, kind: output, shape index: {}]
  %s4 = sld [smem:[#allocation0]]
  $region34: #{linear_add_relu.1} parent=0
    _
  %s6 = ssub.s32 1, %s4
  %s7 = scalar_select 0, %s6, %s4
  $region1: #{linear_add_relu.1} parent=0
    #allocation2 [shape = 'u8[3072]{0}', space=vmem, size = 0xc00, scoped, tag = 'input window, operand 0, single buffered']
    #allocation3 [shape = 's32[1]{0}', space=sflag, size = 0x4, scoped, tag = 'scoped memory for linear_add_relu.1']
    #allocation4 [shape = 's32[1]{0}', space=sflag, size = 0x4, scoped, tag = 'scoped memory for linear_add_relu.1']
    #allocation5 [shape = 'u8[3145728]{0}', space=vmem, size = 0x300000, scoped, tag = 'input window, operand 1, single buffered']
    #allocation6 [shape = 's32[1]{0}', space=sflag, size = 0x4, scoped, tag = 'scoped memory for linear_add_relu.1']
    #allocation7 [shape = 'u8[8192]{0}', space=vmem, size = 0x2000, scoped, tag = 'input window, operand 2, single buffered']
    #allocation8 [shape = 'u8[8192]{0}', space=vmem, size = 0x2000, scoped, tag = 'output window, operand 0, single buffered']
    %8 = vsyncpa [#allocation3], 0
    %9 = vsyncpa [#allocation6], 0
    %10 = vsyncpa [#allocation4], 0
    // Predicated region
    $region2: #{linear_add_relu.1} parent=1 // pred_check
      _
    $region3: #{linear_add_relu.1} parent=1 // pred_check_branch
      %12 = sbr.rel (0) target = $region5
    $region4: #{linear_add_relu.1} parent=1 // pred_region
      %s14 = ssub.s32 96, 96
      %15 = vsyncadd [#allocation3], %s14
      %s17 = sshll.u32 [#allocation2], 4
      %s18 = int_to_ptr.vmem [resolvable:$true] %s17
      %20 = dma.hbm_to_vmem [thread:$0]  %s0, 96, %s18, [#allocation3]
    $region5: #{linear_add_relu.1} parent=1 // pred_fallthru
      _
    // Predicated region
    $region6: #{linear_add_relu.1} parent=1 // pred_check
      _
    $region7: #{linear_add_relu.1} parent=1 // pred_check_branch
      %22 = sbr.rel (0) target = $region9
    $region8: #{linear_add_relu.1} parent=1 // pred_region
      %s24 = ssub.s32 98304, 98304
      %25 = vsyncadd [#allocation6], %s24
      %s26 = sshll.u32 [#allocation5], 4
      %s27 = int_to_ptr.vmem [resolvable:$true] %s26
      %32 = dma.hbm_to_vmem [thread:$0]  %s1, 98304, %s27, [#allocation6], 1024, 1024, 64
    $region9: #{linear_add_relu.1} parent=1 // pred_fallthru
      _
    // Predicated region
    $region10: #{linear_add_relu.1} parent=1 // pred_check
      _
    $region11: #{linear_add_relu.1} parent=1 // pred_check_branch
      %34 = sbr.rel (0) target = $region13
    $region12: #{linear_add_relu.1} parent=1 // pred_region
      %s36 = ssub.s32 256, 256
      %37 = vsyncadd [#allocation6], %s36
      %s39 = sshll.u32 [#allocation7], 4
      %s40 = int_to_ptr.vmem [resolvable:$true] %s39
      %42 = dma.hbm_to_vmem [thread:$0]  %s2, 256, %s40, [#allocation6]
    $region13: #{linear_add_relu.1} parent=1 // pred_fallthru
      _
    // Predicated region
    $region14: #{linear_add_relu.1} parent=1 // pred_check
      _
    $region15: #{linear_add_relu.1} parent=1 // pred_check_branch
      %44 = sbr.rel (0) target = $region17
    $region16: #{linear_add_relu.1} parent=1 // pred_region
      %45 = dma.done [#allocation3], 96
    $region17: #{linear_add_relu.1} parent=1 // pred_fallthru
      _
    // Predicated region
    $region18: #{linear_add_relu.1} parent=1 // pred_check
      _
    $region19: #{linear_add_relu.1} parent=1 // pred_check_branch
      %47 = sbr.rel (0) target = $region21
    $region20: #{linear_add_relu.1} parent=1 // pred_region
      %48 = dma.done [#allocation6], 98304
    $region21: #{linear_add_relu.1} parent=1 // pred_fallthru
      _
    // Predicated region
    $region22: #{linear_add_relu.1} parent=1 // pred_check
      _
    $region23: #{linear_add_relu.1} parent=1 // pred_check_branch
      %50 = sbr.rel (0) target = $region25
    $region24: #{linear_add_relu.1} parent=1 // pred_region
      %51 = dma.done [#allocation6], 256
    $region25: #{linear_add_relu.1} parent=1 // pred_fallthru
      _
    %v52 = vld [vmem:[#allocation2] sm:$0x3f]
    %v54 = vlaneseq
    %v55 = vshrl.u32 %v54, 7
    %v56 = vsub.s32 0, %v55
    %v57 = vrot.slane %v52, %v56
    %v58 = vlaneseq
    %v59 = vshrl.u32 %v58, 7
    %v60 = vsub.s32 1, %v59
    %v61 = vrot.slane %v52, %v60
    %v62 = vlaneseq
    %v63 = vshrl.u32 %v62, 7
    %v64 = vsub.s32 2, %v63
    %v65 = vrot.slane %v52, %v64
    %v66 = vlaneseq
    %v67 = vshrl.u32 %v66, 7
    %v68 = vsub.s32 3, %v67
    %v69 = vrot.slane %v52, %v68
    %v70 = vlaneseq
    %v71 = vshrl.u32 %v70, 7
    %v72 = vsub.s32 4, %v71
    %v73 = vrot.slane %v52, %v72
    %v74 = vlaneseq
    %v75 = vshrl.u32 %v74, 7
    %v76 = vsub.s32 5, %v75
    %v77 = vrot.slane %v52, %v76
    %v84 = vpack.c.bf16 %v57, %v57
    %v85 = vpack.c.bf16 %v61, %v61
    %v86 = vpack.c.bf16 %v65, %v65
    %v87 = vpack.c.bf16 %v69, %v69
    %v88 = vpack.c.bf16 %v73, %v73
    %v89 = vpack.c.bf16 %v77, %v77
    %v90 = vld [vmem:[#allocation5] sm:$0xff]
    %v91 = vld [vmem:[#allocation5 + $0x8] sm:$0xff]
    %v92 = vld [vmem:[#allocation5 + $0x10] sm:$0xff]
    %v93 = vld [vmem:[#allocation5 + $0x18] sm:$0xff]
    %v94 = vld [vmem:[#allocation5 + $0x20] sm:$0xff]
    %v95 = vld [vmem:[#allocation5 + $0x28] sm:$0xff]
    %v96 = vld [vmem:[#allocation5 + $0x30] sm:$0xff]
    %v97 = vld [vmem:[#allocation5 + $0x38] sm:$0xff]
    %v98 = vld [vmem:[#allocation5 + $0x40] sm:$0xff]
    %v99 = vld [vmem:[#allocation5 + $0x48] sm:$0xff]
    %v100 = vld [vmem:[#allocation5 + $0x50] sm:$0xff]
    %v101 = vld [vmem:[#allocation5 + $0x58] sm:$0xff]
    %v102 = vld [vmem:[#allocation5 + $0x60] sm:$0xff]
    %v103 = vld [vmem:[#allocation5 + $0x68] sm:$0xff]
    %v104 = vld [vmem:[#allocation5 + $0x70] sm:$0xff]
    %v105 = vld [vmem:[#allocation5 + $0x78] sm:$0xff]
    %v106 = vld [vmem:[#allocation5 + $0x80] sm:$0xff]
    %v107 = vld [vmem:[#allocation5 + $0x88] sm:$0xff]
    %v108 = vld [vmem:[#allocation5 + $0x90] sm:$0xff]
    %v109 = vld [vmem:[#allocation5 + $0x98] sm:$0xff]
    %v110 = vld [vmem:[#allocation5 + $0xa0] sm:$0xff]
    %v111 = vld [vmem:[#allocation5 + $0xa8] sm:$0xff]
    %v112 = vld [vmem:[#allocation5 + $0xb0] sm:$0xff]
    %v113 = vld [vmem:[#allocation5 + $0xb8] sm:$0xff]
    %v114 = vld [vmem:[#allocation5 + $0xc0] sm:$0xff]
    %v115 = vld [vmem:[#allocation5 + $0xc8] sm:$0xff]
    %v116 = vld [vmem:[#allocation5 + $0xd0] sm:$0xff]
    %v117 = vld [vmem:[#allocation5 + $0xd8] sm:$0xff]
    %v118 = vld [vmem:[#allocation5 + $0xe0] sm:$0xff]
    %v119 = vld [vmem:[#allocation5 + $0xe8] sm:$0xff]
    %v120 = vld [vmem:[#allocation5 + $0xf0] sm:$0xff]
    %v121 = vld [vmem:[#allocation5 + $0xf8] sm:$0xff]
    %v122 = vld [vmem:[#allocation5 + $0x100] sm:$0xff]
    %v123 = vld [vmem:[#allocation5 + $0x108] sm:$0xff]
    %v124 = vld [vmem:[#allocation5 + $0x110] sm:$0xff]
    %v125 = vld [vmem:[#allocation5 + $0x118] sm:$0xff]
    %v126 = vld [vmem:[#allocation5 + $0x120] sm:$0xff]
    %v127 = vld [vmem:[#allocation5 + $0x128] sm:$0xff]
    %v128 = vld [vmem:[#allocation5 + $0x130] sm:$0xff]
    %v129 = vld [vmem:[#allocation5 + $0x138] sm:$0xff]
    %v130 = vld [vmem:[#allocation5 + $0x140] sm:$0xff]
    %v131 = vld [vmem:[#allocation5 + $0x148] sm:$0xff]
    %v132 = vld [vmem:[#allocation5 + $0x150] sm:$0xff]
    %v133 = vld [vmem:[#allocation5 + $0x158] sm:$0xff]
    %v134 = vld [vmem:[#allocation5 + $0x160] sm:$0xff]
    %v135 = vld [vmem:[#allocation5 + $0x168] sm:$0xff]
    %v136 = vld [vmem:[#allocation5 + $0x170] sm:$0xff]
    %v137 = vld [vmem:[#allocation5 + $0x178] sm:$0xff]
    %v138 = vld [vmem:[#allocation5 + $0x180] sm:$0xff]
    %v139 = vld [vmem:[#allocation5 + $0x188] sm:$0xff]
    %v140 = vld [vmem:[#allocation5 + $0x190] sm:$0xff]
    %v141 = vld [vmem:[#allocation5 + $0x198] sm:$0xff]
    %v142 = vld [vmem:[#allocation5 + $0x1a0] sm:$0xff]
    %v143 = vld [vmem:[#allocation5 + $0x1a8] sm:$0xff]
    %v144 = vld [vmem:[#allocation5 + $0x1b0] sm:$0xff]
    %v145 = vld [vmem:[#allocation5 + $0x1b8] sm:$0xff]
    %v146 = vld [vmem:[#allocation5 + $0x1c0] sm:$0xff]
    %v147 = vld [vmem:[#allocation5 + $0x1c8] sm:$0xff]
    %v148 = vld [vmem:[#allocation5 + $0x1d0] sm:$0xff]
    %v149 = vld [vmem:[#allocation5 + $0x1d8] sm:$0xff]
    %v150 = vld [vmem:[#allocation5 + $0x1e0] sm:$0xff]
    %v151 = vld [vmem:[#allocation5 + $0x1e8] sm:$0xff]
    %v152 = vld [vmem:[#allocation5 + $0x1f0] sm:$0xff]
    %v153 = vld [vmem:[#allocation5 + $0x1f8] sm:$0xff]
    %v154 = vld [vmem:[#allocation5 + $0x200] sm:$0xff]
    %v155 = vld [vmem:[#allocation5 + $0x208] sm:$0xff]
    %v156 = vld [vmem:[#allocation5 + $0x210] sm:$0xff]
    %v157 = vld [vmem:[#allocation5 + $0x218] sm:$0xff]
    %v158 = vld [vmem:[#allocation5 + $0x220] sm:$0xff]
    %v159 = vld [vmem:[#allocation5 + $0x228] sm:$0xff]
    %v160 = vld [vmem:[#allocation5 + $0x230] sm:$0xff]
    %v161 = vld [vmem:[#allocation5 + $0x238] sm:$0xff]
    %v162 = vld [vmem:[#allocation5 + $0x240] sm:$0xff]
    %v163 = vld [vmem:[#allocation5 + $0x248] sm:$0xff]
    %v164 = vld [vmem:[#allocation5 + $0x250] sm:$0xff]
    %v165 = vld [vmem:[#allocation5 + $0x258] sm:$0xff]
    %v166 = vld [vmem:[#allocation5 + $0x260] sm:$0xff]
    %v167 = vld [vmem:[#allocation5 + $0x268] sm:$0xff]
    %v168 = vld [vmem:[#allocation5 + $0x270] sm:$0xff]
    %v169 = vld [vmem:[#allocation5 + $0x278] sm:$0xff]
    %v170 = vld [vmem:[#allocation5 + $0x280] sm:$0xff]
    %v171 = vld [vmem:[#allocation5 + $0x288] sm:$0xff]
    %v172 = vld [vmem:[#allocation5 + $0x290] sm:$0xff]
    %v173 = vld [vmem:[#allocation5 + $0x298] sm:$0xff]
    %v174 = vld [vmem:[#allocation5 + $0x2a0] sm:$0xff]
    %v175 = vld [vmem:[#allocation5 + $0x2a8] sm:$0xff]
    %v176 = vld [vmem:[#allocation5 + $0x2b0] sm:$0xff]
    %v177 = vld [vmem:[#allocation5 + $0x2b8] sm:$0xff]
    %v178 = vld [vmem:[#allocation5 + $0x2c0] sm:$0xff]
    %v179 = vld [vmem:[#allocation5 + $0x2c8] sm:$0xff]
    %v180 = vld [vmem:[#allocation5 + $0x2d0] sm:$0xff]
    %v181 = vld [vmem:[#allocation5 + $0x2d8] sm:$0xff]
    %v182 = vld [vmem:[#allocation5 + $0x2e0] sm:$0xff]
    %v183 = vld [vmem:[#allocation5 + $0x2e8] sm:$0xff]
    %v184 = vld [vmem:[#allocation5 + $0x2f0] sm:$0xff]
    %v185 = vld [vmem:[#allocation5 + $0x2f8] sm:$0xff]
    %v186 = vld [vmem:[#allocation5 + $0x300] sm:$0xff]
    %v187 = vld [vmem:[#allocation5 + $0x308] sm:$0xff]
    %v188 = vld [vmem:[#allocation5 + $0x310] sm:$0xff]
    %v189 = vld [vmem:[#allocation5 + $0x318] sm:$0xff]
    %v190 = vld [vmem:[#allocation5 + $0x320] sm:$0xff]
    %v191 = vld [vmem:[#allocation5 + $0x328] sm:$0xff]
    %v192 = vld [vmem:[#allocation5 + $0x330] sm:$0xff]
    %v193 = vld [vmem:[#allocation5 + $0x338] sm:$0xff]
    %v194 = vld [vmem:[#allocation5 + $0x340] sm:$0xff]
    %v195 = vld [vmem:[#allocation5 + $0x348] sm:$0xff]
    %v196 = vld [vmem:[#allocation5 + $0x350] sm:$0xff]
    %v197 = vld [vmem:[#allocation5 + $0x358] sm:$0xff]
    %v198 = vld [vmem:[#allocation5 + $0x360] sm:$0xff]
    %v199 = vld [vmem:[#allocation5 + $0x368] sm:$0xff]
    %v200 = vld [vmem:[#allocation5 + $0x370] sm:$0xff]
    %v201 = vld [vmem:[#allocation5 + $0x378] sm:$0xff]
    %v202 = vld [vmem:[#allocation5 + $0x380] sm:$0xff]
    %v203 = vld [vmem:[#allocation5 + $0x388] sm:$0xff]
    %v204 = vld [vmem:[#allocation5 + $0x390] sm:$0xff]
    %v205 = vld [vmem:[#allocation5 + $0x398] sm:$0xff]
    %v206 = vld [vmem:[#allocation5 + $0x3a0] sm:$0xff]
    %v207 = vld [vmem:[#allocation5 + $0x3a8] sm:$0xff]
    %v208 = vld [vmem:[#allocation5 + $0x3b0] sm:$0xff]
    %v209 = vld [vmem:[#allocation5 + $0x3b8] sm:$0xff]
    %v210 = vld [vmem:[#allocation5 + $0x3c0] sm:$0xff]
    %v211 = vld [vmem:[#allocation5 + $0x3c8] sm:$0xff]
    %v212 = vld [vmem:[#allocation5 + $0x3d0] sm:$0xff]
    %v213 = vld [vmem:[#allocation5 + $0x3d8] sm:$0xff]
    %v214 = vld [vmem:[#allocation5 + $0x3e0] sm:$0xff]
    %v215 = vld [vmem:[#allocation5 + $0x3e8] sm:$0xff]
    %v216 = vld [vmem:[#allocation5 + $0x3f0] sm:$0xff]
    %v217 = vld [vmem:[#allocation5 + $0x3f8] sm:$0xff]
    %v218 = vld [vmem:[#allocation5 + $0x400] sm:$0xff]
    %v219 = vld [vmem:[#allocation5 + $0x408] sm:$0xff]
    %v220 = vld [vmem:[#allocation5 + $0x410] sm:$0xff]
    %v221 = vld [vmem:[#allocation5 + $0x418] sm:$0xff]
    %v222 = vld [vmem:[#allocation5 + $0x420] sm:$0xff]
    %v223 = vld [vmem:[#allocation5 + $0x428] sm:$0xff]
    %v224 = vld [vmem:[#allocation5 + $0x430] sm:$0xff]
    %v225 = vld [vmem:[#allocation5 + $0x438] sm:$0xff]
    %v226 = vld [vmem:[#allocation5 + $0x440] sm:$0xff]
    %v227 = vld [vmem:[#allocation5 + $0x448] sm:$0xff]
    %v228 = vld [vmem:[#allocation5 + $0x450] sm:$0xff]
    %v229 = vld [vmem:[#allocation5 + $0x458] sm:$0xff]
    %v230 = vld [vmem:[#allocation5 + $0x460] sm:$0xff]
    %v231 = vld [vmem:[#allocation5 + $0x468] sm:$0xff]
    %v232 = vld [vmem:[#allocation5 + $0x470] sm:$0xff]
    %v233 = vld [vmem:[#allocation5 + $0x478] sm:$0xff]
    %v234 = vld [vmem:[#allocation5 + $0x480] sm:$0xff]
    %v235 = vld [vmem:[#allocation5 + $0x488] sm:$0xff]
    %v236 = vld [vmem:[#allocation5 + $0x490] sm:$0xff]
    %v237 = vld [vmem:[#allocation5 + $0x498] sm:$0xff]
    %v238 = vld [vmem:[#allocation5 + $0x4a0] sm:$0xff]
    %v239 = vld [vmem:[#allocation5 + $0x4a8] sm:$0xff]
    %v240 = vld [vmem:[#allocation5 + $0x4b0] sm:$0xff]
    %v241 = vld [vmem:[#allocation5 + $0x4b8] sm:$0xff]
    %v242 = vld [vmem:[#allocation5 + $0x4c0] sm:$0xff]
    %v243 = vld [vmem:[#allocation5 + $0x4c8] sm:$0xff]
    %v244 = vld [vmem:[#allocation5 + $0x4d0] sm:$0xff]
    %v245 = vld [vmem:[#allocation5 + $0x4d8] sm:$0xff]
    %v246 = vld [vmem:[#allocation5 + $0x4e0] sm:$0xff]
    %v247 = vld [vmem:[#allocation5 + $0x4e8] sm:$0xff]
    %v248 = vld [vmem:[#allocation5 + $0x4f0] sm:$0xff]
    %v249 = vld [vmem:[#allocation5 + $0x4f8] sm:$0xff]
    %v250 = vld [vmem:[#allocation5 + $0x500] sm:$0xff]
    %v251 = vld [vmem:[#allocation5 + $0x508] sm:$0xff]
    %v252 = vld [vmem:[#allocation5 + $0x510] sm:$0xff]
    %v253 = vld [vmem:[#allocation5 + $0x518] sm:$0xff]
    %v254 = vld [vmem:[#allocation5 + $0x520] sm:$0xff]
    %v255 = vld [vmem:[#allocation5 + $0x528] sm:$0xff]
    %v256 = vld [vmem:[#allocation5 + $0x530] sm:$0xff]
    %v257 = vld [vmem:[#allocation5 + $0x538] sm:$0xff]
    %v258 = vld [vmem:[#allocation5 + $0x540] sm:$0xff]
    %v259 = vld [vmem:[#allocation5 + $0x548] sm:$0xff]
    %v260 = vld [vmem:[#allocation5 + $0x550] sm:$0xff]
    %v261 = vld [vmem:[#allocation5 + $0x558] sm:$0xff]
    %v262 = vld [vmem:[#allocation5 + $0x560] sm:$0xff]
    %v263 = vld [vmem:[#allocation5 + $0x568] sm:$0xff]
    %v264 = vld [vmem:[#allocation5 + $0x570] sm:$0xff]
    %v265 = vld [vmem:[#allocation5 + $0x578] sm:$0xff]
    %v266 = vld [vmem:[#allocation5 + $0x580] sm:$0xff]
    %v267 = vld [vmem:[#allocation5 + $0x588] sm:$0xff]
    %v268 = vld [vmem:[#allocation5 + $0x590] sm:$0xff]
    %v269 = vld [vmem:[#allocation5 + $0x598] sm:$0xff]
    %v270 = vld [vmem:[#allocation5 + $0x5a0] sm:$0xff]
    %v271 = vld [vmem:[#allocation5 + $0x5a8] sm:$0xff]
    %v272 = vld [vmem:[#allocation5 + $0x5b0] sm:$0xff]
    %v273 = vld [vmem:[#allocation5 + $0x5b8] sm:$0xff]
    %v274 = vld [vmem:[#allocation5 + $0x5c0] sm:$0xff]
    %v275 = vld [vmem:[#allocation5 + $0x5c8] sm:$0xff]
    %v276 = vld [vmem:[#allocation5 + $0x5d0] sm:$0xff]
    %v277 = vld [vmem:[#allocation5 + $0x5d8] sm:$0xff]
    %v278 = vld [vmem:[#allocation5 + $0x5e0] sm:$0xff]
    %v279 = vld [vmem:[#allocation5 + $0x5e8] sm:$0xff]
    %v280 = vld [vmem:[#allocation5 + $0x5f0] sm:$0xff]
    %v281 = vld [vmem:[#allocation5 + $0x5f8] sm:$0xff]
    %v282 = vld [vmem:[#allocation5 + $0x600] sm:$0xff]
    %v283 = vld [vmem:[#allocation5 + $0x608] sm:$0xff]
    %v284 = vld [vmem:[#allocation5 + $0x610] sm:$0xff]
    %v285 = vld [vmem:[#allocation5 + $0x618] sm:$0xff]
    %v286 = vld [vmem:[#allocation5 + $0x620] sm:$0xff]
    %v287 = vld [vmem:[#allocation5 + $0x628] sm:$0xff]
    %v288 = vld [vmem:[#allocation5 + $0x630] sm:$0xff]
    %v289 = vld [vmem:[#allocation5 + $0x638] sm:$0xff]
    %v290 = vld [vmem:[#allocation5 + $0x640] sm:$0xff]
    %v291 = vld [vmem:[#allocation5 + $0x648] sm:$0xff]
    %v292 = vld [vmem:[#allocation5 + $0x650] sm:$0xff]
    %v293 = vld [vmem:[#allocation5 + $0x658] sm:$0xff]
    %v294 = vld [vmem:[#allocation5 + $0x660] sm:$0xff]
    %v295 = vld [vmem:[#allocation5 + $0x668] sm:$0xff]
    %v296 = vld [vmem:[#allocation5 + $0x670] sm:$0xff]
    %v297 = vld [vmem:[#allocation5 + $0x678] sm:$0xff]
    %v298 = vld [vmem:[#allocation5 + $0x680] sm:$0xff]
    %v299 = vld [vmem:[#allocation5 + $0x688] sm:$0xff]
    %v300 = vld [vmem:[#allocation5 + $0x690] sm:$0xff]
    %v301 = vld [vmem:[#allocation5 + $0x698] sm:$0xff]
    %v302 = vld [vmem:[#allocation5 + $0x6a0] sm:$0xff]
    %v303 = vld [vmem:[#allocation5 + $0x6a8] sm:$0xff]
    %v304 = vld [vmem:[#allocation5 + $0x6b0] sm:$0xff]
    %v305 = vld [vmem:[#allocation5 + $0x6b8] sm:$0xff]
    %v306 = vld [vmem:[#allocation5 + $0x6c0] sm:$0xff]
    %v307 = vld [vmem:[#allocation5 + $0x6c8] sm:$0xff]
    %v308 = vld [vmem:[#allocation5 + $0x6d0] sm:$0xff]
    %v309 = vld [vmem:[#allocation5 + $0x6d8] sm:$0xff]
    %v310 = vld [vmem:[#allocation5 + $0x6e0] sm:$0xff]
    %v311 = vld [vmem:[#allocation5 + $0x6e8] sm:$0xff]
    %v312 = vld [vmem:[#allocation5 + $0x6f0] sm:$0xff]
    %v313 = vld [vmem:[#allocation5 + $0x6f8] sm:$0xff]
    %v314 = vld [vmem:[#allocation5 + $0x700] sm:$0xff]
    %v315 = vld [vmem:[#allocation5 + $0x708] sm:$0xff]
    %v316 = vld [vmem:[#allocation5 + $0x710] sm:$0xff]
    %v317 = vld [vmem:[#allocation5 + $0x718] sm:$0xff]
    %v318 = vld [vmem:[#allocation5 + $0x720] sm:$0xff]
    %v319 = vld [vmem:[#allocation5 + $0x728] sm:$0xff]
    %v320 = vld [vmem:[#allocation5 + $0x730] sm:$0xff]
    %v321 = vld [vmem:[#allocation5 + $0x738] sm:$0xff]
    %v322 = vld [vmem:[#allocation5 + $0x740] sm:$0xff]
    %v323 = vld [vmem:[#allocation5 + $0x748] sm:$0xff]
    %v324 = vld [vmem:[#allocation5 + $0x750] sm:$0xff]
    %v325 = vld [vmem:[#allocation5 + $0x758] sm:$0xff]
    %v326 = vld [vmem:[#allocation5 + $0x760] sm:$0xff]
    %v327 = vld [vmem:[#allocation5 + $0x768] sm:$0xff]
    %v328 = vld [vmem:[#allocation5 + $0x770] sm:$0xff]
    %v329 = vld [vmem:[#allocation5 + $0x778] sm:$0xff]
    %v330 = vld [vmem:[#allocation5 + $0x780] sm:$0xff]
    %v331 = vld [vmem:[#allocation5 + $0x788] sm:$0xff]
    %v332 = vld [vmem:[#allocation5 + $0x790] sm:$0xff]
    %v333 = vld [vmem:[#allocation5 + $0x798] sm:$0xff]
    %v334 = vld [vmem:[#allocation5 + $0x7a0] sm:$0xff]
    %v335 = vld [vmem:[#allocation5 + $0x7a8] sm:$0xff]
    %v336 = vld [vmem:[#allocation5 + $0x7b0] sm:$0xff]
    %v337 = vld [vmem:[#allocation5 + $0x7b8] sm:$0xff]
    %v338 = vld [vmem:[#allocation5 + $0x7c0] sm:$0xff]
    %v339 = vld [vmem:[#allocation5 + $0x7c8] sm:$0xff]
    %v340 = vld [vmem:[#allocation5 + $0x7d0] sm:$0xff]
    %v341 = vld [vmem:[#allocation5 + $0x7d8] sm:$0xff]
    %v342 = vld [vmem:[#allocation5 + $0x7e0] sm:$0xff]
    %v343 = vld [vmem:[#allocation5 + $0x7e8] sm:$0xff]
    %v344 = vld [vmem:[#allocation5 + $0x7f0] sm:$0xff]
    %v345 = vld [vmem:[#allocation5 + $0x7f8] sm:$0xff]
    %v346 = vld [vmem:[#allocation5 + $0x800] sm:$0xff]
    %v347 = vld [vmem:[#allocation5 + $0x808] sm:$0xff]
    %v348 = vld [vmem:[#allocation5 + $0x810] sm:$0xff]
    %v349 = vld [vmem:[#allocation5 + $0x818] sm:$0xff]
    %v350 = vld [vmem:[#allocation5 + $0x820] sm:$0xff]
    %v351 = vld [vmem:[#allocation5 + $0x828] sm:$0xff]
    %v352 = vld [vmem:[#allocation5 + $0x830] sm:$0xff]
    %v353 = vld [vmem:[#allocation5 + $0x838] sm:$0xff]
    %v354 = vld [vmem:[#allocation5 + $0x840] sm:$0xff]
    %v355 = vld [vmem:[#allocation5 + $0x848] sm:$0xff]
    %v356 = vld [vmem:[#allocation5 + $0x850] sm:$0xff]
    %v357 = vld [vmem:[#allocation5 + $0x858] sm:$0xff]
    %v358 = vld [vmem:[#allocation5 + $0x860] sm:$0xff]
    %v359 = vld [vmem:[#allocation5 + $0x868] sm:$0xff]
    %v360 = vld [vmem:[#allocation5 + $0x870] sm:$0xff]
    %v361 = vld [vmem:[#allocation5 + $0x878] sm:$0xff]
    %v362 = vld [vmem:[#allocation5 + $0x880] sm:$0xff]
    %v363 = vld [vmem:[#allocation5 + $0x888] sm:$0xff]
    %v364 = vld [vmem:[#allocation5 + $0x890] sm:$0xff]
    %v365 = vld [vmem:[#allocation5 + $0x898] sm:$0xff]
    %v366 = vld [vmem:[#allocation5 + $0x8a0] sm:$0xff]
    %v367 = vld [vmem:[#allocation5 + $0x8a8] sm:$0xff]
    %v368 = vld [vmem:[#allocation5 + $0x8b0] sm:$0xff]
    %v369 = vld [vmem:[#allocation5 + $0x8b8] sm:$0xff]
    %v370 = vld [vmem:[#allocation5 + $0x8c0] sm:$0xff]
    %v371 = vld [vmem:[#allocation5 + $0x8c8] sm:$0xff]
    %v372 = vld [vmem:[#allocation5 + $0x8d0] sm:$0xff]
    %v373 = vld [vmem:[#allocation5 + $0x8d8] sm:$0xff]
    %v374 = vld [vmem:[#allocation5 + $0x8e0] sm:$0xff]
    %v375 = vld [vmem:[#allocation5 + $0x8e8] sm:$0xff]
    %v376 = vld [vmem:[#allocation5 + $0x8f0] sm:$0xff]
    %v377 = vld [vmem:[#allocation5 + $0x8f8] sm:$0xff]
    %v378 = vld [vmem:[#allocation5 + $0x900] sm:$0xff]
    %v379 = vld [vmem:[#allocation5 + $0x908] sm:$0xff]
    %v380 = vld [vmem:[#allocation5 + $0x910] sm:$0xff]
    %v381 = vld [vmem:[#allocation5 + $0x918] sm:$0xff]
    %v382 = vld [vmem:[#allocation5 + $0x920] sm:$0xff]
    %v383 = vld [vmem:[#allocation5 + $0x928] sm:$0xff]
    %v384 = vld [vmem:[#allocation5 + $0x930] sm:$0xff]
    %v385 = vld [vmem:[#allocation5 + $0x938] sm:$0xff]
    %v386 = vld [vmem:[#allocation5 + $0x940] sm:$0xff]
    %v387 = vld [vmem:[#allocation5 + $0x948] sm:$0xff]
    %v388 = vld [vmem:[#allocation5 + $0x950] sm:$0xff]
    %v389 = vld [vmem:[#allocation5 + $0x958] sm:$0xff]
    %v390 = vld [vmem:[#allocation5 + $0x960] sm:$0xff]
    %v391 = vld [vmem:[#allocation5 + $0x968] sm:$0xff]
    %v392 = vld [vmem:[#allocation5 + $0x970] sm:$0xff]
    %v393 = vld [vmem:[#allocation5 + $0x978] sm:$0xff]
    %v394 = vld [vmem:[#allocation5 + $0x980] sm:$0xff]
    %v395 = vld [vmem:[#allocation5 + $0x988] sm:$0xff]
    %v396 = vld [vmem:[#allocation5 + $0x990] sm:$0xff]
    %v397 = vld [vmem:[#allocation5 + $0x998] sm:$0xff]
    %v398 = vld [vmem:[#allocation5 + $0x9a0] sm:$0xff]
    %v399 = vld [vmem:[#allocation5 + $0x9a8] sm:$0xff]
    %v400 = vld [vmem:[#allocation5 + $0x9b0] sm:$0xff]
    %v401 = vld [vmem:[#allocation5 + $0x9b8] sm:$0xff]
    %v402 = vld [vmem:[#allocation5 + $0x9c0] sm:$0xff]
    %v403 = vld [vmem:[#allocation5 + $0x9c8] sm:$0xff]
    %v404 = vld [vmem:[#allocation5 + $0x9d0] sm:$0xff]
    %v405 = vld [vmem:[#allocation5 + $0x9d8] sm:$0xff]
    %v406 = vld [vmem:[#allocation5 + $0x9e0] sm:$0xff]
    %v407 = vld [vmem:[#allocation5 + $0x9e8] sm:$0xff]
    %v408 = vld [vmem:[#allocation5 + $0x9f0] sm:$0xff]
    %v409 = vld [vmem:[#allocation5 + $0x9f8] sm:$0xff]
    %v410 = vld [vmem:[#allocation5 + $0xa00] sm:$0xff]
    %v411 = vld [vmem:[#allocation5 + $0xa08] sm:$0xff]
    %v412 = vld [vmem:[#allocation5 + $0xa10] sm:$0xff]
    %v413 = vld [vmem:[#allocation5 + $0xa18] sm:$0xff]
    %v414 = vld [vmem:[#allocation5 + $0xa20] sm:$0xff]
    %v415 = vld [vmem:[#allocation5 + $0xa28] sm:$0xff]
    %v416 = vld [vmem:[#allocation5 + $0xa30] sm:$0xff]
    %v417 = vld [vmem:[#allocation5 + $0xa38] sm:$0xff]
    %v418 = vld [vmem:[#allocation5 + $0xa40] sm:$0xff]
    %v419 = vld [vmem:[#allocation5 + $0xa48] sm:$0xff]
    %v420 = vld [vmem:[#allocation5 + $0xa50] sm:$0xff]
    %v421 = vld [vmem:[#allocation5 + $0xa58] sm:$0xff]
    %v422 = vld [vmem:[#allocation5 + $0xa60] sm:$0xff]
    %v423 = vld [vmem:[#allocation5 + $0xa68] sm:$0xff]
    %v424 = vld [vmem:[#allocation5 + $0xa70] sm:$0xff]
    %v425 = vld [vmem:[#allocation5 + $0xa78] sm:$0xff]
    %v426 = vld [vmem:[#allocation5 + $0xa80] sm:$0xff]
    %v427 = vld [vmem:[#allocation5 + $0xa88] sm:$0xff]
    %v428 = vld [vmem:[#allocation5 + $0xa90] sm:$0xff]
    %v429 = vld [vmem:[#allocation5 + $0xa98] sm:$0xff]
    %v430 = vld [vmem:[#allocation5 + $0xaa0] sm:$0xff]
    %v431 = vld [vmem:[#allocation5 + $0xaa8] sm:$0xff]
    %v432 = vld [vmem:[#allocation5 + $0xab0] sm:$0xff]
    %v433 = vld [vmem:[#allocation5 + $0xab8] sm:$0xff]
    %v434 = vld [vmem:[#allocation5 + $0xac0] sm:$0xff]
    %v435 = vld [vmem:[#allocation5 + $0xac8] sm:$0xff]
    %v436 = vld [vmem:[#allocation5 + $0xad0] sm:$0xff]
    %v437 = vld [vmem:[#allocation5 + $0xad8] sm:$0xff]
    %v438 = vld [vmem:[#allocation5 + $0xae0] sm:$0xff]
    %v439 = vld [vmem:[#allocation5 + $0xae8] sm:$0xff]
    %v440 = vld [vmem:[#allocation5 + $0xaf0] sm:$0xff]
    %v441 = vld [vmem:[#allocation5 + $0xaf8] sm:$0xff]
    %v442 = vld [vmem:[#allocation5 + $0xb00] sm:$0xff]
    %v443 = vld [vmem:[#allocation5 + $0xb08] sm:$0xff]
    %v444 = vld [vmem:[#allocation5 + $0xb10] sm:$0xff]
    %v445 = vld [vmem:[#allocation5 + $0xb18] sm:$0xff]
    %v446 = vld [vmem:[#allocation5 + $0xb20] sm:$0xff]
    %v447 = vld [vmem:[#allocation5 + $0xb28] sm:$0xff]
    %v448 = vld [vmem:[#allocation5 + $0xb30] sm:$0xff]
    %v449 = vld [vmem:[#allocation5 + $0xb38] sm:$0xff]
    %v450 = vld [vmem:[#allocation5 + $0xb40] sm:$0xff]
    %v451 = vld [vmem:[#allocation5 + $0xb48] sm:$0xff]
    %v452 = vld [vmem:[#allocation5 + $0xb50] sm:$0xff]
    %v453 = vld [vmem:[#allocation5 + $0xb58] sm:$0xff]
    %v454 = vld [vmem:[#allocation5 + $0xb60] sm:$0xff]
    %v455 = vld [vmem:[#allocation5 + $0xb68] sm:$0xff]
    %v456 = vld [vmem:[#allocation5 + $0xb70] sm:$0xff]
    %v457 = vld [vmem:[#allocation5 + $0xb78] sm:$0xff]
    %v458 = vld [vmem:[#allocation5 + $0xb80] sm:$0xff]
    %v459 = vld [vmem:[#allocation5 + $0xb88] sm:$0xff]
    %v460 = vld [vmem:[#allocation5 + $0xb90] sm:$0xff]
    %v461 = vld [vmem:[#allocation5 + $0xb98] sm:$0xff]
    %v462 = vld [vmem:[#allocation5 + $0xba0] sm:$0xff]
    %v463 = vld [vmem:[#allocation5 + $0xba8] sm:$0xff]
    %v464 = vld [vmem:[#allocation5 + $0xbb0] sm:$0xff]
    %v465 = vld [vmem:[#allocation5 + $0xbb8] sm:$0xff]
    %v466 = vld [vmem:[#allocation5 + $0xbc0] sm:$0xff]
    %v467 = vld [vmem:[#allocation5 + $0xbc8] sm:$0xff]
    %v468 = vld [vmem:[#allocation5 + $0xbd0] sm:$0xff]
    %v469 = vld [vmem:[#allocation5 + $0xbd8] sm:$0xff]
    %v470 = vld [vmem:[#allocation5 + $0xbe0] sm:$0xff]
    %v471 = vld [vmem:[#allocation5 + $0xbe8] sm:$0xff]
    %v472 = vld [vmem:[#allocation5 + $0xbf0] sm:$0xff]
    %v473 = vld [vmem:[#allocation5 + $0xbf8] sm:$0xff]
    %v474 = vld [vmem:[#allocation5 + $0xc00] sm:$0xff]
    %v475 = vld [vmem:[#allocation5 + $0xc08] sm:$0xff]
    %v476 = vld [vmem:[#allocation5 + $0xc10] sm:$0xff]
    %v477 = vld [vmem:[#allocation5 + $0xc18] sm:$0xff]
    %v478 = vld [vmem:[#allocation5 + $0xc20] sm:$0xff]
    %v479 = vld [vmem:[#allocation5 + $0xc28] sm:$0xff]
    %v480 = vld [vmem:[#allocation5 + $0xc30] sm:$0xff]
    %v481 = vld [vmem:[#allocation5 + $0xc38] sm:$0xff]
    %v482 = vld [vmem:[#allocation5 + $0xc40] sm:$0xff]
    %v483 = vld [vmem:[#allocation5 + $0xc48] sm:$0xff]
    %v484 = vld [vmem:[#allocation5 + $0xc50] sm:$0xff]
    %v485 = vld [vmem:[#allocation5 + $0xc58] sm:$0xff]
    %v486 = vld [vmem:[#allocation5 + $0xc60] sm:$0xff]
    %v487 = vld [vmem:[#allocation5 + $0xc68] sm:$0xff]
    %v488 = vld [vmem:[#allocation5 + $0xc70] sm:$0xff]
    %v489 = vld [vmem:[#allocation5 + $0xc78] sm:$0xff]
    %v490 = vld [vmem:[#allocation5 + $0xc80] sm:$0xff]
    %v491 = vld [vmem:[#allocation5 + $0xc88] sm:$0xff]
    %v492 = vld [vmem:[#allocation5 + $0xc90] sm:$0xff]
    %v493 = vld [vmem:[#allocation5 + $0xc98] sm:$0xff]
    %v494 = vld [vmem:[#allocation5 + $0xca0] sm:$0xff]
    %v495 = vld [vmem:[#allocation5 + $0xca8] sm:$0xff]
    %v496 = vld [vmem:[#allocation5 + $0xcb0] sm:$0xff]
    %v497 = vld [vmem:[#allocation5 + $0xcb8] sm:$0xff]
    %v498 = vld [vmem:[#allocation5 + $0xcc0] sm:$0xff]
    %v499 = vld [vmem:[#allocation5 + $0xcc8] sm:$0xff]
    %v500 = vld [vmem:[#allocation5 + $0xcd0] sm:$0xff]
    %v501 = vld [vmem:[#allocation5 + $0xcd8] sm:$0xff]
    %v502 = vld [vmem:[#allocation5 + $0xce0] sm:$0xff]
    %v503 = vld [vmem:[#allocation5 + $0xce8] sm:$0xff]
    %v504 = vld [vmem:[#allocation5 + $0xcf0] sm:$0xff]
    %v505 = vld [vmem:[#allocation5 + $0xcf8] sm:$0xff]
    %v506 = vld [vmem:[#allocation5 + $0xd00] sm:$0xff]
    %v507 = vld [vmem:[#allocation5 + $0xd08] sm:$0xff]
    %v508 = vld [vmem:[#allocation5 + $0xd10] sm:$0xff]
    %v509 = vld [vmem:[#allocation5 + $0xd18] sm:$0xff]
    %v510 = vld [vmem:[#allocation5 + $0xd20] sm:$0xff]
    %v511 = vld [vmem:[#allocation5 + $0xd28] sm:$0xff]
    %v512 = vld [vmem:[#allocation5 + $0xd30] sm:$0xff]
    %v513 = vld [vmem:[#allocation5 + $0xd38] sm:$0xff]
    %v514 = vld [vmem:[#allocation5 + $0xd40] sm:$0xff]
    %v515 = vld [vmem:[#allocation5 + $0xd48] sm:$0xff]
    %v516 = vld [vmem:[#allocation5 + $0xd50] sm:$0xff]
    %v517 = vld [vmem:[#allocation5 + $0xd58] sm:$0xff]
    %v518 = vld [vmem:[#allocation5 + $0xd60] sm:$0xff]
    %v519 = vld [vmem:[#allocation5 + $0xd68] sm:$0xff]
    %v520 = vld [vmem:[#allocation5 + $0xd70] sm:$0xff]
    %v521 = vld [vmem:[#allocation5 + $0xd78] sm:$0xff]
    %v522 = vld [vmem:[#allocation5 + $0xd80] sm:$0xff]
    %v523 = vld [vmem:[#allocation5 + $0xd88] sm:$0xff]
    %v524 = vld [vmem:[#allocation5 + $0xd90] sm:$0xff]
    %v525 = vld [vmem:[#allocation5 + $0xd98] sm:$0xff]
    %v526 = vld [vmem:[#allocation5 + $0xda0] sm:$0xff]
    %v527 = vld [vmem:[#allocation5 + $0xda8] sm:$0xff]
    %v528 = vld [vmem:[#allocation5 + $0xdb0] sm:$0xff]
    %v529 = vld [vmem:[#allocation5 + $0xdb8] sm:$0xff]
    %v530 = vld [vmem:[#allocation5 + $0xdc0] sm:$0xff]
    %v531 = vld [vmem:[#allocation5 + $0xdc8] sm:$0xff]
    %v532 = vld [vmem:[#allocation5 + $0xdd0] sm:$0xff]
    %v533 = vld [vmem:[#allocation5 + $0xdd8] sm:$0xff]
    %v534 = vld [vmem:[#allocation5 + $0xde0] sm:$0xff]
    %v535 = vld [vmem:[#allocation5 + $0xde8] sm:$0xff]
    %v536 = vld [vmem:[#allocation5 + $0xdf0] sm:$0xff]
    %v537 = vld [vmem:[#allocation5 + $0xdf8] sm:$0xff]
    %v538 = vld [vmem:[#allocation5 + $0xe00] sm:$0xff]
    %v539 = vld [vmem:[#allocation5 + $0xe08] sm:$0xff]
    %v540 = vld [vmem:[#allocation5 + $0xe10] sm:$0xff]
    %v541 = vld [vmem:[#allocation5 + $0xe18] sm:$0xff]
    %v542 = vld [vmem:[#allocation5 + $0xe20] sm:$0xff]
    %v543 = vld [vmem:[#allocation5 + $0xe28] sm:$0xff]
    %v544 = vld [vmem:[#allocation5 + $0xe30] sm:$0xff]
    %v545 = vld [vmem:[#allocation5 + $0xe38] sm:$0xff]
    %v546 = vld [vmem:[#allocation5 + $0xe40] sm:$0xff]
    %v547 = vld [vmem:[#allocation5 + $0xe48] sm:$0xff]
    %v548 = vld [vmem:[#allocation5 + $0xe50] sm:$0xff]
    %v549 = vld [vmem:[#allocation5 + $0xe58] sm:$0xff]
    %v550 = vld [vmem:[#allocation5 + $0xe60] sm:$0xff]
    %v551 = vld [vmem:[#allocation5 + $0xe68] sm:$0xff]
    %v552 = vld [vmem:[#allocation5 + $0xe70] sm:$0xff]
    %v553 = vld [vmem:[#allocation5 + $0xe78] sm:$0xff]
    %v554 = vld [vmem:[#allocation5 + $0xe80] sm:$0xff]
    %v555 = vld [vmem:[#allocation5 + $0xe88] sm:$0xff]
    %v556 = vld [vmem:[#allocation5 + $0xe90] sm:$0xff]
    %v557 = vld [vmem:[#allocation5 + $0xe98] sm:$0xff]
    %v558 = vld [vmem:[#allocation5 + $0xea0] sm:$0xff]
    %v559 = vld [vmem:[#allocation5 + $0xea8] sm:$0xff]
    %v560 = vld [vmem:[#allocation5 + $0xeb0] sm:$0xff]
    %v561 = vld [vmem:[#allocation5 + $0xeb8] sm:$0xff]
    %v562 = vld [vmem:[#allocation5 + $0xec0] sm:$0xff]
    %v563 = vld [vmem:[#allocation5 + $0xec8] sm:$0xff]
    %v564 = vld [vmem:[#allocation5 + $0xed0] sm:$0xff]
    %v565 = vld [vmem:[#allocation5 + $0xed8] sm:$0xff]
    %v566 = vld [vmem:[#allocation5 + $0xee0] sm:$0xff]
    %v567 = vld [vmem:[#allocation5 + $0xee8] sm:$0xff]
    %v568 = vld [vmem:[#allocation5 + $0xef0] sm:$0xff]
    %v569 = vld [vmem:[#allocation5 + $0xef8] sm:$0xff]
    %v570 = vld [vmem:[#allocation5 + $0xf00] sm:$0xff]
    %v571 = vld [vmem:[#allocation5 + $0xf08] sm:$0xff]
    %v572 = vld [vmem:[#allocation5 + $0xf10] sm:$0xff]
    %v573 = vld [vmem:[#allocation5 + $0xf18] sm:$0xff]
    %v574 = vld [vmem:[#allocation5 + $0xf20] sm:$0xff]
    %v575 = vld [vmem:[#allocation5 + $0xf28] sm:$0xff]
    %v576 = vld [vmem:[#allocation5 + $0xf30] sm:$0xff]
    %v577 = vld [vmem:[#allocation5 + $0xf38] sm:$0xff]
    %v578 = vld [vmem:[#allocation5 + $0xf40] sm:$0xff]
    %v579 = vld [vmem:[#allocation5 + $0xf48] sm:$0xff]
    %v580 = vld [vmem:[#allocation5 + $0xf50] sm:$0xff]
    %v581 = vld [vmem:[#allocation5 + $0xf58] sm:$0xff]
    %v582 = vld [vmem:[#allocation5 + $0xf60] sm:$0xff]
    %v583 = vld [vmem:[#allocation5 + $0xf68] sm:$0xff]
    %v584 = vld [vmem:[#allocation5 + $0xf70] sm:$0xff]
    %v585 = vld [vmem:[#allocation5 + $0xf78] sm:$0xff]
    %v586 = vld [vmem:[#allocation5 + $0xf80] sm:$0xff]
    %v587 = vld [vmem:[#allocation5 + $0xf88] sm:$0xff]
    %v588 = vld [vmem:[#allocation5 + $0xf90] sm:$0xff]
    %v589 = vld [vmem:[#allocation5 + $0xf98] sm:$0xff]
    %v590 = vld [vmem:[#allocation5 + $0xfa0] sm:$0xff]
    %v591 = vld [vmem:[#allocation5 + $0xfa8] sm:$0xff]
    %v592 = vld [vmem:[#allocation5 + $0xfb0] sm:$0xff]
    %v593 = vld [vmem:[#allocation5 + $0xfb8] sm:$0xff]
    %v594 = vld [vmem:[#allocation5 + $0xfc0] sm:$0xff]
    %v595 = vld [vmem:[#allocation5 + $0xfc8] sm:$0xff]
    %v596 = vld [vmem:[#allocation5 + $0xfd0] sm:$0xff]
    %v597 = vld [vmem:[#allocation5 + $0xfd8] sm:$0xff]
    %v598 = vld [vmem:[#allocation5 + $0xfe0] sm:$0xff]
    %v599 = vld [vmem:[#allocation5 + $0xfe8] sm:$0xff]
    %v600 = vld [vmem:[#allocation5 + $0xff0] sm:$0xff]
    %v601 = vld [vmem:[#allocation5 + $0xff8] sm:$0xff]
    %v602 = vld [vmem:[#allocation5 + $0x1000] sm:$0xff]
    %v603 = vld [vmem:[#allocation5 + $0x1008] sm:$0xff]
    %v604 = vld [vmem:[#allocation5 + $0x1010] sm:$0xff]
    %v605 = vld [vmem:[#allocation5 + $0x1018] sm:$0xff]
    %v606 = vld [vmem:[#allocation5 + $0x1020] sm:$0xff]
    %v607 = vld [vmem:[#allocation5 + $0x1028] sm:$0xff]
    %v608 = vld [vmem:[#allocation5 + $0x1030] sm:$0xff]
    %v609 = vld [vmem:[#allocation5 + $0x1038] sm:$0xff]
    %v610 = vld [vmem:[#allocation5 + $0x1040] sm:$0xff]
    %v611 = vld [vmem:[#allocation5 + $0x1048] sm:$0xff]
    %v612 = vld [vmem:[#allocation5 + $0x1050] sm:$0xff]
    %v613 = vld [vmem:[#allocation5 + $0x1058] sm:$0xff]
    %v614 = vld [vmem:[#allocation5 + $0x1060] sm:$0xff]
    %v615 = vld [vmem:[#allocation5 + $0x1068] sm:$0xff]
    %v616 = vld [vmem:[#allocation5 + $0x1070] sm:$0xff]
    %v617 = vld [vmem:[#allocation5 + $0x1078] sm:$0xff]
    %v618 = vld [vmem:[#allocation5 + $0x1080] sm:$0xff]
    %v619 = vld [vmem:[#allocation5 + $0x1088] sm:$0xff]
    %v620 = vld [vmem:[#allocation5 + $0x1090] sm:$0xff]
    %v621 = vld [vmem:[#allocation5 + $0x1098] sm:$0xff]
    %v622 = vld [vmem:[#allocation5 + $0x10a0] sm:$0xff]
    %v623 = vld [vmem:[#allocation5 + $0x10a8] sm:$0xff]
    %v624 = vld [vmem:[#allocation5 + $0x10b0] sm:$0xff]
    %v625 = vld [vmem:[#allocation5 + $0x10b8] sm:$0xff]
    %v626 = vld [vmem:[#allocation5 + $0x10c0] sm:$0xff]
    %v627 = vld [vmem:[#allocation5 + $0x10c8] sm:$0xff]
    %v628 = vld [vmem:[#allocation5 + $0x10d0] sm:$0xff]
    %v629 = vld [vmem:[#allocation5 + $0x10d8] sm:$0xff]
    %v630 = vld [vmem:[#allocation5 + $0x10e0] sm:$0xff]
    %v631 = vld [vmem:[#allocation5 + $0x10e8] sm:$0xff]
    %v632 = vld [vmem:[#allocation5 + $0x10f0] sm:$0xff]
    %v633 = vld [vmem:[#allocation5 + $0x10f8] sm:$0xff]
    %v634 = vld [vmem:[#allocation5 + $0x1100] sm:$0xff]
    %v635 = vld [vmem:[#allocation5 + $0x1108] sm:$0xff]
    %v636 = vld [vmem:[#allocation5 + $0x1110] sm:$0xff]
    %v637 = vld [vmem:[#allocation5 + $0x1118] sm:$0xff]
    %v638 = vld [vmem:[#allocation5 + $0x1120] sm:$0xff]
    %v639 = vld [vmem:[#allocation5 + $0x1128] sm:$0xff]
    %v640 = vld [vmem:[#allocation5 + $0x1130] sm:$0xff]
    %v641 = vld [vmem:[#allocation5 + $0x1138] sm:$0xff]
    %v642 = vld [vmem:[#allocation5 + $0x1140] sm:$0xff]
    %v643 = vld [vmem:[#allocation5 + $0x1148] sm:$0xff]
    %v644 = vld [vmem:[#allocation5 + $0x1150] sm:$0xff]
    %v645 = vld [vmem:[#allocation5 + $0x1158] sm:$0xff]
    %v646 = vld [vmem:[#allocation5 + $0x1160] sm:$0xff]
    %v647 = vld [vmem:[#allocation5 + $0x1168] sm:$0xff]
    %v648 = vld [vmem:[#allocation5 + $0x1170] sm:$0xff]
    %v649 = vld [vmem:[#allocation5 + $0x1178] sm:$0xff]
    %v650 = vld [vmem:[#allocation5 + $0x1180] sm:$0xff]
    %v651 = vld [vmem:[#allocation5 + $0x1188] sm:$0xff]
    %v652 = vld [vmem:[#allocation5 + $0x1190] sm:$0xff]
    %v653 = vld [vmem:[#allocation5 + $0x1198] sm:$0xff]
    %v654 = vld [vmem:[#allocation5 + $0x11a0] sm:$0xff]
    %v655 = vld [vmem:[#allocation5 + $0x11a8] sm:$0xff]
    %v656 = vld [vmem:[#allocation5 + $0x11b0] sm:$0xff]
    %v657 = vld [vmem:[#allocation5 + $0x11b8] sm:$0xff]
    %v658 = vld [vmem:[#allocation5 + $0x11c0] sm:$0xff]
    %v659 = vld [vmem:[#allocation5 + $0x11c8] sm:$0xff]
    %v660 = vld [vmem:[#allocation5 + $0x11d0] sm:$0xff]
    %v661 = vld [vmem:[#allocation5 + $0x11d8] sm:$0xff]
    %v662 = vld [vmem:[#allocation5 + $0x11e0] sm:$0xff]
    %v663 = vld [vmem:[#allocation5 + $0x11e8] sm:$0xff]
    %v664 = vld [vmem:[#allocation5 + $0x11f0] sm:$0xff]
    %v665 = vld [vmem:[#allocation5 + $0x11f8] sm:$0xff]
    %v666 = vld [vmem:[#allocation5 + $0x1200] sm:$0xff]
    %v667 = vld [vmem:[#allocation5 + $0x1208] sm:$0xff]
    %v668 = vld [vmem:[#allocation5 + $0x1210] sm:$0xff]
    %v669 = vld [vmem:[#allocation5 + $0x1218] sm:$0xff]
    %v670 = vld [vmem:[#allocation5 + $0x1220] sm:$0xff]
    %v671 = vld [vmem:[#allocation5 + $0x1228] sm:$0xff]
    %v672 = vld [vmem:[#allocation5 + $0x1230] sm:$0xff]
    %v673 = vld [vmem:[#allocation5 + $0x1238] sm:$0xff]
    %v674 = vld [vmem:[#allocation5 + $0x1240] sm:$0xff]
    %v675 = vld [vmem:[#allocation5 + $0x1248] sm:$0xff]
    %v676 = vld [vmem:[#allocation5 + $0x1250] sm:$0xff]
    %v677 = vld [vmem:[#allocation5 + $0x1258] sm:$0xff]
    %v678 = vld [vmem:[#allocation5 + $0x1260] sm:$0xff]
    %v679 = vld [vmem:[#allocation5 + $0x1268] sm:$0xff]
    %v680 = vld [vmem:[#allocation5 + $0x1270] sm:$0xff]
    %v681 = vld [vmem:[#allocation5 + $0x1278] sm:$0xff]
    %v682 = vld [vmem:[#allocation5 + $0x1280] sm:$0xff]
    %v683 = vld [vmem:[#allocation5 + $0x1288] sm:$0xff]
    %v684 = vld [vmem:[#allocation5 + $0x1290] sm:$0xff]
    %v685 = vld [vmem:[#allocation5 + $0x1298] sm:$0xff]
    %v686 = vld [vmem:[#allocation5 + $0x12a0] sm:$0xff]
    %v687 = vld [vmem:[#allocation5 + $0x12a8] sm:$0xff]
    %v688 = vld [vmem:[#allocation5 + $0x12b0] sm:$0xff]
    %v689 = vld [vmem:[#allocation5 + $0x12b8] sm:$0xff]
    %v690 = vld [vmem:[#allocation5 + $0x12c0] sm:$0xff]
    %v691 = vld [vmem:[#allocation5 + $0x12c8] sm:$0xff]
    %v692 = vld [vmem:[#allocation5 + $0x12d0] sm:$0xff]
    %v693 = vld [vmem:[#allocation5 + $0x12d8] sm:$0xff]
    %v694 = vld [vmem:[#allocation5 + $0x12e0] sm:$0xff]
    %v695 = vld [vmem:[#allocation5 + $0x12e8] sm:$0xff]
    %v696 = vld [vmem:[#allocation5 + $0x12f0] sm:$0xff]
    %v697 = vld [vmem:[#allocation5 + $0x12f8] sm:$0xff]
    %v698 = vld [vmem:[#allocation5 + $0x1300] sm:$0xff]
    %v699 = vld [vmem:[#allocation5 + $0x1308] sm:$0xff]
    %v700 = vld [vmem:[#allocation5 + $0x1310] sm:$0xff]
    %v701 = vld [vmem:[#allocation5 + $0x1318] sm:$0xff]
    %v702 = vld [vmem:[#allocation5 + $0x1320] sm:$0xff]
    %v703 = vld [vmem:[#allocation5 + $0x1328] sm:$0xff]
    %v704 = vld [vmem:[#allocation5 + $0x1330] sm:$0xff]
    %v705 = vld [vmem:[#allocation5 + $0x1338] sm:$0xff]
    %v706 = vld [vmem:[#allocation5 + $0x1340] sm:$0xff]
    %v707 = vld [vmem:[#allocation5 + $0x1348] sm:$0xff]
    %v708 = vld [vmem:[#allocation5 + $0x1350] sm:$0xff]
    %v709 = vld [vmem:[#allocation5 + $0x1358] sm:$0xff]
    %v710 = vld [vmem:[#allocation5 + $0x1360] sm:$0xff]
    %v711 = vld [vmem:[#allocation5 + $0x1368] sm:$0xff]
    %v712 = vld [vmem:[#allocation5 + $0x1370] sm:$0xff]
    %v713 = vld [vmem:[#allocation5 + $0x1378] sm:$0xff]
    %v714 = vld [vmem:[#allocation5 + $0x1380] sm:$0xff]
    %v715 = vld [vmem:[#allocation5 + $0x1388] sm:$0xff]
    %v716 = vld [vmem:[#allocation5 + $0x1390] sm:$0xff]
    %v717 = vld [vmem:[#allocation5 + $0x1398] sm:$0xff]
    %v718 = vld [vmem:[#allocation5 + $0x13a0] sm:$0xff]
    %v719 = vld [vmem:[#allocation5 + $0x13a8] sm:$0xff]
    %v720 = vld [vmem:[#allocation5 + $0x13b0] sm:$0xff]
    %v721 = vld [vmem:[#allocation5 + $0x13b8] sm:$0xff]
    %v722 = vld [vmem:[#allocation5 + $0x13c0] sm:$0xff]
    %v723 = vld [vmem:[#allocation5 + $0x13c8] sm:$0xff]
    %v724 = vld [vmem:[#allocation5 + $0x13d0] sm:$0xff]
    %v725 = vld [vmem:[#allocation5 + $0x13d8] sm:$0xff]
    %v726 = vld [vmem:[#allocation5 + $0x13e0] sm:$0xff]
    %v727 = vld [vmem:[#allocation5 + $0x13e8] sm:$0xff]
    %v728 = vld [vmem:[#allocation5 + $0x13f0] sm:$0xff]
    %v729 = vld [vmem:[#allocation5 + $0x13f8] sm:$0xff]
    %v730 = vld [vmem:[#allocation5 + $0x1400] sm:$0xff]
    %v731 = vld [vmem:[#allocation5 + $0x1408] sm:$0xff]
    %v732 = vld [vmem:[#allocation5 + $0x1410] sm:$0xff]
    %v733 = vld [vmem:[#allocation5 + $0x1418] sm:$0xff]
    %v734 = vld [vmem:[#allocation5 + $0x1420] sm:$0xff]
    %v735 = vld [vmem:[#allocation5 + $0x1428] sm:$0xff]
    %v736 = vld [vmem:[#allocation5 + $0x1430] sm:$0xff]
    %v737 = vld [vmem:[#allocation5 + $0x1438] sm:$0xff]
    %v738 = vld [vmem:[#allocation5 + $0x1440] sm:$0xff]
    %v739 = vld [vmem:[#allocation5 + $0x1448] sm:$0xff]
    %v740 = vld [vmem:[#allocation5 + $0x1450] sm:$0xff]
    %v741 = vld [vmem:[#allocation5 + $0x1458] sm:$0xff]
    %v742 = vld [vmem:[#allocation5 + $0x1460] sm:$0xff]
    %v743 = vld [vmem:[#allocation5 + $0x1468] sm:$0xff]
    %v744 = vld [vmem:[#allocation5 + $0x1470] sm:$0xff]
    %v745 = vld [vmem:[#allocation5 + $0x1478] sm:$0xff]
    %v746 = vld [vmem:[#allocation5 + $0x1480] sm:$0xff]
    %v747 = vld [vmem:[#allocation5 + $0x1488] sm:$0xff]
    %v748 = vld [vmem:[#allocation5 + $0x1490] sm:$0xff]
    %v749 = vld [vmem:[#allocation5 + $0x1498] sm:$0xff]
    %v750 = vld [vmem:[#allocation5 + $0x14a0] sm:$0xff]
    %v751 = vld [vmem:[#allocation5 + $0x14a8] sm:$0xff]
    %v752 = vld [vmem:[#allocation5 + $0x14b0] sm:$0xff]
    %v753 = vld [vmem:[#allocation5 + $0x14b8] sm:$0xff]
    %v754 = vld [vmem:[#allocation5 + $0x14c0] sm:$0xff]
    %v755 = vld [vmem:[#allocation5 + $0x14c8] sm:$0xff]
    %v756 = vld [vmem:[#allocation5 + $0x14d0] sm:$0xff]
    %v757 = vld [vmem:[#allocation5 + $0x14d8] sm:$0xff]
    %v758 = vld [vmem:[#allocation5 + $0x14e0] sm:$0xff]
    %v759 = vld [vmem:[#allocation5 + $0x14e8] sm:$0xff]
    %v760 = vld [vmem:[#allocation5 + $0x14f0] sm:$0xff]
    %v761 = vld [vmem:[#allocation5 + $0x14f8] sm:$0xff]
    %v762 = vld [vmem:[#allocation5 + $0x1500] sm:$0xff]
    %v763 = vld [vmem:[#allocation5 + $0x1508] sm:$0xff]
    %v764 = vld [vmem:[#allocation5 + $0x1510] sm:$0xff]
    %v765 = vld [vmem:[#allocation5 + $0x1518] sm:$0xff]
    %v766 = vld [vmem:[#allocation5 + $0x1520] sm:$0xff]
    %v767 = vld [vmem:[#allocation5 + $0x1528] sm:$0xff]
    %v768 = vld [vmem:[#allocation5 + $0x1530] sm:$0xff]
    %v769 = vld [vmem:[#allocation5 + $0x1538] sm:$0xff]
    %v770 = vld [vmem:[#allocation5 + $0x1540] sm:$0xff]
    %v771 = vld [vmem:[#allocation5 + $0x1548] sm:$0xff]
    %v772 = vld [vmem:[#allocation5 + $0x1550] sm:$0xff]
    %v773 = vld [vmem:[#allocation5 + $0x1558] sm:$0xff]
    %v774 = vld [vmem:[#allocation5 + $0x1560] sm:$0xff]
    %v775 = vld [vmem:[#allocation5 + $0x1568] sm:$0xff]
    %v776 = vld [vmem:[#allocation5 + $0x1570] sm:$0xff]
    %v777 = vld [vmem:[#allocation5 + $0x1578] sm:$0xff]
    %v778 = vld [vmem:[#allocation5 + $0x1580] sm:$0xff]
    %v779 = vld [vmem:[#allocation5 + $0x1588] sm:$0xff]
    %v780 = vld [vmem:[#allocation5 + $0x1590] sm:$0xff]
    %v781 = vld [vmem:[#allocation5 + $0x1598] sm:$0xff]
    %v782 = vld [vmem:[#allocation5 + $0x15a0] sm:$0xff]
    %v783 = vld [vmem:[#allocation5 + $0x15a8] sm:$0xff]
    %v784 = vld [vmem:[#allocation5 + $0x15b0] sm:$0xff]
    %v785 = vld [vmem:[#allocation5 + $0x15b8] sm:$0xff]
    %v786 = vld [vmem:[#allocation5 + $0x15c0] sm:$0xff]
    %v787 = vld [vmem:[#allocation5 + $0x15c8] sm:$0xff]
    %v788 = vld [vmem:[#allocation5 + $0x15d0] sm:$0xff]
    %v789 = vld [vmem:[#allocation5 + $0x15d8] sm:$0xff]
    %v790 = vld [vmem:[#allocation5 + $0x15e0] sm:$0xff]
    %v791 = vld [vmem:[#allocation5 + $0x15e8] sm:$0xff]
    %v792 = vld [vmem:[#allocation5 + $0x15f0] sm:$0xff]
    %v793 = vld [vmem:[#allocation5 + $0x15f8] sm:$0xff]
    %v794 = vld [vmem:[#allocation5 + $0x1600] sm:$0xff]
    %v795 = vld [vmem:[#allocation5 + $0x1608] sm:$0xff]
    %v796 = vld [vmem:[#allocation5 + $0x1610] sm:$0xff]
    %v797 = vld [vmem:[#allocation5 + $0x1618] sm:$0xff]
    %v798 = vld [vmem:[#allocation5 + $0x1620] sm:$0xff]
    %v799 = vld [vmem:[#allocation5 + $0x1628] sm:$0xff]
    %v800 = vld [vmem:[#allocation5 + $0x1630] sm:$0xff]
    %v801 = vld [vmem:[#allocation5 + $0x1638] sm:$0xff]
    %v802 = vld [vmem:[#allocation5 + $0x1640] sm:$0xff]
    %v803 = vld [vmem:[#allocation5 + $0x1648] sm:$0xff]
    %v804 = vld [vmem:[#allocation5 + $0x1650] sm:$0xff]
    %v805 = vld [vmem:[#allocation5 + $0x1658] sm:$0xff]
    %v806 = vld [vmem:[#allocation5 + $0x1660] sm:$0xff]
    %v807 = vld [vmem:[#allocation5 + $0x1668] sm:$0xff]
    %v808 = vld [vmem:[#allocation5 + $0x1670] sm:$0xff]
    %v809 = vld [vmem:[#allocation5 + $0x1678] sm:$0xff]
    %v810 = vld [vmem:[#allocation5 + $0x1680] sm:$0xff]
    %v811 = vld [vmem:[#allocation5 + $0x1688] sm:$0xff]
    %v812 = vld [vmem:[#allocation5 + $0x1690] sm:$0xff]
    %v813 = vld [vmem:[#allocation5 + $0x1698] sm:$0xff]
    %v814 = vld [vmem:[#allocation5 + $0x16a0] sm:$0xff]
    %v815 = vld [vmem:[#allocation5 + $0x16a8] sm:$0xff]
    %v816 = vld [vmem:[#allocation5 + $0x16b0] sm:$0xff]
    %v817 = vld [vmem:[#allocation5 + $0x16b8] sm:$0xff]
    %v818 = vld [vmem:[#allocation5 + $0x16c0] sm:$0xff]
    %v819 = vld [vmem:[#allocation5 + $0x16c8] sm:$0xff]
    %v820 = vld [vmem:[#allocation5 + $0x16d0] sm:$0xff]
    %v821 = vld [vmem:[#allocation5 + $0x16d8] sm:$0xff]
    %v822 = vld [vmem:[#allocation5 + $0x16e0] sm:$0xff]
    %v823 = vld [vmem:[#allocation5 + $0x16e8] sm:$0xff]
    %v824 = vld [vmem:[#allocation5 + $0x16f0] sm:$0xff]
    %v825 = vld [vmem:[#allocation5 + $0x16f8] sm:$0xff]
    %v826 = vld [vmem:[#allocation5 + $0x1700] sm:$0xff]
    %v827 = vld [vmem:[#allocation5 + $0x1708] sm:$0xff]
    %v828 = vld [vmem:[#allocation5 + $0x1710] sm:$0xff]
    %v829 = vld [vmem:[#allocation5 + $0x1718] sm:$0xff]
    %v830 = vld [vmem:[#allocation5 + $0x1720] sm:$0xff]
    %v831 = vld [vmem:[#allocation5 + $0x1728] sm:$0xff]
    %v832 = vld [vmem:[#allocation5 + $0x1730] sm:$0xff]
    %v833 = vld [vmem:[#allocation5 + $0x1738] sm:$0xff]
    %v834 = vld [vmem:[#allocation5 + $0x1740] sm:$0xff]
    %v835 = vld [vmem:[#allocation5 + $0x1748] sm:$0xff]
    %v836 = vld [vmem:[#allocation5 + $0x1750] sm:$0xff]
    %v837 = vld [vmem:[#allocation5 + $0x1758] sm:$0xff]
    %v838 = vld [vmem:[#allocation5 + $0x1760] sm:$0xff]
    %v839 = vld [vmem:[#allocation5 + $0x1768] sm:$0xff]
    %v840 = vld [vmem:[#allocation5 + $0x1770] sm:$0xff]
    %v841 = vld [vmem:[#allocation5 + $0x1778] sm:$0xff]
    %v842 = vld [vmem:[#allocation5 + $0x1780] sm:$0xff]
    %v843 = vld [vmem:[#allocation5 + $0x1788] sm:$0xff]
    %v844 = vld [vmem:[#allocation5 + $0x1790] sm:$0xff]
    %v845 = vld [vmem:[#allocation5 + $0x1798] sm:$0xff]
    %v846 = vld [vmem:[#allocation5 + $0x17a0] sm:$0xff]
    %v847 = vld [vmem:[#allocation5 + $0x17a8] sm:$0xff]
    %v848 = vld [vmem:[#allocation5 + $0x17b0] sm:$0xff]
    %v849 = vld [vmem:[#allocation5 + $0x17b8] sm:$0xff]
    %v850 = vld [vmem:[#allocation5 + $0x17c0] sm:$0xff]
    %v851 = vld [vmem:[#allocation5 + $0x17c8] sm:$0xff]
    %v852 = vld [vmem:[#allocation5 + $0x17d0] sm:$0xff]
    %v853 = vld [vmem:[#allocation5 + $0x17d8] sm:$0xff]
    %v854 = vld [vmem:[#allocation5 + $0x17e0] sm:$0xff]
    %v855 = vld [vmem:[#allocation5 + $0x17e8] sm:$0xff]
    %v856 = vld [vmem:[#allocation5 + $0x17f0] sm:$0xff]
    %v857 = vld [vmem:[#allocation5 + $0x17f8] sm:$0xff]
    %v858 = vld [vmem:[#allocation7] sm:$0xff]
    %v859 = vld [vmem:[#allocation7 + $0x8] sm:$0xff]
    %v1628 = vunpack.c.l.b16 %v90
    %v1629 = vunpack.c.h.b16 %v90
    %v1630 = vunpack.c.l.b16 %v91
    %v1631 = vunpack.c.h.b16 %v91
    %v1632 = vunpack.c.l.b16 %v92
    %v1633 = vunpack.c.h.b16 %v92
    %v1634 = vunpack.c.l.b16 %v93
    %v1635 = vunpack.c.h.b16 %v93
    %v1636 = vunpack.c.l.b16 %v94
    %v1637 = vunpack.c.h.b16 %v94
    %v1638 = vunpack.c.l.b16 %v95
    %v1639 = vunpack.c.h.b16 %v95
    %v1640 = vunpack.c.l.b16 %v96
    %v1641 = vunpack.c.h.b16 %v96
    %v1642 = vunpack.c.l.b16 %v97
    %v1643 = vunpack.c.h.b16 %v97
    %v1644 = vunpack.c.l.b16 %v98
    %v1645 = vunpack.c.h.b16 %v98
    %v1646 = vunpack.c.l.b16 %v99
    %v1647 = vunpack.c.h.b16 %v99
    %v1648 = vunpack.c.l.b16 %v100
    %v1649 = vunpack.c.h.b16 %v100
    %v1650 = vunpack.c.l.b16 %v101
    %v1651 = vunpack.c.h.b16 %v101
    %v1652 = vunpack.c.l.b16 %v102
    %v1653 = vunpack.c.h.b16 %v102
    %v1654 = vunpack.c.l.b16 %v103
    %v1655 = vunpack.c.h.b16 %v103
    %v1656 = vunpack.c.l.b16 %v104
    %v1657 = vunpack.c.h.b16 %v104
    %v1658 = vunpack.c.l.b16 %v105
    %v1659 = vunpack.c.h.b16 %v105
    %v1660 = vunpack.c.l.b16 %v106
    %v1661 = vunpack.c.h.b16 %v106
    %v1662 = vunpack.c.l.b16 %v107
    %v1663 = vunpack.c.h.b16 %v107
    %v1664 = vunpack.c.l.b16 %v108
    %v1665 = vunpack.c.h.b16 %v108
    %v1666 = vunpack.c.l.b16 %v109
    %v1667 = vunpack.c.h.b16 %v109
    %v1668 = vunpack.c.l.b16 %v110
    %v1669 = vunpack.c.h.b16 %v110
    %v1670 = vunpack.c.l.b16 %v111
    %v1671 = vunpack.c.h.b16 %v111
    %v1672 = vunpack.c.l.b16 %v112
    %v1673 = vunpack.c.h.b16 %v112
    %v1674 = vunpack.c.l.b16 %v113
    %v1675 = vunpack.c.h.b16 %v113
    %v1676 = vunpack.c.l.b16 %v114
    %v1677 = vunpack.c.h.b16 %v114
    %v1678 = vunpack.c.l.b16 %v115
    %v1679 = vunpack.c.h.b16 %v115
    %v1680 = vunpack.c.l.b16 %v116
    %v1681 = vunpack.c.h.b16 %v116
    %v1682 = vunpack.c.l.b16 %v117
    %v1683 = vunpack.c.h.b16 %v117
    %v1684 = vunpack.c.l.b16 %v118
    %v1685 = vunpack.c.h.b16 %v118
    %v1686 = vunpack.c.l.b16 %v119
    %v1687 = vunpack.c.h.b16 %v119
    %v1688 = vunpack.c.l.b16 %v120
    %v1689 = vunpack.c.h.b16 %v120
    %v1690 = vunpack.c.l.b16 %v121
    %v1691 = vunpack.c.h.b16 %v121
    %v1692 = vunpack.c.l.b16 %v122
    %v1693 = vunpack.c.h.b16 %v122
    %v1694 = vunpack.c.l.b16 %v123
    %v1695 = vunpack.c.h.b16 %v123
    %v1696 = vunpack.c.l.b16 %v124
    %v1697 = vunpack.c.h.b16 %v124
    %v1698 = vunpack.c.l.b16 %v125
    %v1699 = vunpack.c.h.b16 %v125
    %v1700 = vunpack.c.l.b16 %v126
    %v1701 = vunpack.c.h.b16 %v126
    %v1702 = vunpack.c.l.b16 %v127
    %v1703 = vunpack.c.h.b16 %v127
    %v1704 = vunpack.c.l.b16 %v128
    %v1705 = vunpack.c.h.b16 %v128
    %v1706 = vunpack.c.l.b16 %v129
    %v1707 = vunpack.c.h.b16 %v129
    %v1708 = vunpack.c.l.b16 %v130
    %v1709 = vunpack.c.h.b16 %v130
    %v1710 = vunpack.c.l.b16 %v131
    %v1711 = vunpack.c.h.b16 %v131
    %v1712 = vunpack.c.l.b16 %v132
    %v1713 = vunpack.c.h.b16 %v132
    %v1714 = vunpack.c.l.b16 %v133
    %v1715 = vunpack.c.h.b16 %v133
    %v1716 = vunpack.c.l.b16 %v134
    %v1717 = vunpack.c.h.b16 %v134
    %v1718 = vunpack.c.l.b16 %v135
    %v1719 = vunpack.c.h.b16 %v135
    %v1720 = vunpack.c.l.b16 %v136
    %v1721 = vunpack.c.h.b16 %v136
    %v1722 = vunpack.c.l.b16 %v137
    %v1723 = vunpack.c.h.b16 %v137
    %v1724 = vunpack.c.l.b16 %v138
    %v1725 = vunpack.c.h.b16 %v138
    %v1726 = vunpack.c.l.b16 %v139
    %v1727 = vunpack.c.h.b16 %v139
    %v1728 = vunpack.c.l.b16 %v140
    %v1729 = vunpack.c.h.b16 %v140
    %v1730 = vunpack.c.l.b16 %v141
    %v1731 = vunpack.c.h.b16 %v141
    %v1732 = vunpack.c.l.b16 %v142
    %v1733 = vunpack.c.h.b16 %v142
    %v1734 = vunpack.c.l.b16 %v143
    %v1735 = vunpack.c.h.b16 %v143
    %v1736 = vunpack.c.l.b16 %v144
    %v1737 = vunpack.c.h.b16 %v144
    %v1738 = vunpack.c.l.b16 %v145
    %v1739 = vunpack.c.h.b16 %v145
    %v1740 = vunpack.c.l.b16 %v146
    %v1741 = vunpack.c.h.b16 %v146
    %v1742 = vunpack.c.l.b16 %v147
    %v1743 = vunpack.c.h.b16 %v147
    %v1744 = vunpack.c.l.b16 %v148
    %v1745 = vunpack.c.h.b16 %v148
    %v1746 = vunpack.c.l.b16 %v149
    %v1747 = vunpack.c.h.b16 %v149
    %v1748 = vunpack.c.l.b16 %v150
    %v1749 = vunpack.c.h.b16 %v150
    %v1750 = vunpack.c.l.b16 %v151
    %v1751 = vunpack.c.h.b16 %v151
    %v1752 = vunpack.c.l.b16 %v152
    %v1753 = vunpack.c.h.b16 %v152
    %v1754 = vunpack.c.l.b16 %v153
    %v1755 = vunpack.c.h.b16 %v153
    %v1756 = vunpack.c.l.b16 %v154
    %v1757 = vunpack.c.h.b16 %v154
    %v1758 = vunpack.c.l.b16 %v155
    %v1759 = vunpack.c.h.b16 %v155
    %v1760 = vunpack.c.l.b16 %v156
    %v1761 = vunpack.c.h.b16 %v156
    %v1762 = vunpack.c.l.b16 %v157
    %v1763 = vunpack.c.h.b16 %v157
    %v1764 = vunpack.c.l.b16 %v158
    %v1765 = vunpack.c.h.b16 %v158
    %v1766 = vunpack.c.l.b16 %v159
    %v1767 = vunpack.c.h.b16 %v159
    %v1768 = vunpack.c.l.b16 %v160
    %v1769 = vunpack.c.h.b16 %v160
    %v1770 = vunpack.c.l.b16 %v161
    %v1771 = vunpack.c.h.b16 %v161
    %v1772 = vunpack.c.l.b16 %v162
    %v1773 = vunpack.c.h.b16 %v162
    %v1774 = vunpack.c.l.b16 %v163
    %v1775 = vunpack.c.h.b16 %v163
    %v1776 = vunpack.c.l.b16 %v164
    %v1777 = vunpack.c.h.b16 %v164
    %v1778 = vunpack.c.l.b16 %v165
    %v1779 = vunpack.c.h.b16 %v165
    %v1780 = vunpack.c.l.b16 %v166
    %v1781 = vunpack.c.h.b16 %v166
    %v1782 = vunpack.c.l.b16 %v167
    %v1783 = vunpack.c.h.b16 %v167
    %v1784 = vunpack.c.l.b16 %v168
    %v1785 = vunpack.c.h.b16 %v168
    %v1786 = vunpack.c.l.b16 %v169
    %v1787 = vunpack.c.h.b16 %v169
    %v1788 = vunpack.c.l.b16 %v170
    %v1789 = vunpack.c.h.b16 %v170
    %v1790 = vunpack.c.l.b16 %v171
    %v1791 = vunpack.c.h.b16 %v171
    %v1792 = vunpack.c.l.b16 %v172
    %v1793 = vunpack.c.h.b16 %v172
    %v1794 = vunpack.c.l.b16 %v173
    %v1795 = vunpack.c.h.b16 %v173
    %v1796 = vunpack.c.l.b16 %v174
    %v1797 = vunpack.c.h.b16 %v174
    %v1798 = vunpack.c.l.b16 %v175
    %v1799 = vunpack.c.h.b16 %v175
    %v1800 = vunpack.c.l.b16 %v176
    %v1801 = vunpack.c.h.b16 %v176
    %v1802 = vunpack.c.l.b16 %v177
    %v1803 = vunpack.c.h.b16 %v177
    %v1804 = vunpack.c.l.b16 %v178
    %v1805 = vunpack.c.h.b16 %v178
    %v1806 = vunpack.c.l.b16 %v179
    %v1807 = vunpack.c.h.b16 %v179
    %v1808 = vunpack.c.l.b16 %v180
    %v1809 = vunpack.c.h.b16 %v180
    %v1810 = vunpack.c.l.b16 %v181
    %v1811 = vunpack.c.h.b16 %v181
    %v1812 = vunpack.c.l.b16 %v182
    %v1813 = vunpack.c.h.b16 %v182
    %v1814 = vunpack.c.l.b16 %v183
    %v1815 = vunpack.c.h.b16 %v183
    %v1816 = vunpack.c.l.b16 %v184
    %v1817 = vunpack.c.h.b16 %v184
    %v1818 = vunpack.c.l.b16 %v185
    %v1819 = vunpack.c.h.b16 %v185
    %v1820 = vunpack.c.l.b16 %v186
    %v1821 = vunpack.c.h.b16 %v186
    %v1822 = vunpack.c.l.b16 %v187
    %v1823 = vunpack.c.h.b16 %v187
    %v1824 = vunpack.c.l.b16 %v188
    %v1825 = vunpack.c.h.b16 %v188
    %v1826 = vunpack.c.l.b16 %v189
    %v1827 = vunpack.c.h.b16 %v189
    %v1828 = vunpack.c.l.b16 %v190
    %v1829 = vunpack.c.h.b16 %v190
    %v1830 = vunpack.c.l.b16 %v191
    %v1831 = vunpack.c.h.b16 %v191
    %v1832 = vunpack.c.l.b16 %v192
    %v1833 = vunpack.c.h.b16 %v192
    %v1834 = vunpack.c.l.b16 %v193
    %v1835 = vunpack.c.h.b16 %v193
    %v1836 = vunpack.c.l.b16 %v194
    %v1837 = vunpack.c.h.b16 %v194
    %v1838 = vunpack.c.l.b16 %v195
    %v1839 = vunpack.c.h.b16 %v195
    %v1840 = vunpack.c.l.b16 %v196
    %v1841 = vunpack.c.h.b16 %v196
    %v1842 = vunpack.c.l.b16 %v197
    %v1843 = vunpack.c.h.b16 %v197
    %v1844 = vunpack.c.l.b16 %v198
    %v1845 = vunpack.c.h.b16 %v198
    %v1846 = vunpack.c.l.b16 %v199
    %v1847 = vunpack.c.h.b16 %v199
    %v1848 = vunpack.c.l.b16 %v200
    %v1849 = vunpack.c.h.b16 %v200
    %v1850 = vunpack.c.l.b16 %v201
    %v1851 = vunpack.c.h.b16 %v201
    %v1852 = vunpack.c.l.b16 %v202
    %v1853 = vunpack.c.h.b16 %v202
    %v1854 = vunpack.c.l.b16 %v203
    %v1855 = vunpack.c.h.b16 %v203
    %v1856 = vunpack.c.l.b16 %v204
    %v1857 = vunpack.c.h.b16 %v204
    %v1858 = vunpack.c.l.b16 %v205
    %v1859 = vunpack.c.h.b16 %v205
    %v1860 = vunpack.c.l.b16 %v206
    %v1861 = vunpack.c.h.b16 %v206
    %v1862 = vunpack.c.l.b16 %v207
    %v1863 = vunpack.c.h.b16 %v207
    %v1864 = vunpack.c.l.b16 %v208
    %v1865 = vunpack.c.h.b16 %v208
    %v1866 = vunpack.c.l.b16 %v209
    %v1867 = vunpack.c.h.b16 %v209
    %v1868 = vunpack.c.l.b16 %v210
    %v1869 = vunpack.c.h.b16 %v210
    %v1870 = vunpack.c.l.b16 %v211
    %v1871 = vunpack.c.h.b16 %v211
    %v1872 = vunpack.c.l.b16 %v212
    %v1873 = vunpack.c.h.b16 %v212
    %v1874 = vunpack.c.l.b16 %v213
    %v1875 = vunpack.c.h.b16 %v213
    %v1876 = vunpack.c.l.b16 %v214
    %v1877 = vunpack.c.h.b16 %v214
    %v1878 = vunpack.c.l.b16 %v215
    %v1879 = vunpack.c.h.b16 %v215
    %v1880 = vunpack.c.l.b16 %v216
    %v1881 = vunpack.c.h.b16 %v216
    %v1882 = vunpack.c.l.b16 %v217
    %v1883 = vunpack.c.h.b16 %v217
    %v1884 = vunpack.c.l.b16 %v218
    %v1885 = vunpack.c.h.b16 %v218
    %v1886 = vunpack.c.l.b16 %v219
    %v1887 = vunpack.c.h.b16 %v219
    %v1888 = vunpack.c.l.b16 %v220
    %v1889 = vunpack.c.h.b16 %v220
    %v1890 = vunpack.c.l.b16 %v221
    %v1891 = vunpack.c.h.b16 %v221
    %v1892 = vunpack.c.l.b16 %v222
    %v1893 = vunpack.c.h.b16 %v222
    %v1894 = vunpack.c.l.b16 %v223
    %v1895 = vunpack.c.h.b16 %v223
    %v1896 = vunpack.c.l.b16 %v224
    %v1897 = vunpack.c.h.b16 %v224
    %v1898 = vunpack.c.l.b16 %v225
    %v1899 = vunpack.c.h.b16 %v225
    %v1900 = vunpack.c.l.b16 %v226
    %v1901 = vunpack.c.h.b16 %v226
    %v1902 = vunpack.c.l.b16 %v227
    %v1903 = vunpack.c.h.b16 %v227
    %v1904 = vunpack.c.l.b16 %v228
    %v1905 = vunpack.c.h.b16 %v228
    %v1906 = vunpack.c.l.b16 %v229
    %v1907 = vunpack.c.h.b16 %v229
    %v1908 = vunpack.c.l.b16 %v230
    %v1909 = vunpack.c.h.b16 %v230
    %v1910 = vunpack.c.l.b16 %v231
    %v1911 = vunpack.c.h.b16 %v231
    %v1912 = vunpack.c.l.b16 %v232
    %v1913 = vunpack.c.h.b16 %v232
    %v1914 = vunpack.c.l.b16 %v233
    %v1915 = vunpack.c.h.b16 %v233
    %v1916 = vunpack.c.l.b16 %v234
    %v1917 = vunpack.c.h.b16 %v234
    %v1918 = vunpack.c.l.b16 %v235
    %v1919 = vunpack.c.h.b16 %v235
    %v1920 = vunpack.c.l.b16 %v236
    %v1921 = vunpack.c.h.b16 %v236
    %v1922 = vunpack.c.l.b16 %v237
    %v1923 = vunpack.c.h.b16 %v237
    %v1924 = vunpack.c.l.b16 %v238
    %v1925 = vunpack.c.h.b16 %v238
    %v1926 = vunpack.c.l.b16 %v239
    %v1927 = vunpack.c.h.b16 %v239
    %v1928 = vunpack.c.l.b16 %v240
    %v1929 = vunpack.c.h.b16 %v240
    %v1930 = vunpack.c.l.b16 %v241
    %v1931 = vunpack.c.h.b16 %v241
    %v1932 = vunpack.c.l.b16 %v242
    %v1933 = vunpack.c.h.b16 %v242
    %v1934 = vunpack.c.l.b16 %v243
    %v1935 = vunpack.c.h.b16 %v243
    %v1936 = vunpack.c.l.b16 %v244
    %v1937 = vunpack.c.h.b16 %v244
    %v1938 = vunpack.c.l.b16 %v245
    %v1939 = vunpack.c.h.b16 %v245
    %v1940 = vunpack.c.l.b16 %v246
    %v1941 = vunpack.c.h.b16 %v246
    %v1942 = vunpack.c.l.b16 %v247
    %v1943 = vunpack.c.h.b16 %v247
    %v1944 = vunpack.c.l.b16 %v248
    %v1945 = vunpack.c.h.b16 %v248
    %v1946 = vunpack.c.l.b16 %v249
    %v1947 = vunpack.c.h.b16 %v249
    %v1948 = vunpack.c.l.b16 %v250
    %v1949 = vunpack.c.h.b16 %v250
    %v1950 = vunpack.c.l.b16 %v251
    %v1951 = vunpack.c.h.b16 %v251
    %v1952 = vunpack.c.l.b16 %v252
    %v1953 = vunpack.c.h.b16 %v252
    %v1954 = vunpack.c.l.b16 %v253
    %v1955 = vunpack.c.h.b16 %v253
    %v1956 = vunpack.c.l.b16 %v254
    %v1957 = vunpack.c.h.b16 %v254
    %v1958 = vunpack.c.l.b16 %v255
    %v1959 = vunpack.c.h.b16 %v255
    %v1960 = vunpack.c.l.b16 %v256
    %v1961 = vunpack.c.h.b16 %v256
    %v1962 = vunpack.c.l.b16 %v257
    %v1963 = vunpack.c.h.b16 %v257
    %v1964 = vunpack.c.l.b16 %v258
    %v1965 = vunpack.c.h.b16 %v258
    %v1966 = vunpack.c.l.b16 %v259
    %v1967 = vunpack.c.h.b16 %v259
    %v1968 = vunpack.c.l.b16 %v260
    %v1969 = vunpack.c.h.b16 %v260
    %v1970 = vunpack.c.l.b16 %v261
    %v1971 = vunpack.c.h.b16 %v261
    %v1972 = vunpack.c.l.b16 %v262
    %v1973 = vunpack.c.h.b16 %v262
    %v1974 = vunpack.c.l.b16 %v263
    %v1975 = vunpack.c.h.b16 %v263
    %v1976 = vunpack.c.l.b16 %v264
    %v1977 = vunpack.c.h.b16 %v264
    %v1978 = vunpack.c.l.b16 %v265
    %v1979 = vunpack.c.h.b16 %v265
    %v1980 = vunpack.c.l.b16 %v266
    %v1981 = vunpack.c.h.b16 %v266
    %v1982 = vunpack.c.l.b16 %v267
    %v1983 = vunpack.c.h.b16 %v267
    %v1984 = vunpack.c.l.b16 %v268
    %v1985 = vunpack.c.h.b16 %v268
    %v1986 = vunpack.c.l.b16 %v269
    %v1987 = vunpack.c.h.b16 %v269
    %v1988 = vunpack.c.l.b16 %v270
    %v1989 = vunpack.c.h.b16 %v270
    %v1990 = vunpack.c.l.b16 %v271
    %v1991 = vunpack.c.h.b16 %v271
    %v1992 = vunpack.c.l.b16 %v272
    %v1993 = vunpack.c.h.b16 %v272
    %v1994 = vunpack.c.l.b16 %v273
    %v1995 = vunpack.c.h.b16 %v273
    %v1996 = vunpack.c.l.b16 %v274
    %v1997 = vunpack.c.h.b16 %v274
    %v1998 = vunpack.c.l.b16 %v275
    %v1999 = vunpack.c.h.b16 %v275
    %v2000 = vunpack.c.l.b16 %v276
    %v2001 = vunpack.c.h.b16 %v276
    %v2002 = vunpack.c.l.b16 %v277
    %v2003 = vunpack.c.h.b16 %v277
    %v2004 = vunpack.c.l.b16 %v278
    %v2005 = vunpack.c.h.b16 %v278
    %v2006 = vunpack.c.l.b16 %v279
    %v2007 = vunpack.c.h.b16 %v279
    %v2008 = vunpack.c.l.b16 %v280
    %v2009 = vunpack.c.h.b16 %v280
    %v2010 = vunpack.c.l.b16 %v281
    %v2011 = vunpack.c.h.b16 %v281
    %v2012 = vunpack.c.l.b16 %v282
    %v2013 = vunpack.c.h.b16 %v282
    %v2014 = vunpack.c.l.b16 %v283
    %v2015 = vunpack.c.h.b16 %v283
    %v2016 = vunpack.c.l.b16 %v284
    %v2017 = vunpack.c.h.b16 %v284
    %v2018 = vunpack.c.l.b16 %v285
    %v2019 = vunpack.c.h.b16 %v285
    %v2020 = vunpack.c.l.b16 %v286
    %v2021 = vunpack.c.h.b16 %v286
    %v2022 = vunpack.c.l.b16 %v287
    %v2023 = vunpack.c.h.b16 %v287
    %v2024 = vunpack.c.l.b16 %v288
    %v2025 = vunpack.c.h.b16 %v288
    %v2026 = vunpack.c.l.b16 %v289
    %v2027 = vunpack.c.h.b16 %v289
    %v2028 = vunpack.c.l.b16 %v290
    %v2029 = vunpack.c.h.b16 %v290
    %v2030 = vunpack.c.l.b16 %v291
    %v2031 = vunpack.c.h.b16 %v291
    %v2032 = vunpack.c.l.b16 %v292
    %v2033 = vunpack.c.h.b16 %v292
    %v2034 = vunpack.c.l.b16 %v293
    %v2035 = vunpack.c.h.b16 %v293
    %v2036 = vunpack.c.l.b16 %v294
    %v2037 = vunpack.c.h.b16 %v294
    %v2038 = vunpack.c.l.b16 %v295
    %v2039 = vunpack.c.h.b16 %v295
    %v2040 = vunpack.c.l.b16 %v296
    %v2041 = vunpack.c.h.b16 %v296
    %v2042 = vunpack.c.l.b16 %v297
    %v2043 = vunpack.c.h.b16 %v297
    %v2044 = vunpack.c.l.b16 %v298
    %v2045 = vunpack.c.h.b16 %v298
    %v2046 = vunpack.c.l.b16 %v299
    %v2047 = vunpack.c.h.b16 %v299
    %v2048 = vunpack.c.l.b16 %v300
    %v2049 = vunpack.c.h.b16 %v300
    %v2050 = vunpack.c.l.b16 %v301
    %v2051 = vunpack.c.h.b16 %v301
    %v2052 = vunpack.c.l.b16 %v302
    %v2053 = vunpack.c.h.b16 %v302
    %v2054 = vunpack.c.l.b16 %v303
    %v2055 = vunpack.c.h.b16 %v303
    %v2056 = vunpack.c.l.b16 %v304
    %v2057 = vunpack.c.h.b16 %v304
    %v2058 = vunpack.c.l.b16 %v305
    %v2059 = vunpack.c.h.b16 %v305
    %v2060 = vunpack.c.l.b16 %v306
    %v2061 = vunpack.c.h.b16 %v306
    %v2062 = vunpack.c.l.b16 %v307
    %v2063 = vunpack.c.h.b16 %v307
    %v2064 = vunpack.c.l.b16 %v308
    %v2065 = vunpack.c.h.b16 %v308
    %v2066 = vunpack.c.l.b16 %v309
    %v2067 = vunpack.c.h.b16 %v309
    %v2068 = vunpack.c.l.b16 %v310
    %v2069 = vunpack.c.h.b16 %v310
    %v2070 = vunpack.c.l.b16 %v311
    %v2071 = vunpack.c.h.b16 %v311
    %v2072 = vunpack.c.l.b16 %v312
    %v2073 = vunpack.c.h.b16 %v312
    %v2074 = vunpack.c.l.b16 %v313
    %v2075 = vunpack.c.h.b16 %v313
    %v2076 = vunpack.c.l.b16 %v314
    %v2077 = vunpack.c.h.b16 %v314
    %v2078 = vunpack.c.l.b16 %v315
    %v2079 = vunpack.c.h.b16 %v315
    %v2080 = vunpack.c.l.b16 %v316
    %v2081 = vunpack.c.h.b16 %v316
    %v2082 = vunpack.c.l.b16 %v317
    %v2083 = vunpack.c.h.b16 %v317
    %v2084 = vunpack.c.l.b16 %v318
    %v2085 = vunpack.c.h.b16 %v318
    %v2086 = vunpack.c.l.b16 %v319
    %v2087 = vunpack.c.h.b16 %v319
    %v2088 = vunpack.c.l.b16 %v320
    %v2089 = vunpack.c.h.b16 %v320
    %v2090 = vunpack.c.l.b16 %v321
    %v2091 = vunpack.c.h.b16 %v321
    %v2092 = vunpack.c.l.b16 %v322
    %v2093 = vunpack.c.h.b16 %v322
    %v2094 = vunpack.c.l.b16 %v323
    %v2095 = vunpack.c.h.b16 %v323
    %v2096 = vunpack.c.l.b16 %v324
    %v2097 = vunpack.c.h.b16 %v324
    %v2098 = vunpack.c.l.b16 %v325
    %v2099 = vunpack.c.h.b16 %v325
    %v2100 = vunpack.c.l.b16 %v326
    %v2101 = vunpack.c.h.b16 %v326
    %v2102 = vunpack.c.l.b16 %v327
    %v2103 = vunpack.c.h.b16 %v327
    %v2104 = vunpack.c.l.b16 %v328
    %v2105 = vunpack.c.h.b16 %v328
    %v2106 = vunpack.c.l.b16 %v329
    %v2107 = vunpack.c.h.b16 %v329
    %v2108 = vunpack.c.l.b16 %v330
    %v2109 = vunpack.c.h.b16 %v330
    %v2110 = vunpack.c.l.b16 %v331
    %v2111 = vunpack.c.h.b16 %v331
    %v2112 = vunpack.c.l.b16 %v332
    %v2113 = vunpack.c.h.b16 %v332
    %v2114 = vunpack.c.l.b16 %v333
    %v2115 = vunpack.c.h.b16 %v333
    %v2116 = vunpack.c.l.b16 %v334
    %v2117 = vunpack.c.h.b16 %v334
    %v2118 = vunpack.c.l.b16 %v335
    %v2119 = vunpack.c.h.b16 %v335
    %v2120 = vunpack.c.l.b16 %v336
    %v2121 = vunpack.c.h.b16 %v336
    %v2122 = vunpack.c.l.b16 %v337
    %v2123 = vunpack.c.h.b16 %v337
    %v2124 = vunpack.c.l.b16 %v338
    %v2125 = vunpack.c.h.b16 %v338
    %v2126 = vunpack.c.l.b16 %v339
    %v2127 = vunpack.c.h.b16 %v339
    %v2128 = vunpack.c.l.b16 %v340
    %v2129 = vunpack.c.h.b16 %v340
    %v2130 = vunpack.c.l.b16 %v341
    %v2131 = vunpack.c.h.b16 %v341
    %v2132 = vunpack.c.l.b16 %v342
    %v2133 = vunpack.c.h.b16 %v342
    %v2134 = vunpack.c.l.b16 %v343
    %v2135 = vunpack.c.h.b16 %v343
    %v2136 = vunpack.c.l.b16 %v344
    %v2137 = vunpack.c.h.b16 %v344
    %v2138 = vunpack.c.l.b16 %v345
    %v2139 = vunpack.c.h.b16 %v345
    %v2140 = vunpack.c.l.b16 %v346
    %v2141 = vunpack.c.h.b16 %v346
    %v2142 = vunpack.c.l.b16 %v347
    %v2143 = vunpack.c.h.b16 %v347
    %v2144 = vunpack.c.l.b16 %v348
    %v2145 = vunpack.c.h.b16 %v348
    %v2146 = vunpack.c.l.b16 %v349
    %v2147 = vunpack.c.h.b16 %v349
    %v2148 = vunpack.c.l.b16 %v350
    %v2149 = vunpack.c.h.b16 %v350
    %v2150 = vunpack.c.l.b16 %v351
    %v2151 = vunpack.c.h.b16 %v351
    %v2152 = vunpack.c.l.b16 %v352
    %v2153 = vunpack.c.h.b16 %v352
    %v2154 = vunpack.c.l.b16 %v353
    %v2155 = vunpack.c.h.b16 %v353
    %v2156 = vunpack.c.l.b16 %v354
    %v2157 = vunpack.c.h.b16 %v354
    %v2158 = vunpack.c.l.b16 %v355
    %v2159 = vunpack.c.h.b16 %v355
    %v2160 = vunpack.c.l.b16 %v356
    %v2161 = vunpack.c.h.b16 %v356
    %v2162 = vunpack.c.l.b16 %v357
    %v2163 = vunpack.c.h.b16 %v357
    %v2164 = vunpack.c.l.b16 %v358
    %v2165 = vunpack.c.h.b16 %v358
    %v2166 = vunpack.c.l.b16 %v359
    %v2167 = vunpack.c.h.b16 %v359
    %v2168 = vunpack.c.l.b16 %v360
    %v2169 = vunpack.c.h.b16 %v360
    %v2170 = vunpack.c.l.b16 %v361
    %v2171 = vunpack.c.h.b16 %v361
    %v2172 = vunpack.c.l.b16 %v362
    %v2173 = vunpack.c.h.b16 %v362
    %v2174 = vunpack.c.l.b16 %v363
    %v2175 = vunpack.c.h.b16 %v363
    %v2176 = vunpack.c.l.b16 %v364
    %v2177 = vunpack.c.h.b16 %v364
    %v2178 = vunpack.c.l.b16 %v365
    %v2179 = vunpack.c.h.b16 %v365
    %v2180 = vunpack.c.l.b16 %v366
    %v2181 = vunpack.c.h.b16 %v366
    %v2182 = vunpack.c.l.b16 %v367
    %v2183 = vunpack.c.h.b16 %v367
    %v2184 = vunpack.c.l.b16 %v368
    %v2185 = vunpack.c.h.b16 %v368
    %v2186 = vunpack.c.l.b16 %v369
    %v2187 = vunpack.c.h.b16 %v369
    %v2188 = vunpack.c.l.b16 %v370
    %v2189 = vunpack.c.h.b16 %v370
    %v2190 = vunpack.c.l.b16 %v371
    %v2191 = vunpack.c.h.b16 %v371
    %v2192 = vunpack.c.l.b16 %v372
    %v2193 = vunpack.c.h.b16 %v372
    %v2194 = vunpack.c.l.b16 %v373
    %v2195 = vunpack.c.h.b16 %v373
    %v2196 = vunpack.c.l.b16 %v374
    %v2197 = vunpack.c.h.b16 %v374
    %v2198 = vunpack.c.l.b16 %v375
    %v2199 = vunpack.c.h.b16 %v375
    %v2200 = vunpack.c.l.b16 %v376
    %v2201 = vunpack.c.h.b16 %v376
    %v2202 = vunpack.c.l.b16 %v377
    %v2203 = vunpack.c.h.b16 %v377
    %v2204 = vunpack.c.l.b16 %v378
    %v2205 = vunpack.c.h.b16 %v378
    %v2206 = vunpack.c.l.b16 %v379
    %v2207 = vunpack.c.h.b16 %v379
    %v2208 = vunpack.c.l.b16 %v380
    %v2209 = vunpack.c.h.b16 %v380
    %v2210 = vunpack.c.l.b16 %v381
    %v2211 = vunpack.c.h.b16 %v381
    %v2212 = vunpack.c.l.b16 %v382
    %v2213 = vunpack.c.h.b16 %v382
    %v2214 = vunpack.c.l.b16 %v383
    %v2215 = vunpack.c.h.b16 %v383
    %v2216 = vunpack.c.l.b16 %v384
    %v2217 = vunpack.c.h.b16 %v384
    %v2218 = vunpack.c.l.b16 %v385
    %v2219 = vunpack.c.h.b16 %v385
    %v2220 = vunpack.c.l.b16 %v386
    %v2221 = vunpack.c.h.b16 %v386
    %v2222 = vunpack.c.l.b16 %v387
    %v2223 = vunpack.c.h.b16 %v387
    %v2224 = vunpack.c.l.b16 %v388
    %v2225 = vunpack.c.h.b16 %v388
    %v2226 = vunpack.c.l.b16 %v389
    %v2227 = vunpack.c.h.b16 %v389
    %v2228 = vunpack.c.l.b16 %v390
    %v2229 = vunpack.c.h.b16 %v390
    %v2230 = vunpack.c.l.b16 %v391
    %v2231 = vunpack.c.h.b16 %v391
    %v2232 = vunpack.c.l.b16 %v392
    %v2233 = vunpack.c.h.b16 %v392
    %v2234 = vunpack.c.l.b16 %v393
    %v2235 = vunpack.c.h.b16 %v393
    %v2236 = vunpack.c.l.b16 %v394
    %v2237 = vunpack.c.h.b16 %v394
    %v2238 = vunpack.c.l.b16 %v395
    %v2239 = vunpack.c.h.b16 %v395
    %v2240 = vunpack.c.l.b16 %v396
    %v2241 = vunpack.c.h.b16 %v396
    %v2242 = vunpack.c.l.b16 %v397
    %v2243 = vunpack.c.h.b16 %v397
    %v2244 = vunpack.c.l.b16 %v398
    %v2245 = vunpack.c.h.b16 %v398
    %v2246 = vunpack.c.l.b16 %v399
    %v2247 = vunpack.c.h.b16 %v399
    %v2248 = vunpack.c.l.b16 %v400
    %v2249 = vunpack.c.h.b16 %v400
    %v2250 = vunpack.c.l.b16 %v401
    %v2251 = vunpack.c.h.b16 %v401
    %v2252 = vunpack.c.l.b16 %v402
    %v2253 = vunpack.c.h.b16 %v402
    %v2254 = vunpack.c.l.b16 %v403
    %v2255 = vunpack.c.h.b16 %v403
    %v2256 = vunpack.c.l.b16 %v404
    %v2257 = vunpack.c.h.b16 %v404
    %v2258 = vunpack.c.l.b16 %v405
    %v2259 = vunpack.c.h.b16 %v405
    %v2260 = vunpack.c.l.b16 %v406
    %v2261 = vunpack.c.h.b16 %v406
    %v2262 = vunpack.c.l.b16 %v407
    %v2263 = vunpack.c.h.b16 %v407
    %v2264 = vunpack.c.l.b16 %v408
    %v2265 = vunpack.c.h.b16 %v408
    %v2266 = vunpack.c.l.b16 %v409
    %v2267 = vunpack.c.h.b16 %v409
    %v2268 = vunpack.c.l.b16 %v410
    %v2269 = vunpack.c.h.b16 %v410
    %v2270 = vunpack.c.l.b16 %v411
    %v2271 = vunpack.c.h.b16 %v411
    %v2272 = vunpack.c.l.b16 %v412
    %v2273 = vunpack.c.h.b16 %v412
    %v2274 = vunpack.c.l.b16 %v413
    %v2275 = vunpack.c.h.b16 %v413
    %v2276 = vunpack.c.l.b16 %v414
    %v2277 = vunpack.c.h.b16 %v414
    %v2278 = vunpack.c.l.b16 %v415
    %v2279 = vunpack.c.h.b16 %v415
    %v2280 = vunpack.c.l.b16 %v416
    %v2281 = vunpack.c.h.b16 %v416
    %v2282 = vunpack.c.l.b16 %v417
    %v2283 = vunpack.c.h.b16 %v417
    %v2284 = vunpack.c.l.b16 %v418
    %v2285 = vunpack.c.h.b16 %v418
    %v2286 = vunpack.c.l.b16 %v419
    %v2287 = vunpack.c.h.b16 %v419
    %v2288 = vunpack.c.l.b16 %v420
    %v2289 = vunpack.c.h.b16 %v420
    %v2290 = vunpack.c.l.b16 %v421
    %v2291 = vunpack.c.h.b16 %v421
    %v2292 = vunpack.c.l.b16 %v422
    %v2293 = vunpack.c.h.b16 %v422
    %v2294 = vunpack.c.l.b16 %v423
    %v2295 = vunpack.c.h.b16 %v423
    %v2296 = vunpack.c.l.b16 %v424
    %v2297 = vunpack.c.h.b16 %v424
    %v2298 = vunpack.c.l.b16 %v425
    %v2299 = vunpack.c.h.b16 %v425
    %v2300 = vunpack.c.l.b16 %v426
    %v2301 = vunpack.c.h.b16 %v426
    %v2302 = vunpack.c.l.b16 %v427
    %v2303 = vunpack.c.h.b16 %v427
    %v2304 = vunpack.c.l.b16 %v428
    %v2305 = vunpack.c.h.b16 %v428
    %v2306 = vunpack.c.l.b16 %v429
    %v2307 = vunpack.c.h.b16 %v429
    %v2308 = vunpack.c.l.b16 %v430
    %v2309 = vunpack.c.h.b16 %v430
    %v2310 = vunpack.c.l.b16 %v431
    %v2311 = vunpack.c.h.b16 %v431
    %v2312 = vunpack.c.l.b16 %v432
    %v2313 = vunpack.c.h.b16 %v432
    %v2314 = vunpack.c.l.b16 %v433
    %v2315 = vunpack.c.h.b16 %v433
    %v2316 = vunpack.c.l.b16 %v434
    %v2317 = vunpack.c.h.b16 %v434
    %v2318 = vunpack.c.l.b16 %v435
    %v2319 = vunpack.c.h.b16 %v435
    %v2320 = vunpack.c.l.b16 %v436
    %v2321 = vunpack.c.h.b16 %v436
    %v2322 = vunpack.c.l.b16 %v437
    %v2323 = vunpack.c.h.b16 %v437
    %v2324 = vunpack.c.l.b16 %v438
    %v2325 = vunpack.c.h.b16 %v438
    %v2326 = vunpack.c.l.b16 %v439
    %v2327 = vunpack.c.h.b16 %v439
    %v2328 = vunpack.c.l.b16 %v440
    %v2329 = vunpack.c.h.b16 %v440
    %v2330 = vunpack.c.l.b16 %v441
    %v2331 = vunpack.c.h.b16 %v441
    %v2332 = vunpack.c.l.b16 %v442
    %v2333 = vunpack.c.h.b16 %v442
    %v2334 = vunpack.c.l.b16 %v443
    %v2335 = vunpack.c.h.b16 %v443
    %v2336 = vunpack.c.l.b16 %v444
    %v2337 = vunpack.c.h.b16 %v444
    %v2338 = vunpack.c.l.b16 %v445
    %v2339 = vunpack.c.h.b16 %v445
    %v2340 = vunpack.c.l.b16 %v446
    %v2341 = vunpack.c.h.b16 %v446
    %v2342 = vunpack.c.l.b16 %v447
    %v2343 = vunpack.c.h.b16 %v447
    %v2344 = vunpack.c.l.b16 %v448
    %v2345 = vunpack.c.h.b16 %v448
    %v2346 = vunpack.c.l.b16 %v449
    %v2347 = vunpack.c.h.b16 %v449
    %v2348 = vunpack.c.l.b16 %v450
    %v2349 = vunpack.c.h.b16 %v450
    %v2350 = vunpack.c.l.b16 %v451
    %v2351 = vunpack.c.h.b16 %v451
    %v2352 = vunpack.c.l.b16 %v452
    %v2353 = vunpack.c.h.b16 %v452
    %v2354 = vunpack.c.l.b16 %v453
    %v2355 = vunpack.c.h.b16 %v453
    %v2356 = vunpack.c.l.b16 %v454
    %v2357 = vunpack.c.h.b16 %v454
    %v2358 = vunpack.c.l.b16 %v455
    %v2359 = vunpack.c.h.b16 %v455
    %v2360 = vunpack.c.l.b16 %v456
    %v2361 = vunpack.c.h.b16 %v456
    %v2362 = vunpack.c.l.b16 %v457
    %v2363 = vunpack.c.h.b16 %v457
    %v2364 = vunpack.c.l.b16 %v458
    %v2365 = vunpack.c.h.b16 %v458
    %v2366 = vunpack.c.l.b16 %v459
    %v2367 = vunpack.c.h.b16 %v459
    %v2368 = vunpack.c.l.b16 %v460
    %v2369 = vunpack.c.h.b16 %v460
    %v2370 = vunpack.c.l.b16 %v461
    %v2371 = vunpack.c.h.b16 %v461
    %v2372 = vunpack.c.l.b16 %v462
    %v2373 = vunpack.c.h.b16 %v462
    %v2374 = vunpack.c.l.b16 %v463
    %v2375 = vunpack.c.h.b16 %v463
    %v2376 = vunpack.c.l.b16 %v464
    %v2377 = vunpack.c.h.b16 %v464
    %v2378 = vunpack.c.l.b16 %v465
    %v2379 = vunpack.c.h.b16 %v465
    %v2380 = vunpack.c.l.b16 %v466
    %v2381 = vunpack.c.h.b16 %v466
    %v2382 = vunpack.c.l.b16 %v467
    %v2383 = vunpack.c.h.b16 %v467
    %v2384 = vunpack.c.l.b16 %v468
    %v2385 = vunpack.c.h.b16 %v468
    %v2386 = vunpack.c.l.b16 %v469
    %v2387 = vunpack.c.h.b16 %v469
    %v2388 = vunpack.c.l.b16 %v470
    %v2389 = vunpack.c.h.b16 %v470
    %v2390 = vunpack.c.l.b16 %v471
    %v2391 = vunpack.c.h.b16 %v471
    %v2392 = vunpack.c.l.b16 %v472
    %v2393 = vunpack.c.h.b16 %v472
    %v2394 = vunpack.c.l.b16 %v473
    %v2395 = vunpack.c.h.b16 %v473
    %v2396 = vunpack.c.l.b16 %v474
    %v2397 = vunpack.c.h.b16 %v474
    %v2398 = vunpack.c.l.b16 %v475
    %v2399 = vunpack.c.h.b16 %v475
    %v2400 = vunpack.c.l.b16 %v476
    %v2401 = vunpack.c.h.b16 %v476
    %v2402 = vunpack.c.l.b16 %v477
    %v2403 = vunpack.c.h.b16 %v477
    %v2404 = vunpack.c.l.b16 %v478
    %v2405 = vunpack.c.h.b16 %v478
    %v2406 = vunpack.c.l.b16 %v479
    %v2407 = vunpack.c.h.b16 %v479
    %v2408 = vunpack.c.l.b16 %v480
    %v2409 = vunpack.c.h.b16 %v480
    %v2410 = vunpack.c.l.b16 %v481
    %v2411 = vunpack.c.h.b16 %v481
    %v2412 = vunpack.c.l.b16 %v482
    %v2413 = vunpack.c.h.b16 %v482
    %v2414 = vunpack.c.l.b16 %v483
    %v2415 = vunpack.c.h.b16 %v483
    %v2416 = vunpack.c.l.b16 %v484
    %v2417 = vunpack.c.h.b16 %v484
    %v2418 = vunpack.c.l.b16 %v485
    %v2419 = vunpack.c.h.b16 %v485
    %v2420 = vunpack.c.l.b16 %v486
    %v2421 = vunpack.c.h.b16 %v486
    %v2422 = vunpack.c.l.b16 %v487
    %v2423 = vunpack.c.h.b16 %v487
    %v2424 = vunpack.c.l.b16 %v488
    %v2425 = vunpack.c.h.b16 %v488
    %v2426 = vunpack.c.l.b16 %v489
    %v2427 = vunpack.c.h.b16 %v489
    %v2428 = vunpack.c.l.b16 %v490
    %v2429 = vunpack.c.h.b16 %v490
    %v2430 = vunpack.c.l.b16 %v491
    %v2431 = vunpack.c.h.b16 %v491
    %v2432 = vunpack.c.l.b16 %v492
    %v2433 = vunpack.c.h.b16 %v492
    %v2434 = vunpack.c.l.b16 %v493
    %v2435 = vunpack.c.h.b16 %v493
    %v2436 = vunpack.c.l.b16 %v494
    %v2437 = vunpack.c.h.b16 %v494
    %v2438 = vunpack.c.l.b16 %v495
    %v2439 = vunpack.c.h.b16 %v495
    %v2440 = vunpack.c.l.b16 %v496
    %v2441 = vunpack.c.h.b16 %v496
    %v2442 = vunpack.c.l.b16 %v497
    %v2443 = vunpack.c.h.b16 %v497
    %v2444 = vunpack.c.l.b16 %v498
    %v2445 = vunpack.c.h.b16 %v498
    %v2446 = vunpack.c.l.b16 %v499
    %v2447 = vunpack.c.h.b16 %v499
    %v2448 = vunpack.c.l.b16 %v500
    %v2449 = vunpack.c.h.b16 %v500
    %v2450 = vunpack.c.l.b16 %v501
    %v2451 = vunpack.c.h.b16 %v501
    %v2452 = vunpack.c.l.b16 %v502
    %v2453 = vunpack.c.h.b16 %v502
    %v2454 = vunpack.c.l.b16 %v503
    %v2455 = vunpack.c.h.b16 %v503
    %v2456 = vunpack.c.l.b16 %v504
    %v2457 = vunpack.c.h.b16 %v504
    %v2458 = vunpack.c.l.b16 %v505
    %v2459 = vunpack.c.h.b16 %v505
    %v2460 = vunpack.c.l.b16 %v506
    %v2461 = vunpack.c.h.b16 %v506
    %v2462 = vunpack.c.l.b16 %v507
    %v2463 = vunpack.c.h.b16 %v507
    %v2464 = vunpack.c.l.b16 %v508
    %v2465 = vunpack.c.h.b16 %v508
    %v2466 = vunpack.c.l.b16 %v509
    %v2467 = vunpack.c.h.b16 %v509
    %v2468 = vunpack.c.l.b16 %v510
    %v2469 = vunpack.c.h.b16 %v510
    %v2470 = vunpack.c.l.b16 %v511
    %v2471 = vunpack.c.h.b16 %v511
    %v2472 = vunpack.c.l.b16 %v512
    %v2473 = vunpack.c.h.b16 %v512
    %v2474 = vunpack.c.l.b16 %v513
    %v2475 = vunpack.c.h.b16 %v513
    %v2476 = vunpack.c.l.b16 %v514
    %v2477 = vunpack.c.h.b16 %v514
    %v2478 = vunpack.c.l.b16 %v515
    %v2479 = vunpack.c.h.b16 %v515
    %v2480 = vunpack.c.l.b16 %v516
    %v2481 = vunpack.c.h.b16 %v516
    %v2482 = vunpack.c.l.b16 %v517
    %v2483 = vunpack.c.h.b16 %v517
    %v2484 = vunpack.c.l.b16 %v518
    %v2485 = vunpack.c.h.b16 %v518
    %v2486 = vunpack.c.l.b16 %v519
    %v2487 = vunpack.c.h.b16 %v519
    %v2488 = vunpack.c.l.b16 %v520
    %v2489 = vunpack.c.h.b16 %v520
    %v2490 = vunpack.c.l.b16 %v521
    %v2491 = vunpack.c.h.b16 %v521
    %v2492 = vunpack.c.l.b16 %v522
    %v2493 = vunpack.c.h.b16 %v522
    %v2494 = vunpack.c.l.b16 %v523
    %v2495 = vunpack.c.h.b16 %v523
    %v2496 = vunpack.c.l.b16 %v524
    %v2497 = vunpack.c.h.b16 %v524
    %v2498 = vunpack.c.l.b16 %v525
    %v2499 = vunpack.c.h.b16 %v525
    %v2500 = vunpack.c.l.b16 %v526
    %v2501 = vunpack.c.h.b16 %v526
    %v2502 = vunpack.c.l.b16 %v527
    %v2503 = vunpack.c.h.b16 %v527
    %v2504 = vunpack.c.l.b16 %v528
    %v2505 = vunpack.c.h.b16 %v528
    %v2506 = vunpack.c.l.b16 %v529
    %v2507 = vunpack.c.h.b16 %v529
    %v2508 = vunpack.c.l.b16 %v530
    %v2509 = vunpack.c.h.b16 %v530
    %v2510 = vunpack.c.l.b16 %v531
    %v2511 = vunpack.c.h.b16 %v531
    %v2512 = vunpack.c.l.b16 %v532
    %v2513 = vunpack.c.h.b16 %v532
    %v2514 = vunpack.c.l.b16 %v533
    %v2515 = vunpack.c.h.b16 %v533
    %v2516 = vunpack.c.l.b16 %v534
    %v2517 = vunpack.c.h.b16 %v534
    %v2518 = vunpack.c.l.b16 %v535
    %v2519 = vunpack.c.h.b16 %v535
    %v2520 = vunpack.c.l.b16 %v536
    %v2521 = vunpack.c.h.b16 %v536
    %v2522 = vunpack.c.l.b16 %v537
    %v2523 = vunpack.c.h.b16 %v537
    %v2524 = vunpack.c.l.b16 %v538
    %v2525 = vunpack.c.h.b16 %v538
    %v2526 = vunpack.c.l.b16 %v539
    %v2527 = vunpack.c.h.b16 %v539
    %v2528 = vunpack.c.l.b16 %v540
    %v2529 = vunpack.c.h.b16 %v540
    %v2530 = vunpack.c.l.b16 %v541
    %v2531 = vunpack.c.h.b16 %v541
    %v2532 = vunpack.c.l.b16 %v542
    %v2533 = vunpack.c.h.b16 %v542
    %v2534 = vunpack.c.l.b16 %v543
    %v2535 = vunpack.c.h.b16 %v543
    %v2536 = vunpack.c.l.b16 %v544
    %v2537 = vunpack.c.h.b16 %v544
    %v2538 = vunpack.c.l.b16 %v545
    %v2539 = vunpack.c.h.b16 %v545
    %v2540 = vunpack.c.l.b16 %v546
    %v2541 = vunpack.c.h.b16 %v546
    %v2542 = vunpack.c.l.b16 %v547
    %v2543 = vunpack.c.h.b16 %v547
    %v2544 = vunpack.c.l.b16 %v548
    %v2545 = vunpack.c.h.b16 %v548
    %v2546 = vunpack.c.l.b16 %v549
    %v2547 = vunpack.c.h.b16 %v549
    %v2548 = vunpack.c.l.b16 %v550
    %v2549 = vunpack.c.h.b16 %v550
    %v2550 = vunpack.c.l.b16 %v551
    %v2551 = vunpack.c.h.b16 %v551
    %v2552 = vunpack.c.l.b16 %v552
    %v2553 = vunpack.c.h.b16 %v552
    %v2554 = vunpack.c.l.b16 %v553
    %v2555 = vunpack.c.h.b16 %v553
    %v2556 = vunpack.c.l.b16 %v554
    %v2557 = vunpack.c.h.b16 %v554
    %v2558 = vunpack.c.l.b16 %v555
    %v2559 = vunpack.c.h.b16 %v555
    %v2560 = vunpack.c.l.b16 %v556
    %v2561 = vunpack.c.h.b16 %v556
    %v2562 = vunpack.c.l.b16 %v557
    %v2563 = vunpack.c.h.b16 %v557
    %v2564 = vunpack.c.l.b16 %v558
    %v2565 = vunpack.c.h.b16 %v558
    %v2566 = vunpack.c.l.b16 %v559
    %v2567 = vunpack.c.h.b16 %v559
    %v2568 = vunpack.c.l.b16 %v560
    %v2569 = vunpack.c.h.b16 %v560
    %v2570 = vunpack.c.l.b16 %v561
    %v2571 = vunpack.c.h.b16 %v561
    %v2572 = vunpack.c.l.b16 %v562
    %v2573 = vunpack.c.h.b16 %v562
    %v2574 = vunpack.c.l.b16 %v563
    %v2575 = vunpack.c.h.b16 %v563
    %v2576 = vunpack.c.l.b16 %v564
    %v2577 = vunpack.c.h.b16 %v564
    %v2578 = vunpack.c.l.b16 %v565
    %v2579 = vunpack.c.h.b16 %v565
    %v2580 = vunpack.c.l.b16 %v566
    %v2581 = vunpack.c.h.b16 %v566
    %v2582 = vunpack.c.l.b16 %v567
    %v2583 = vunpack.c.h.b16 %v567
    %v2584 = vunpack.c.l.b16 %v568
    %v2585 = vunpack.c.h.b16 %v568
    %v2586 = vunpack.c.l.b16 %v569
    %v2587 = vunpack.c.h.b16 %v569
    %v2588 = vunpack.c.l.b16 %v570
    %v2589 = vunpack.c.h.b16 %v570
    %v2590 = vunpack.c.l.b16 %v571
    %v2591 = vunpack.c.h.b16 %v571
    %v2592 = vunpack.c.l.b16 %v572
    %v2593 = vunpack.c.h.b16 %v572
    %v2594 = vunpack.c.l.b16 %v573
    %v2595 = vunpack.c.h.b16 %v573
    %v2596 = vunpack.c.l.b16 %v574
    %v2597 = vunpack.c.h.b16 %v574
    %v2598 = vunpack.c.l.b16 %v575
    %v2599 = vunpack.c.h.b16 %v575
    %v2600 = vunpack.c.l.b16 %v576
    %v2601 = vunpack.c.h.b16 %v576
    %v2602 = vunpack.c.l.b16 %v577
    %v2603 = vunpack.c.h.b16 %v577
    %v2604 = vunpack.c.l.b16 %v578
    %v2605 = vunpack.c.h.b16 %v578
    %v2606 = vunpack.c.l.b16 %v579
    %v2607 = vunpack.c.h.b16 %v579
    %v2608 = vunpack.c.l.b16 %v580
    %v2609 = vunpack.c.h.b16 %v580
    %v2610 = vunpack.c.l.b16 %v581
    %v2611 = vunpack.c.h.b16 %v581
    %v2612 = vunpack.c.l.b16 %v582
    %v2613 = vunpack.c.h.b16 %v582
    %v2614 = vunpack.c.l.b16 %v583
    %v2615 = vunpack.c.h.b16 %v583
    %v2616 = vunpack.c.l.b16 %v584
    %v2617 = vunpack.c.h.b16 %v584
    %v2618 = vunpack.c.l.b16 %v585
    %v2619 = vunpack.c.h.b16 %v585
    %v2620 = vunpack.c.l.b16 %v586
    %v2621 = vunpack.c.h.b16 %v586
    %v2622 = vunpack.c.l.b16 %v587
    %v2623 = vunpack.c.h.b16 %v587
    %v2624 = vunpack.c.l.b16 %v588
    %v2625 = vunpack.c.h.b16 %v588
    %v2626 = vunpack.c.l.b16 %v589
    %v2627 = vunpack.c.h.b16 %v589
    %v2628 = vunpack.c.l.b16 %v590
    %v2629 = vunpack.c.h.b16 %v590
    %v2630 = vunpack.c.l.b16 %v591
    %v2631 = vunpack.c.h.b16 %v591
    %v2632 = vunpack.c.l.b16 %v592
    %v2633 = vunpack.c.h.b16 %v592
    %v2634 = vunpack.c.l.b16 %v593
    %v2635 = vunpack.c.h.b16 %v593
    %v2636 = vunpack.c.l.b16 %v594
    %v2637 = vunpack.c.h.b16 %v594
    %v2638 = vunpack.c.l.b16 %v595
    %v2639 = vunpack.c.h.b16 %v595
    %v2640 = vunpack.c.l.b16 %v596
    %v2641 = vunpack.c.h.b16 %v596
    %v2642 = vunpack.c.l.b16 %v597
    %v2643 = vunpack.c.h.b16 %v597
    %v2644 = vunpack.c.l.b16 %v598
    %v2645 = vunpack.c.h.b16 %v598
    %v2646 = vunpack.c.l.b16 %v599
    %v2647 = vunpack.c.h.b16 %v599
    %v2648 = vunpack.c.l.b16 %v600
    %v2649 = vunpack.c.h.b16 %v600
    %v2650 = vunpack.c.l.b16 %v601
    %v2651 = vunpack.c.h.b16 %v601
    %v2652 = vunpack.c.l.b16 %v602
    %v2653 = vunpack.c.h.b16 %v602
    %v2654 = vunpack.c.l.b16 %v603
    %v2655 = vunpack.c.h.b16 %v603
    %v2656 = vunpack.c.l.b16 %v604
    %v2657 = vunpack.c.h.b16 %v604
    %v2658 = vunpack.c.l.b16 %v605
    %v2659 = vunpack.c.h.b16 %v605
    %v2660 = vunpack.c.l.b16 %v606
    %v2661 = vunpack.c.h.b16 %v606
    %v2662 = vunpack.c.l.b16 %v607
    %v2663 = vunpack.c.h.b16 %v607
    %v2664 = vunpack.c.l.b16 %v608
    %v2665 = vunpack.c.h.b16 %v608
    %v2666 = vunpack.c.l.b16 %v609
    %v2667 = vunpack.c.h.b16 %v609
    %v2668 = vunpack.c.l.b16 %v610
    %v2669 = vunpack.c.h.b16 %v610
    %v2670 = vunpack.c.l.b16 %v611
    %v2671 = vunpack.c.h.b16 %v611
    %v2672 = vunpack.c.l.b16 %v612
    %v2673 = vunpack.c.h.b16 %v612
    %v2674 = vunpack.c.l.b16 %v613
    %v2675 = vunpack.c.h.b16 %v613
    %v2676 = vunpack.c.l.b16 %v614
    %v2677 = vunpack.c.h.b16 %v614
    %v2678 = vunpack.c.l.b16 %v615
    %v2679 = vunpack.c.h.b16 %v615
    %v2680 = vunpack.c.l.b16 %v616
    %v2681 = vunpack.c.h.b16 %v616
    %v2682 = vunpack.c.l.b16 %v617
    %v2683 = vunpack.c.h.b16 %v617
    %v2684 = vunpack.c.l.b16 %v618
    %v2685 = vunpack.c.h.b16 %v618
    %v2686 = vunpack.c.l.b16 %v619
    %v2687 = vunpack.c.h.b16 %v619
    %v2688 = vunpack.c.l.b16 %v620
    %v2689 = vunpack.c.h.b16 %v620
    %v2690 = vunpack.c.l.b16 %v621
    %v2691 = vunpack.c.h.b16 %v621
    %v2692 = vunpack.c.l.b16 %v622
    %v2693 = vunpack.c.h.b16 %v622
    %v2694 = vunpack.c.l.b16 %v623
    %v2695 = vunpack.c.h.b16 %v623
    %v2696 = vunpack.c.l.b16 %v624
    %v2697 = vunpack.c.h.b16 %v624
    %v2698 = vunpack.c.l.b16 %v625
    %v2699 = vunpack.c.h.b16 %v625
    %v2700 = vunpack.c.l.b16 %v626
    %v2701 = vunpack.c.h.b16 %v626
    %v2702 = vunpack.c.l.b16 %v627
    %v2703 = vunpack.c.h.b16 %v627
    %v2704 = vunpack.c.l.b16 %v628
    %v2705 = vunpack.c.h.b16 %v628
    %v2706 = vunpack.c.l.b16 %v629
    %v2707 = vunpack.c.h.b16 %v629
    %v2708 = vunpack.c.l.b16 %v630
    %v2709 = vunpack.c.h.b16 %v630
    %v2710 = vunpack.c.l.b16 %v631
    %v2711 = vunpack.c.h.b16 %v631
    %v2712 = vunpack.c.l.b16 %v632
    %v2713 = vunpack.c.h.b16 %v632
    %v2714 = vunpack.c.l.b16 %v633
    %v2715 = vunpack.c.h.b16 %v633
    %v2716 = vunpack.c.l.b16 %v634
    %v2717 = vunpack.c.h.b16 %v634
    %v2718 = vunpack.c.l.b16 %v635
    %v2719 = vunpack.c.h.b16 %v635
    %v2720 = vunpack.c.l.b16 %v636
    %v2721 = vunpack.c.h.b16 %v636
    %v2722 = vunpack.c.l.b16 %v637
    %v2723 = vunpack.c.h.b16 %v637
    %v2724 = vunpack.c.l.b16 %v638
    %v2725 = vunpack.c.h.b16 %v638
    %v2726 = vunpack.c.l.b16 %v639
    %v2727 = vunpack.c.h.b16 %v639
    %v2728 = vunpack.c.l.b16 %v640
    %v2729 = vunpack.c.h.b16 %v640
    %v2730 = vunpack.c.l.b16 %v641
    %v2731 = vunpack.c.h.b16 %v641
    %v2732 = vunpack.c.l.b16 %v642
    %v2733 = vunpack.c.h.b16 %v642
    %v2734 = vunpack.c.l.b16 %v643
    %v2735 = vunpack.c.h.b16 %v643
    %v2736 = vunpack.c.l.b16 %v644
    %v2737 = vunpack.c.h.b16 %v644
    %v2738 = vunpack.c.l.b16 %v645
    %v2739 = vunpack.c.h.b16 %v645
    %v2740 = vunpack.c.l.b16 %v646
    %v2741 = vunpack.c.h.b16 %v646
    %v2742 = vunpack.c.l.b16 %v647
    %v2743 = vunpack.c.h.b16 %v647
    %v2744 = vunpack.c.l.b16 %v648
    %v2745 = vunpack.c.h.b16 %v648
    %v2746 = vunpack.c.l.b16 %v649
    %v2747 = vunpack.c.h.b16 %v649
    %v2748 = vunpack.c.l.b16 %v650
    %v2749 = vunpack.c.h.b16 %v650
    %v2750 = vunpack.c.l.b16 %v651
    %v2751 = vunpack.c.h.b16 %v651
    %v2752 = vunpack.c.l.b16 %v652
    %v2753 = vunpack.c.h.b16 %v652
    %v2754 = vunpack.c.l.b16 %v653
    %v2755 = vunpack.c.h.b16 %v653
    %v2756 = vunpack.c.l.b16 %v654
    %v2757 = vunpack.c.h.b16 %v654
    %v2758 = vunpack.c.l.b16 %v655
    %v2759 = vunpack.c.h.b16 %v655
    %v2760 = vunpack.c.l.b16 %v656
    %v2761 = vunpack.c.h.b16 %v656
    %v2762 = vunpack.c.l.b16 %v657
    %v2763 = vunpack.c.h.b16 %v657
    %v2764 = vunpack.c.l.b16 %v658
    %v2765 = vunpack.c.h.b16 %v658
    %v2766 = vunpack.c.l.b16 %v659
    %v2767 = vunpack.c.h.b16 %v659
    %v2768 = vunpack.c.l.b16 %v660
    %v2769 = vunpack.c.h.b16 %v660
    %v2770 = vunpack.c.l.b16 %v661
    %v2771 = vunpack.c.h.b16 %v661
    %v2772 = vunpack.c.l.b16 %v662
    %v2773 = vunpack.c.h.b16 %v662
    %v2774 = vunpack.c.l.b16 %v663
    %v2775 = vunpack.c.h.b16 %v663
    %v2776 = vunpack.c.l.b16 %v664
    %v2777 = vunpack.c.h.b16 %v664
    %v2778 = vunpack.c.l.b16 %v665
    %v2779 = vunpack.c.h.b16 %v665
    %v2780 = vunpack.c.l.b16 %v666
    %v2781 = vunpack.c.h.b16 %v666
    %v2782 = vunpack.c.l.b16 %v667
    %v2783 = vunpack.c.h.b16 %v667
    %v2784 = vunpack.c.l.b16 %v668
    %v2785 = vunpack.c.h.b16 %v668
    %v2786 = vunpack.c.l.b16 %v669
    %v2787 = vunpack.c.h.b16 %v669
    %v2788 = vunpack.c.l.b16 %v670
    %v2789 = vunpack.c.h.b16 %v670
    %v2790 = vunpack.c.l.b16 %v671
    %v2791 = vunpack.c.h.b16 %v671
    %v2792 = vunpack.c.l.b16 %v672
    %v2793 = vunpack.c.h.b16 %v672
    %v2794 = vunpack.c.l.b16 %v673
    %v2795 = vunpack.c.h.b16 %v673
    %v2796 = vunpack.c.l.b16 %v674
    %v2797 = vunpack.c.h.b16 %v674
    %v2798 = vunpack.c.l.b16 %v675
    %v2799 = vunpack.c.h.b16 %v675
    %v2800 = vunpack.c.l.b16 %v676
    %v2801 = vunpack.c.h.b16 %v676
    %v2802 = vunpack.c.l.b16 %v677
    %v2803 = vunpack.c.h.b16 %v677
    %v2804 = vunpack.c.l.b16 %v678
    %v2805 = vunpack.c.h.b16 %v678
    %v2806 = vunpack.c.l.b16 %v679
    %v2807 = vunpack.c.h.b16 %v679
    %v2808 = vunpack.c.l.b16 %v680
    %v2809 = vunpack.c.h.b16 %v680
    %v2810 = vunpack.c.l.b16 %v681
    %v2811 = vunpack.c.h.b16 %v681
    %v2812 = vunpack.c.l.b16 %v682
    %v2813 = vunpack.c.h.b16 %v682
    %v2814 = vunpack.c.l.b16 %v683
    %v2815 = vunpack.c.h.b16 %v683
    %v2816 = vunpack.c.l.b16 %v684
    %v2817 = vunpack.c.h.b16 %v684
    %v2818 = vunpack.c.l.b16 %v685
    %v2819 = vunpack.c.h.b16 %v685
    %v2820 = vunpack.c.l.b16 %v686
    %v2821 = vunpack.c.h.b16 %v686
    %v2822 = vunpack.c.l.b16 %v687
    %v2823 = vunpack.c.h.b16 %v687
    %v2824 = vunpack.c.l.b16 %v688
    %v2825 = vunpack.c.h.b16 %v688
    %v2826 = vunpack.c.l.b16 %v689
    %v2827 = vunpack.c.h.b16 %v689
    %v2828 = vunpack.c.l.b16 %v690
    %v2829 = vunpack.c.h.b16 %v690
    %v2830 = vunpack.c.l.b16 %v691
    %v2831 = vunpack.c.h.b16 %v691
    %v2832 = vunpack.c.l.b16 %v692
    %v2833 = vunpack.c.h.b16 %v692
    %v2834 = vunpack.c.l.b16 %v693
    %v2835 = vunpack.c.h.b16 %v693
    %v2836 = vunpack.c.l.b16 %v694
    %v2837 = vunpack.c.h.b16 %v694
    %v2838 = vunpack.c.l.b16 %v695
    %v2839 = vunpack.c.h.b16 %v695
    %v2840 = vunpack.c.l.b16 %v696
    %v2841 = vunpack.c.h.b16 %v696
    %v2842 = vunpack.c.l.b16 %v697
    %v2843 = vunpack.c.h.b16 %v697
    %v2844 = vunpack.c.l.b16 %v698
    %v2845 = vunpack.c.h.b16 %v698
    %v2846 = vunpack.c.l.b16 %v699
    %v2847 = vunpack.c.h.b16 %v699
    %v2848 = vunpack.c.l.b16 %v700
    %v2849 = vunpack.c.h.b16 %v700
    %v2850 = vunpack.c.l.b16 %v701
    %v2851 = vunpack.c.h.b16 %v701
    %v2852 = vunpack.c.l.b16 %v702
    %v2853 = vunpack.c.h.b16 %v702
    %v2854 = vunpack.c.l.b16 %v703
    %v2855 = vunpack.c.h.b16 %v703
    %v2856 = vunpack.c.l.b16 %v704
    %v2857 = vunpack.c.h.b16 %v704
    %v2858 = vunpack.c.l.b16 %v705
    %v2859 = vunpack.c.h.b16 %v705
    %v2860 = vunpack.c.l.b16 %v706
    %v2861 = vunpack.c.h.b16 %v706
    %v2862 = vunpack.c.l.b16 %v707
    %v2863 = vunpack.c.h.b16 %v707
    %v2864 = vunpack.c.l.b16 %v708
    %v2865 = vunpack.c.h.b16 %v708
    %v2866 = vunpack.c.l.b16 %v709
    %v2867 = vunpack.c.h.b16 %v709
    %v2868 = vunpack.c.l.b16 %v710
    %v2869 = vunpack.c.h.b16 %v710
    %v2870 = vunpack.c.l.b16 %v711
    %v2871 = vunpack.c.h.b16 %v711
    %v2872 = vunpack.c.l.b16 %v712
    %v2873 = vunpack.c.h.b16 %v712
    %v2874 = vunpack.c.l.b16 %v713
    %v2875 = vunpack.c.h.b16 %v713
    %v2876 = vunpack.c.l.b16 %v714
    %v2877 = vunpack.c.h.b16 %v714
    %v2878 = vunpack.c.l.b16 %v715
    %v2879 = vunpack.c.h.b16 %v715
    %v2880 = vunpack.c.l.b16 %v716
    %v2881 = vunpack.c.h.b16 %v716
    %v2882 = vunpack.c.l.b16 %v717
    %v2883 = vunpack.c.h.b16 %v717
    %v2884 = vunpack.c.l.b16 %v718
    %v2885 = vunpack.c.h.b16 %v718
    %v2886 = vunpack.c.l.b16 %v719
    %v2887 = vunpack.c.h.b16 %v719
    %v2888 = vunpack.c.l.b16 %v720
    %v2889 = vunpack.c.h.b16 %v720
    %v2890 = vunpack.c.l.b16 %v721
    %v2891 = vunpack.c.h.b16 %v721
    %v2892 = vunpack.c.l.b16 %v722
    %v2893 = vunpack.c.h.b16 %v722
    %v2894 = vunpack.c.l.b16 %v723
    %v2895 = vunpack.c.h.b16 %v723
    %v2896 = vunpack.c.l.b16 %v724
    %v2897 = vunpack.c.h.b16 %v724
    %v2898 = vunpack.c.l.b16 %v725
    %v2899 = vunpack.c.h.b16 %v725
    %v2900 = vunpack.c.l.b16 %v726
    %v2901 = vunpack.c.h.b16 %v726
    %v2902 = vunpack.c.l.b16 %v727
    %v2903 = vunpack.c.h.b16 %v727
    %v2904 = vunpack.c.l.b16 %v728
    %v2905 = vunpack.c.h.b16 %v728
    %v2906 = vunpack.c.l.b16 %v729
    %v2907 = vunpack.c.h.b16 %v729
    %v2908 = vunpack.c.l.b16 %v730
    %v2909 = vunpack.c.h.b16 %v730
    %v2910 = vunpack.c.l.b16 %v731
    %v2911 = vunpack.c.h.b16 %v731
    %v2912 = vunpack.c.l.b16 %v732
    %v2913 = vunpack.c.h.b16 %v732
    %v2914 = vunpack.c.l.b16 %v733
    %v2915 = vunpack.c.h.b16 %v733
    %v2916 = vunpack.c.l.b16 %v734
    %v2917 = vunpack.c.h.b16 %v734
    %v2918 = vunpack.c.l.b16 %v735
    %v2919 = vunpack.c.h.b16 %v735
    %v2920 = vunpack.c.l.b16 %v736
    %v2921 = vunpack.c.h.b16 %v736
    %v2922 = vunpack.c.l.b16 %v737
    %v2923 = vunpack.c.h.b16 %v737
    %v2924 = vunpack.c.l.b16 %v738
    %v2925 = vunpack.c.h.b16 %v738
    %v2926 = vunpack.c.l.b16 %v739
    %v2927 = vunpack.c.h.b16 %v739
    %v2928 = vunpack.c.l.b16 %v740
    %v2929 = vunpack.c.h.b16 %v740
    %v2930 = vunpack.c.l.b16 %v741
    %v2931 = vunpack.c.h.b16 %v741
    %v2932 = vunpack.c.l.b16 %v742
    %v2933 = vunpack.c.h.b16 %v742
    %v2934 = vunpack.c.l.b16 %v743
    %v2935 = vunpack.c.h.b16 %v743
    %v2936 = vunpack.c.l.b16 %v744
    %v2937 = vunpack.c.h.b16 %v744
    %v2938 = vunpack.c.l.b16 %v745
    %v2939 = vunpack.c.h.b16 %v745
    %v2940 = vunpack.c.l.b16 %v746
    %v2941 = vunpack.c.h.b16 %v746
    %v2942 = vunpack.c.l.b16 %v747
    %v2943 = vunpack.c.h.b16 %v747
    %v2944 = vunpack.c.l.b16 %v748
    %v2945 = vunpack.c.h.b16 %v748
    %v2946 = vunpack.c.l.b16 %v749
    %v2947 = vunpack.c.h.b16 %v749
    %v2948 = vunpack.c.l.b16 %v750
    %v2949 = vunpack.c.h.b16 %v750
    %v2950 = vunpack.c.l.b16 %v751
    %v2951 = vunpack.c.h.b16 %v751
    %v2952 = vunpack.c.l.b16 %v752
    %v2953 = vunpack.c.h.b16 %v752
    %v2954 = vunpack.c.l.b16 %v753
    %v2955 = vunpack.c.h.b16 %v753
    %v2956 = vunpack.c.l.b16 %v754
    %v2957 = vunpack.c.h.b16 %v754
    %v2958 = vunpack.c.l.b16 %v755
    %v2959 = vunpack.c.h.b16 %v755
    %v2960 = vunpack.c.l.b16 %v756
    %v2961 = vunpack.c.h.b16 %v756
    %v2962 = vunpack.c.l.b16 %v757
    %v2963 = vunpack.c.h.b16 %v757
    %v2964 = vunpack.c.l.b16 %v758
    %v2965 = vunpack.c.h.b16 %v758
    %v2966 = vunpack.c.l.b16 %v759
    %v2967 = vunpack.c.h.b16 %v759
    %v2968 = vunpack.c.l.b16 %v760
    %v2969 = vunpack.c.h.b16 %v760
    %v2970 = vunpack.c.l.b16 %v761
    %v2971 = vunpack.c.h.b16 %v761
    %v2972 = vunpack.c.l.b16 %v762
    %v2973 = vunpack.c.h.b16 %v762
    %v2974 = vunpack.c.l.b16 %v763
    %v2975 = vunpack.c.h.b16 %v763
    %v2976 = vunpack.c.l.b16 %v764
    %v2977 = vunpack.c.h.b16 %v764
    %v2978 = vunpack.c.l.b16 %v765
    %v2979 = vunpack.c.h.b16 %v765
    %v2980 = vunpack.c.l.b16 %v766
    %v2981 = vunpack.c.h.b16 %v766
    %v2982 = vunpack.c.l.b16 %v767
    %v2983 = vunpack.c.h.b16 %v767
    %v2984 = vunpack.c.l.b16 %v768
    %v2985 = vunpack.c.h.b16 %v768
    %v2986 = vunpack.c.l.b16 %v769
    %v2987 = vunpack.c.h.b16 %v769
    %v2988 = vunpack.c.l.b16 %v770
    %v2989 = vunpack.c.h.b16 %v770
    %v2990 = vunpack.c.l.b16 %v771
    %v2991 = vunpack.c.h.b16 %v771
    %v2992 = vunpack.c.l.b16 %v772
    %v2993 = vunpack.c.h.b16 %v772
    %v2994 = vunpack.c.l.b16 %v773
    %v2995 = vunpack.c.h.b16 %v773
    %v2996 = vunpack.c.l.b16 %v774
    %v2997 = vunpack.c.h.b16 %v774
    %v2998 = vunpack.c.l.b16 %v775
    %v2999 = vunpack.c.h.b16 %v775
    %v3000 = vunpack.c.l.b16 %v776
    %v3001 = vunpack.c.h.b16 %v776
    %v3002 = vunpack.c.l.b16 %v777
    %v3003 = vunpack.c.h.b16 %v777
    %v3004 = vunpack.c.l.b16 %v778
    %v3005 = vunpack.c.h.b16 %v778
    %v3006 = vunpack.c.l.b16 %v779
    %v3007 = vunpack.c.h.b16 %v779
    %v3008 = vunpack.c.l.b16 %v780
    %v3009 = vunpack.c.h.b16 %v780
    %v3010 = vunpack.c.l.b16 %v781
    %v3011 = vunpack.c.h.b16 %v781
    %v3012 = vunpack.c.l.b16 %v782
    %v3013 = vunpack.c.h.b16 %v782
    %v3014 = vunpack.c.l.b16 %v783
    %v3015 = vunpack.c.h.b16 %v783
    %v3016 = vunpack.c.l.b16 %v784
    %v3017 = vunpack.c.h.b16 %v784
    %v3018 = vunpack.c.l.b16 %v785
    %v3019 = vunpack.c.h.b16 %v785
    %v3020 = vunpack.c.l.b16 %v786
    %v3021 = vunpack.c.h.b16 %v786
    %v3022 = vunpack.c.l.b16 %v787
    %v3023 = vunpack.c.h.b16 %v787
    %v3024 = vunpack.c.l.b16 %v788
    %v3025 = vunpack.c.h.b16 %v788
    %v3026 = vunpack.c.l.b16 %v789
    %v3027 = vunpack.c.h.b16 %v789
    %v3028 = vunpack.c.l.b16 %v790
    %v3029 = vunpack.c.h.b16 %v790
    %v3030 = vunpack.c.l.b16 %v791
    %v3031 = vunpack.c.h.b16 %v791
    %v3032 = vunpack.c.l.b16 %v792
    %v3033 = vunpack.c.h.b16 %v792
    %v3034 = vunpack.c.l.b16 %v793
    %v3035 = vunpack.c.h.b16 %v793
    %v3036 = vunpack.c.l.b16 %v794
    %v3037 = vunpack.c.h.b16 %v794
    %v3038 = vunpack.c.l.b16 %v795
    %v3039 = vunpack.c.h.b16 %v795
    %v3040 = vunpack.c.l.b16 %v796
    %v3041 = vunpack.c.h.b16 %v796
    %v3042 = vunpack.c.l.b16 %v797
    %v3043 = vunpack.c.h.b16 %v797
    %v3044 = vunpack.c.l.b16 %v798
    %v3045 = vunpack.c.h.b16 %v798
    %v3046 = vunpack.c.l.b16 %v799
    %v3047 = vunpack.c.h.b16 %v799
    %v3048 = vunpack.c.l.b16 %v800
    %v3049 = vunpack.c.h.b16 %v800
    %v3050 = vunpack.c.l.b16 %v801
    %v3051 = vunpack.c.h.b16 %v801
    %v3052 = vunpack.c.l.b16 %v802
    %v3053 = vunpack.c.h.b16 %v802
    %v3054 = vunpack.c.l.b16 %v803
    %v3055 = vunpack.c.h.b16 %v803
    %v3056 = vunpack.c.l.b16 %v804
    %v3057 = vunpack.c.h.b16 %v804
    %v3058 = vunpack.c.l.b16 %v805
    %v3059 = vunpack.c.h.b16 %v805
    %v3060 = vunpack.c.l.b16 %v806
    %v3061 = vunpack.c.h.b16 %v806
    %v3062 = vunpack.c.l.b16 %v807
    %v3063 = vunpack.c.h.b16 %v807
    %v3064 = vunpack.c.l.b16 %v808
    %v3065 = vunpack.c.h.b16 %v808
    %v3066 = vunpack.c.l.b16 %v809
    %v3067 = vunpack.c.h.b16 %v809
    %v3068 = vunpack.c.l.b16 %v810
    %v3069 = vunpack.c.h.b16 %v810
    %v3070 = vunpack.c.l.b16 %v811
    %v3071 = vunpack.c.h.b16 %v811
    %v3072 = vunpack.c.l.b16 %v812
    %v3073 = vunpack.c.h.b16 %v812
    %v3074 = vunpack.c.l.b16 %v813
    %v3075 = vunpack.c.h.b16 %v813
    %v3076 = vunpack.c.l.b16 %v814
    %v3077 = vunpack.c.h.b16 %v814
    %v3078 = vunpack.c.l.b16 %v815
    %v3079 = vunpack.c.h.b16 %v815
    %v3080 = vunpack.c.l.b16 %v816
    %v3081 = vunpack.c.h.b16 %v816
    %v3082 = vunpack.c.l.b16 %v817
    %v3083 = vunpack.c.h.b16 %v817
    %v3084 = vunpack.c.l.b16 %v818
    %v3085 = vunpack.c.h.b16 %v818
    %v3086 = vunpack.c.l.b16 %v819
    %v3087 = vunpack.c.h.b16 %v819
    %v3088 = vunpack.c.l.b16 %v820
    %v3089 = vunpack.c.h.b16 %v820
    %v3090 = vunpack.c.l.b16 %v821
    %v3091 = vunpack.c.h.b16 %v821
    %v3092 = vunpack.c.l.b16 %v822
    %v3093 = vunpack.c.h.b16 %v822
    %v3094 = vunpack.c.l.b16 %v823
    %v3095 = vunpack.c.h.b16 %v823
    %v3096 = vunpack.c.l.b16 %v824
    %v3097 = vunpack.c.h.b16 %v824
    %v3098 = vunpack.c.l.b16 %v825
    %v3099 = vunpack.c.h.b16 %v825
    %v3100 = vunpack.c.l.b16 %v826
    %v3101 = vunpack.c.h.b16 %v826
    %v3102 = vunpack.c.l.b16 %v827
    %v3103 = vunpack.c.h.b16 %v827
    %v3104 = vunpack.c.l.b16 %v828
    %v3105 = vunpack.c.h.b16 %v828
    %v3106 = vunpack.c.l.b16 %v829
    %v3107 = vunpack.c.h.b16 %v829
    %v3108 = vunpack.c.l.b16 %v830
    %v3109 = vunpack.c.h.b16 %v830
    %v3110 = vunpack.c.l.b16 %v831
    %v3111 = vunpack.c.h.b16 %v831
    %v3112 = vunpack.c.l.b16 %v832
    %v3113 = vunpack.c.h.b16 %v832
    %v3114 = vunpack.c.l.b16 %v833
    %v3115 = vunpack.c.h.b16 %v833
    %v3116 = vunpack.c.l.b16 %v834
    %v3117 = vunpack.c.h.b16 %v834
    %v3118 = vunpack.c.l.b16 %v835
    %v3119 = vunpack.c.h.b16 %v835
    %v3120 = vunpack.c.l.b16 %v836
    %v3121 = vunpack.c.h.b16 %v836
    %v3122 = vunpack.c.l.b16 %v837
    %v3123 = vunpack.c.h.b16 %v837
    %v3124 = vunpack.c.l.b16 %v838
    %v3125 = vunpack.c.h.b16 %v838
    %v3126 = vunpack.c.l.b16 %v839
    %v3127 = vunpack.c.h.b16 %v839
    %v3128 = vunpack.c.l.b16 %v840
    %v3129 = vunpack.c.h.b16 %v840
    %v3130 = vunpack.c.l.b16 %v841
    %v3131 = vunpack.c.h.b16 %v841
    %v3132 = vunpack.c.l.b16 %v842
    %v3133 = vunpack.c.h.b16 %v842
    %v3134 = vunpack.c.l.b16 %v843
    %v3135 = vunpack.c.h.b16 %v843
    %v3136 = vunpack.c.l.b16 %v844
    %v3137 = vunpack.c.h.b16 %v844
    %v3138 = vunpack.c.l.b16 %v845
    %v3139 = vunpack.c.h.b16 %v845
    %v3140 = vunpack.c.l.b16 %v846
    %v3141 = vunpack.c.h.b16 %v846
    %v3142 = vunpack.c.l.b16 %v847
    %v3143 = vunpack.c.h.b16 %v847
    %v3144 = vunpack.c.l.b16 %v848
    %v3145 = vunpack.c.h.b16 %v848
    %v3146 = vunpack.c.l.b16 %v849
    %v3147 = vunpack.c.h.b16 %v849
    %v3148 = vunpack.c.l.b16 %v850
    %v3149 = vunpack.c.h.b16 %v850
    %v3150 = vunpack.c.l.b16 %v851
    %v3151 = vunpack.c.h.b16 %v851
    %v3152 = vunpack.c.l.b16 %v852
    %v3153 = vunpack.c.h.b16 %v852
    %v3154 = vunpack.c.l.b16 %v853
    %v3155 = vunpack.c.h.b16 %v853
    %v3156 = vunpack.c.l.b16 %v854
    %v3157 = vunpack.c.h.b16 %v854
    %v3158 = vunpack.c.l.b16 %v855
    %v3159 = vunpack.c.h.b16 %v855
    %v3160 = vunpack.c.l.b16 %v856
    %v3161 = vunpack.c.h.b16 %v856
    %v3162 = vunpack.c.l.b16 %v857
    %v3163 = vunpack.c.h.b16 %v857
    %v3164 = vpack.c.b16 %v1644, %v1628
    %v3165 = vpack.c.b16 %v1645, %v1629
    %v3166 = vpack.c.b16 %v1646, %v1630
    %v3167 = vpack.c.b16 %v1647, %v1631
    %v3168 = vpack.c.b16 %v1648, %v1632
    %v3169 = vpack.c.b16 %v1649, %v1633
    %v3170 = vpack.c.b16 %v1650, %v1634
    %v3171 = vpack.c.b16 %v1651, %v1635
    %v3172 = vpack.c.b16 %v1652, %v1636
    %v3173 = vpack.c.b16 %v1653, %v1637
    %v3174 = vpack.c.b16 %v1654, %v1638
    %v3175 = vpack.c.b16 %v1655, %v1639
    %v3176 = vpack.c.b16 %v1656, %v1640
    %v3177 = vpack.c.b16 %v1657, %v1641
    %v3178 = vpack.c.b16 %v1658, %v1642
    %v3179 = vpack.c.b16 %v1659, %v1643
    %v3180 = vpack.c.b16 %v1676, %v1660
    %v3181 = vpack.c.b16 %v1677, %v1661
    %v3182 = vpack.c.b16 %v1678, %v1662
    %v3183 = vpack.c.b16 %v1679, %v1663
    %v3184 = vpack.c.b16 %v1680, %v1664
    %v3185 = vpack.c.b16 %v1681, %v1665
    %v3186 = vpack.c.b16 %v1682, %v1666
    %v3187 = vpack.c.b16 %v1683, %v1667
    %v3188 = vpack.c.b16 %v1684, %v1668
    %v3189 = vpack.c.b16 %v1685, %v1669
    %v3190 = vpack.c.b16 %v1686, %v1670
    %v3191 = vpack.c.b16 %v1687, %v1671
    %v3192 = vpack.c.b16 %v1688, %v1672
    %v3193 = vpack.c.b16 %v1689, %v1673
    %v3194 = vpack.c.b16 %v1690, %v1674
    %v3195 = vpack.c.b16 %v1691, %v1675
    %v3196 = vpack.c.b16 %v1708, %v1692
    %v3197 = vpack.c.b16 %v1709, %v1693
    %v3198 = vpack.c.b16 %v1710, %v1694
    %v3199 = vpack.c.b16 %v1711, %v1695
    %v3200 = vpack.c.b16 %v1712, %v1696
    %v3201 = vpack.c.b16 %v1713, %v1697
    %v3202 = vpack.c.b16 %v1714, %v1698
    %v3203 = vpack.c.b16 %v1715, %v1699
    %v3204 = vpack.c.b16 %v1716, %v1700
    %v3205 = vpack.c.b16 %v1717, %v1701
    %v3206 = vpack.c.b16 %v1718, %v1702
    %v3207 = vpack.c.b16 %v1719, %v1703
    %v3208 = vpack.c.b16 %v1720, %v1704
    %v3209 = vpack.c.b16 %v1721, %v1705
    %v3210 = vpack.c.b16 %v1722, %v1706
    %v3211 = vpack.c.b16 %v1723, %v1707
    %v3212 = vpack.c.b16 %v1740, %v1724
    %v3213 = vpack.c.b16 %v1741, %v1725
    %v3214 = vpack.c.b16 %v1742, %v1726
    %v3215 = vpack.c.b16 %v1743, %v1727
    %v3216 = vpack.c.b16 %v1744, %v1728
    %v3217 = vpack.c.b16 %v1745, %v1729
    %v3218 = vpack.c.b16 %v1746, %v1730
    %v3219 = vpack.c.b16 %v1747, %v1731
    %v3220 = vpack.c.b16 %v1748, %v1732
    %v3221 = vpack.c.b16 %v1749, %v1733
    %v3222 = vpack.c.b16 %v1750, %v1734
    %v3223 = vpack.c.b16 %v1751, %v1735
    %v3224 = vpack.c.b16 %v1752, %v1736
    %v3225 = vpack.c.b16 %v1753, %v1737
    %v3226 = vpack.c.b16 %v1754, %v1738
    %v3227 = vpack.c.b16 %v1755, %v1739
    %v3228 = vpack.c.b16 %v1772, %v1756
    %v3229 = vpack.c.b16 %v1773, %v1757
    %v3230 = vpack.c.b16 %v1774, %v1758
    %v3231 = vpack.c.b16 %v1775, %v1759
    %v3232 = vpack.c.b16 %v1776, %v1760
    %v3233 = vpack.c.b16 %v1777, %v1761
    %v3234 = vpack.c.b16 %v1778, %v1762
    %v3235 = vpack.c.b16 %v1779, %v1763
    %v3236 = vpack.c.b16 %v1780, %v1764
    %v3237 = vpack.c.b16 %v1781, %v1765
    %v3238 = vpack.c.b16 %v1782, %v1766
    %v3239 = vpack.c.b16 %v1783, %v1767
    %v3240 = vpack.c.b16 %v1784, %v1768
    %v3241 = vpack.c.b16 %v1785, %v1769
    %v3242 = vpack.c.b16 %v1786, %v1770
    %v3243 = vpack.c.b16 %v1787, %v1771
    %v3244 = vpack.c.b16 %v1804, %v1788
    %v3245 = vpack.c.b16 %v1805, %v1789
    %v3246 = vpack.c.b16 %v1806, %v1790
    %v3247 = vpack.c.b16 %v1807, %v1791
    %v3248 = vpack.c.b16 %v1808, %v1792
    %v3249 = vpack.c.b16 %v1809, %v1793
    %v3250 = vpack.c.b16 %v1810, %v1794
    %v3251 = vpack.c.b16 %v1811, %v1795
    %v3252 = vpack.c.b16 %v1812, %v1796
    %v3253 = vpack.c.b16 %v1813, %v1797
    %v3254 = vpack.c.b16 %v1814, %v1798
    %v3255 = vpack.c.b16 %v1815, %v1799
    %v3256 = vpack.c.b16 %v1816, %v1800
    %v3257 = vpack.c.b16 %v1817, %v1801
    %v3258 = vpack.c.b16 %v1818, %v1802
    %v3259 = vpack.c.b16 %v1819, %v1803
    %v3260 = vpack.c.b16 %v1836, %v1820
    %v3261 = vpack.c.b16 %v1837, %v1821
    %v3262 = vpack.c.b16 %v1838, %v1822
    %v3263 = vpack.c.b16 %v1839, %v1823
    %v3264 = vpack.c.b16 %v1840, %v1824
    %v3265 = vpack.c.b16 %v1841, %v1825
    %v3266 = vpack.c.b16 %v1842, %v1826
    %v3267 = vpack.c.b16 %v1843, %v1827
    %v3268 = vpack.c.b16 %v1844, %v1828
    %v3269 = vpack.c.b16 %v1845, %v1829
    %v3270 = vpack.c.b16 %v1846, %v1830
    %v3271 = vpack.c.b16 %v1847, %v1831
    %v3272 = vpack.c.b16 %v1848, %v1832
    %v3273 = vpack.c.b16 %v1849, %v1833
    %v3274 = vpack.c.b16 %v1850, %v1834
    %v3275 = vpack.c.b16 %v1851, %v1835
    %v3276 = vpack.c.b16 %v1868, %v1852
    %v3277 = vpack.c.b16 %v1869, %v1853
    %v3278 = vpack.c.b16 %v1870, %v1854
    %v3279 = vpack.c.b16 %v1871, %v1855
    %v3280 = vpack.c.b16 %v1872, %v1856
    %v3281 = vpack.c.b16 %v1873, %v1857
    %v3282 = vpack.c.b16 %v1874, %v1858
    %v3283 = vpack.c.b16 %v1875, %v1859
    %v3284 = vpack.c.b16 %v1876, %v1860
    %v3285 = vpack.c.b16 %v1877, %v1861
    %v3286 = vpack.c.b16 %v1878, %v1862
    %v3287 = vpack.c.b16 %v1879, %v1863
    %v3288 = vpack.c.b16 %v1880, %v1864
    %v3289 = vpack.c.b16 %v1881, %v1865
    %v3290 = vpack.c.b16 %v1882, %v1866
    %v3291 = vpack.c.b16 %v1883, %v1867
    %v3292 = vpack.c.b16 %v1900, %v1884
    %v3293 = vpack.c.b16 %v1901, %v1885
    %v3294 = vpack.c.b16 %v1902, %v1886
    %v3295 = vpack.c.b16 %v1903, %v1887
    %v3296 = vpack.c.b16 %v1904, %v1888
    %v3297 = vpack.c.b16 %v1905, %v1889
    %v3298 = vpack.c.b16 %v1906, %v1890
    %v3299 = vpack.c.b16 %v1907, %v1891
    %v3300 = vpack.c.b16 %v1908, %v1892
    %v3301 = vpack.c.b16 %v1909, %v1893
    %v3302 = vpack.c.b16 %v1910, %v1894
    %v3303 = vpack.c.b16 %v1911, %v1895
    %v3304 = vpack.c.b16 %v1912, %v1896
    %v3305 = vpack.c.b16 %v1913, %v1897
    %v3306 = vpack.c.b16 %v1914, %v1898
    %v3307 = vpack.c.b16 %v1915, %v1899
    %v3308 = vpack.c.b16 %v1932, %v1916
    %v3309 = vpack.c.b16 %v1933, %v1917
    %v3310 = vpack.c.b16 %v1934, %v1918
    %v3311 = vpack.c.b16 %v1935, %v1919
    %v3312 = vpack.c.b16 %v1936, %v1920
    %v3313 = vpack.c.b16 %v1937, %v1921
    %v3314 = vpack.c.b16 %v1938, %v1922
    %v3315 = vpack.c.b16 %v1939, %v1923
    %v3316 = vpack.c.b16 %v1940, %v1924
    %v3317 = vpack.c.b16 %v1941, %v1925
    %v3318 = vpack.c.b16 %v1942, %v1926
    %v3319 = vpack.c.b16 %v1943, %v1927
    %v3320 = vpack.c.b16 %v1944, %v1928
    %v3321 = vpack.c.b16 %v1945, %v1929
    %v3322 = vpack.c.b16 %v1946, %v1930
    %v3323 = vpack.c.b16 %v1947, %v1931
    %v3324 = vpack.c.b16 %v1964, %v1948
    %v3325 = vpack.c.b16 %v1965, %v1949
    %v3326 = vpack.c.b16 %v1966, %v1950
    %v3327 = vpack.c.b16 %v1967, %v1951
    %v3328 = vpack.c.b16 %v1968, %v1952
    %v3329 = vpack.c.b16 %v1969, %v1953
    %v3330 = vpack.c.b16 %v1970, %v1954
    %v3331 = vpack.c.b16 %v1971, %v1955
    %v3332 = vpack.c.b16 %v1972, %v1956
    %v3333 = vpack.c.b16 %v1973, %v1957
    %v3334 = vpack.c.b16 %v1974, %v1958
    %v3335 = vpack.c.b16 %v1975, %v1959
    %v3336 = vpack.c.b16 %v1976, %v1960
    %v3337 = vpack.c.b16 %v1977, %v1961
    %v3338 = vpack.c.b16 %v1978, %v1962
    %v3339 = vpack.c.b16 %v1979, %v1963
    %v3340 = vpack.c.b16 %v1996, %v1980
    %v3341 = vpack.c.b16 %v1997, %v1981
    %v3342 = vpack.c.b16 %v1998, %v1982
    %v3343 = vpack.c.b16 %v1999, %v1983
    %v3344 = vpack.c.b16 %v2000, %v1984
    %v3345 = vpack.c.b16 %v2001, %v1985
    %v3346 = vpack.c.b16 %v2002, %v1986
    %v3347 = vpack.c.b16 %v2003, %v1987
    %v3348 = vpack.c.b16 %v2004, %v1988
    %v3349 = vpack.c.b16 %v2005, %v1989
    %v3350 = vpack.c.b16 %v2006, %v1990
    %v3351 = vpack.c.b16 %v2007, %v1991
    %v3352 = vpack.c.b16 %v2008, %v1992
    %v3353 = vpack.c.b16 %v2009, %v1993
    %v3354 = vpack.c.b16 %v2010, %v1994
    %v3355 = vpack.c.b16 %v2011, %v1995
    %v3356 = vpack.c.b16 %v2028, %v2012
    %v3357 = vpack.c.b16 %v2029, %v2013
    %v3358 = vpack.c.b16 %v2030, %v2014
    %v3359 = vpack.c.b16 %v2031, %v2015
    %v3360 = vpack.c.b16 %v2032, %v2016
    %v3361 = vpack.c.b16 %v2033, %v2017
    %v3362 = vpack.c.b16 %v2034, %v2018
    %v3363 = vpack.c.b16 %v2035, %v2019
    %v3364 = vpack.c.b16 %v2036, %v2020
    %v3365 = vpack.c.b16 %v2037, %v2021
    %v3366 = vpack.c.b16 %v2038, %v2022
    %v3367 = vpack.c.b16 %v2039, %v2023
    %v3368 = vpack.c.b16 %v2040, %v2024
    %v3369 = vpack.c.b16 %v2041, %v2025
    %v3370 = vpack.c.b16 %v2042, %v2026
    %v3371 = vpack.c.b16 %v2043, %v2027
    %v3372 = vpack.c.b16 %v2060, %v2044
    %v3373 = vpack.c.b16 %v2061, %v2045
    %v3374 = vpack.c.b16 %v2062, %v2046
    %v3375 = vpack.c.b16 %v2063, %v2047
    %v3376 = vpack.c.b16 %v2064, %v2048
    %v3377 = vpack.c.b16 %v2065, %v2049
    %v3378 = vpack.c.b16 %v2066, %v2050
    %v3379 = vpack.c.b16 %v2067, %v2051
    %v3380 = vpack.c.b16 %v2068, %v2052
    %v3381 = vpack.c.b16 %v2069, %v2053
    %v3382 = vpack.c.b16 %v2070, %v2054
    %v3383 = vpack.c.b16 %v2071, %v2055
    %v3384 = vpack.c.b16 %v2072, %v2056
    %v3385 = vpack.c.b16 %v2073, %v2057
    %v3386 = vpack.c.b16 %v2074, %v2058
    %v3387 = vpack.c.b16 %v2075, %v2059
    %v3388 = vpack.c.b16 %v2092, %v2076
    %v3389 = vpack.c.b16 %v2093, %v2077
    %v3390 = vpack.c.b16 %v2094, %v2078
    %v3391 = vpack.c.b16 %v2095, %v2079
    %v3392 = vpack.c.b16 %v2096, %v2080
    %v3393 = vpack.c.b16 %v2097, %v2081
    %v3394 = vpack.c.b16 %v2098, %v2082
    %v3395 = vpack.c.b16 %v2099, %v2083
    %v3396 = vpack.c.b16 %v2100, %v2084
    %v3397 = vpack.c.b16 %v2101, %v2085
    %v3398 = vpack.c.b16 %v2102, %v2086
    %v3399 = vpack.c.b16 %v2103, %v2087
    %v3400 = vpack.c.b16 %v2104, %v2088
    %v3401 = vpack.c.b16 %v2105, %v2089
    %v3402 = vpack.c.b16 %v2106, %v2090
    %v3403 = vpack.c.b16 %v2107, %v2091
    %v3404 = vpack.c.b16 %v2124, %v2108
    %v3405 = vpack.c.b16 %v2125, %v2109
    %v3406 = vpack.c.b16 %v2126, %v2110
    %v3407 = vpack.c.b16 %v2127, %v2111
    %v3408 = vpack.c.b16 %v2128, %v2112
    %v3409 = vpack.c.b16 %v2129, %v2113
    %v3410 = vpack.c.b16 %v2130, %v2114
    %v3411 = vpack.c.b16 %v2131, %v2115
    %v3412 = vpack.c.b16 %v2132, %v2116
    %v3413 = vpack.c.b16 %v2133, %v2117
    %v3414 = vpack.c.b16 %v2134, %v2118
    %v3415 = vpack.c.b16 %v2135, %v2119
    %v3416 = vpack.c.b16 %v2136, %v2120
    %v3417 = vpack.c.b16 %v2137, %v2121
    %v3418 = vpack.c.b16 %v2138, %v2122
    %v3419 = vpack.c.b16 %v2139, %v2123
    %v3420 = vpack.c.b16 %v2156, %v2140
    %v3421 = vpack.c.b16 %v2157, %v2141
    %v3422 = vpack.c.b16 %v2158, %v2142
    %v3423 = vpack.c.b16 %v2159, %v2143
    %v3424 = vpack.c.b16 %v2160, %v2144
    %v3425 = vpack.c.b16 %v2161, %v2145
    %v3426 = vpack.c.b16 %v2162, %v2146
    %v3427 = vpack.c.b16 %v2163, %v2147
    %v3428 = vpack.c.b16 %v2164, %v2148
    %v3429 = vpack.c.b16 %v2165, %v2149
    %v3430 = vpack.c.b16 %v2166, %v2150
    %v3431 = vpack.c.b16 %v2167, %v2151
    %v3432 = vpack.c.b16 %v2168, %v2152
    %v3433 = vpack.c.b16 %v2169, %v2153
    %v3434 = vpack.c.b16 %v2170, %v2154
    %v3435 = vpack.c.b16 %v2171, %v2155
    %v3436 = vpack.c.b16 %v2188, %v2172
    %v3437 = vpack.c.b16 %v2189, %v2173
    %v3438 = vpack.c.b16 %v2190, %v2174
    %v3439 = vpack.c.b16 %v2191, %v2175
    %v3440 = vpack.c.b16 %v2192, %v2176
    %v3441 = vpack.c.b16 %v2193, %v2177
    %v3442 = vpack.c.b16 %v2194, %v2178
    %v3443 = vpack.c.b16 %v2195, %v2179
    %v3444 = vpack.c.b16 %v2196, %v2180
    %v3445 = vpack.c.b16 %v2197, %v2181
    %v3446 = vpack.c.b16 %v2198, %v2182
    %v3447 = vpack.c.b16 %v2199, %v2183
    %v3448 = vpack.c.b16 %v2200, %v2184
    %v3449 = vpack.c.b16 %v2201, %v2185
    %v3450 = vpack.c.b16 %v2202, %v2186
    %v3451 = vpack.c.b16 %v2203, %v2187
    %v3452 = vpack.c.b16 %v2220, %v2204
    %v3453 = vpack.c.b16 %v2221, %v2205
    %v3454 = vpack.c.b16 %v2222, %v2206
    %v3455 = vpack.c.b16 %v2223, %v2207
    %v3456 = vpack.c.b16 %v2224, %v2208
    %v3457 = vpack.c.b16 %v2225, %v2209
    %v3458 = vpack.c.b16 %v2226, %v2210
    %v3459 = vpack.c.b16 %v2227, %v2211
    %v3460 = vpack.c.b16 %v2228, %v2212
    %v3461 = vpack.c.b16 %v2229, %v2213
    %v3462 = vpack.c.b16 %v2230, %v2214
    %v3463 = vpack.c.b16 %v2231, %v2215
    %v3464 = vpack.c.b16 %v2232, %v2216
    %v3465 = vpack.c.b16 %v2233, %v2217
    %v3466 = vpack.c.b16 %v2234, %v2218
    %v3467 = vpack.c.b16 %v2235, %v2219
    %v3468 = vpack.c.b16 %v2252, %v2236
    %v3469 = vpack.c.b16 %v2253, %v2237
    %v3470 = vpack.c.b16 %v2254, %v2238
    %v3471 = vpack.c.b16 %v2255, %v2239
    %v3472 = vpack.c.b16 %v2256, %v2240
    %v3473 = vpack.c.b16 %v2257, %v2241
    %v3474 = vpack.c.b16 %v2258, %v2242
    %v3475 = vpack.c.b16 %v2259, %v2243
    %v3476 = vpack.c.b16 %v2260, %v2244
    %v3477 = vpack.c.b16 %v2261, %v2245
    %v3478 = vpack.c.b16 %v2262, %v2246
    %v3479 = vpack.c.b16 %v2263, %v2247
    %v3480 = vpack.c.b16 %v2264, %v2248
    %v3481 = vpack.c.b16 %v2265, %v2249
    %v3482 = vpack.c.b16 %v2266, %v2250
    %v3483 = vpack.c.b16 %v2267, %v2251
    %v3484 = vpack.c.b16 %v2284, %v2268
    %v3485 = vpack.c.b16 %v2285, %v2269
    %v3486 = vpack.c.b16 %v2286, %v2270
    %v3487 = vpack.c.b16 %v2287, %v2271
    %v3488 = vpack.c.b16 %v2288, %v2272
    %v3489 = vpack.c.b16 %v2289, %v2273
    %v3490 = vpack.c.b16 %v2290, %v2274
    %v3491 = vpack.c.b16 %v2291, %v2275
    %v3492 = vpack.c.b16 %v2292, %v2276
    %v3493 = vpack.c.b16 %v2293, %v2277
    %v3494 = vpack.c.b16 %v2294, %v2278
    %v3495 = vpack.c.b16 %v2295, %v2279
    %v3496 = vpack.c.b16 %v2296, %v2280
    %v3497 = vpack.c.b16 %v2297, %v2281
    %v3498 = vpack.c.b16 %v2298, %v2282
    %v3499 = vpack.c.b16 %v2299, %v2283
    %v3500 = vpack.c.b16 %v2316, %v2300
    %v3501 = vpack.c.b16 %v2317, %v2301
    %v3502 = vpack.c.b16 %v2318, %v2302
    %v3503 = vpack.c.b16 %v2319, %v2303
    %v3504 = vpack.c.b16 %v2320, %v2304
    %v3505 = vpack.c.b16 %v2321, %v2305
    %v3506 = vpack.c.b16 %v2322, %v2306
    %v3507 = vpack.c.b16 %v2323, %v2307
    %v3508 = vpack.c.b16 %v2324, %v2308
    %v3509 = vpack.c.b16 %v2325, %v2309
    %v3510 = vpack.c.b16 %v2326, %v2310
    %v3511 = vpack.c.b16 %v2327, %v2311
    %v3512 = vpack.c.b16 %v2328, %v2312
    %v3513 = vpack.c.b16 %v2329, %v2313
    %v3514 = vpack.c.b16 %v2330, %v2314
    %v3515 = vpack.c.b16 %v2331, %v2315
    %v3516 = vpack.c.b16 %v2348, %v2332
    %v3517 = vpack.c.b16 %v2349, %v2333
    %v3518 = vpack.c.b16 %v2350, %v2334
    %v3519 = vpack.c.b16 %v2351, %v2335
    %v3520 = vpack.c.b16 %v2352, %v2336
    %v3521 = vpack.c.b16 %v2353, %v2337
    %v3522 = vpack.c.b16 %v2354, %v2338
    %v3523 = vpack.c.b16 %v2355, %v2339
    %v3524 = vpack.c.b16 %v2356, %v2340
    %v3525 = vpack.c.b16 %v2357, %v2341
    %v3526 = vpack.c.b16 %v2358, %v2342
    %v3527 = vpack.c.b16 %v2359, %v2343
    %v3528 = vpack.c.b16 %v2360, %v2344
    %v3529 = vpack.c.b16 %v2361, %v2345
    %v3530 = vpack.c.b16 %v2362, %v2346
    %v3531 = vpack.c.b16 %v2363, %v2347
    %v3532 = vpack.c.b16 %v2380, %v2364
    %v3533 = vpack.c.b16 %v2381, %v2365
    %v3534 = vpack.c.b16 %v2382, %v2366
    %v3535 = vpack.c.b16 %v2383, %v2367
    %v3536 = vpack.c.b16 %v2384, %v2368
    %v3537 = vpack.c.b16 %v2385, %v2369
    %v3538 = vpack.c.b16 %v2386, %v2370
    %v3539 = vpack.c.b16 %v2387, %v2371
    %v3540 = vpack.c.b16 %v2388, %v2372
    %v3541 = vpack.c.b16 %v2389, %v2373
    %v3542 = vpack.c.b16 %v2390, %v2374
    %v3543 = vpack.c.b16 %v2391, %v2375
    %v3544 = vpack.c.b16 %v2392, %v2376
    %v3545 = vpack.c.b16 %v2393, %v2377
    %v3546 = vpack.c.b16 %v2394, %v2378
    %v3547 = vpack.c.b16 %v2395, %v2379
    %v3548 = vpack.c.b16 %v2412, %v2396
    %v3549 = vpack.c.b16 %v2413, %v2397
    %v3550 = vpack.c.b16 %v2414, %v2398
    %v3551 = vpack.c.b16 %v2415, %v2399
    %v3552 = vpack.c.b16 %v2416, %v2400
    %v3553 = vpack.c.b16 %v2417, %v2401
    %v3554 = vpack.c.b16 %v2418, %v2402
    %v3555 = vpack.c.b16 %v2419, %v2403
    %v3556 = vpack.c.b16 %v2420, %v2404
    %v3557 = vpack.c.b16 %v2421, %v2405
    %v3558 = vpack.c.b16 %v2422, %v2406
    %v3559 = vpack.c.b16 %v2423, %v2407
    %v3560 = vpack.c.b16 %v2424, %v2408
    %v3561 = vpack.c.b16 %v2425, %v2409
    %v3562 = vpack.c.b16 %v2426, %v2410
    %v3563 = vpack.c.b16 %v2427, %v2411
    %v3564 = vpack.c.b16 %v2444, %v2428
    %v3565 = vpack.c.b16 %v2445, %v2429
    %v3566 = vpack.c.b16 %v2446, %v2430
    %v3567 = vpack.c.b16 %v2447, %v2431
    %v3568 = vpack.c.b16 %v2448, %v2432
    %v3569 = vpack.c.b16 %v2449, %v2433
    %v3570 = vpack.c.b16 %v2450, %v2434
    %v3571 = vpack.c.b16 %v2451, %v2435
    %v3572 = vpack.c.b16 %v2452, %v2436
    %v3573 = vpack.c.b16 %v2453, %v2437
    %v3574 = vpack.c.b16 %v2454, %v2438
    %v3575 = vpack.c.b16 %v2455, %v2439
    %v3576 = vpack.c.b16 %v2456, %v2440
    %v3577 = vpack.c.b16 %v2457, %v2441
    %v3578 = vpack.c.b16 %v2458, %v2442
    %v3579 = vpack.c.b16 %v2459, %v2443
    %v3580 = vpack.c.b16 %v2476, %v2460
    %v3581 = vpack.c.b16 %v2477, %v2461
    %v3582 = vpack.c.b16 %v2478, %v2462
    %v3583 = vpack.c.b16 %v2479, %v2463
    %v3584 = vpack.c.b16 %v2480, %v2464
    %v3585 = vpack.c.b16 %v2481, %v2465
    %v3586 = vpack.c.b16 %v2482, %v2466
    %v3587 = vpack.c.b16 %v2483, %v2467
    %v3588 = vpack.c.b16 %v2484, %v2468
    %v3589 = vpack.c.b16 %v2485, %v2469
    %v3590 = vpack.c.b16 %v2486, %v2470
    %v3591 = vpack.c.b16 %v2487, %v2471
    %v3592 = vpack.c.b16 %v2488, %v2472
    %v3593 = vpack.c.b16 %v2489, %v2473
    %v3594 = vpack.c.b16 %v2490, %v2474
    %v3595 = vpack.c.b16 %v2491, %v2475
    %v3596 = vpack.c.b16 %v2508, %v2492
    %v3597 = vpack.c.b16 %v2509, %v2493
    %v3598 = vpack.c.b16 %v2510, %v2494
    %v3599 = vpack.c.b16 %v2511, %v2495
    %v3600 = vpack.c.b16 %v2512, %v2496
    %v3601 = vpack.c.b16 %v2513, %v2497
    %v3602 = vpack.c.b16 %v2514, %v2498
    %v3603 = vpack.c.b16 %v2515, %v2499
    %v3604 = vpack.c.b16 %v2516, %v2500
    %v3605 = vpack.c.b16 %v2517, %v2501
    %v3606 = vpack.c.b16 %v2518, %v2502
    %v3607 = vpack.c.b16 %v2519, %v2503
    %v3608 = vpack.c.b16 %v2520, %v2504
    %v3609 = vpack.c.b16 %v2521, %v2505
    %v3610 = vpack.c.b16 %v2522, %v2506
    %v3611 = vpack.c.b16 %v2523, %v2507
    %v3612 = vpack.c.b16 %v2540, %v2524
    %v3613 = vpack.c.b16 %v2541, %v2525
    %v3614 = vpack.c.b16 %v2542, %v2526
    %v3615 = vpack.c.b16 %v2543, %v2527
    %v3616 = vpack.c.b16 %v2544, %v2528
    %v3617 = vpack.c.b16 %v2545, %v2529
    %v3618 = vpack.c.b16 %v2546, %v2530
    %v3619 = vpack.c.b16 %v2547, %v2531
    %v3620 = vpack.c.b16 %v2548, %v2532
    %v3621 = vpack.c.b16 %v2549, %v2533
    %v3622 = vpack.c.b16 %v2550, %v2534
    %v3623 = vpack.c.b16 %v2551, %v2535
    %v3624 = vpack.c.b16 %v2552, %v2536
    %v3625 = vpack.c.b16 %v2553, %v2537
    %v3626 = vpack.c.b16 %v2554, %v2538
    %v3627 = vpack.c.b16 %v2555, %v2539
    %v3628 = vpack.c.b16 %v2572, %v2556
    %v3629 = vpack.c.b16 %v2573, %v2557
    %v3630 = vpack.c.b16 %v2574, %v2558
    %v3631 = vpack.c.b16 %v2575, %v2559
    %v3632 = vpack.c.b16 %v2576, %v2560
    %v3633 = vpack.c.b16 %v2577, %v2561
    %v3634 = vpack.c.b16 %v2578, %v2562
    %v3635 = vpack.c.b16 %v2579, %v2563
    %v3636 = vpack.c.b16 %v2580, %v2564
    %v3637 = vpack.c.b16 %v2581, %v2565
    %v3638 = vpack.c.b16 %v2582, %v2566
    %v3639 = vpack.c.b16 %v2583, %v2567
    %v3640 = vpack.c.b16 %v2584, %v2568
    %v3641 = vpack.c.b16 %v2585, %v2569
    %v3642 = vpack.c.b16 %v2586, %v2570
    %v3643 = vpack.c.b16 %v2587, %v2571
    %v3644 = vpack.c.b16 %v2604, %v2588
    %v3645 = vpack.c.b16 %v2605, %v2589
    %v3646 = vpack.c.b16 %v2606, %v2590
    %v3647 = vpack.c.b16 %v2607, %v2591
    %v3648 = vpack.c.b16 %v2608, %v2592
    %v3649 = vpack.c.b16 %v2609, %v2593
    %v3650 = vpack.c.b16 %v2610, %v2594
    %v3651 = vpack.c.b16 %v2611, %v2595
    %v3652 = vpack.c.b16 %v2612, %v2596
    %v3653 = vpack.c.b16 %v2613, %v2597
    %v3654 = vpack.c.b16 %v2614, %v2598
    %v3655 = vpack.c.b16 %v2615, %v2599
    %v3656 = vpack.c.b16 %v2616, %v2600
    %v3657 = vpack.c.b16 %v2617, %v2601
    %v3658 = vpack.c.b16 %v2618, %v2602
    %v3659 = vpack.c.b16 %v2619, %v2603
    %v3660 = vpack.c.b16 %v2636, %v2620
    %v3661 = vpack.c.b16 %v2637, %v2621
    %v3662 = vpack.c.b16 %v2638, %v2622
    %v3663 = vpack.c.b16 %v2639, %v2623
    %v3664 = vpack.c.b16 %v2640, %v2624
    %v3665 = vpack.c.b16 %v2641, %v2625
    %v3666 = vpack.c.b16 %v2642, %v2626
    %v3667 = vpack.c.b16 %v2643, %v2627
    %v3668 = vpack.c.b16 %v2644, %v2628
    %v3669 = vpack.c.b16 %v2645, %v2629
    %v3670 = vpack.c.b16 %v2646, %v2630
    %v3671 = vpack.c.b16 %v2647, %v2631
    %v3672 = vpack.c.b16 %v2648, %v2632
    %v3673 = vpack.c.b16 %v2649, %v2633
    %v3674 = vpack.c.b16 %v2650, %v2634
    %v3675 = vpack.c.b16 %v2651, %v2635
    %v3676 = vpack.c.b16 %v2668, %v2652
    %v3677 = vpack.c.b16 %v2669, %v2653
    %v3678 = vpack.c.b16 %v2670, %v2654
    %v3679 = vpack.c.b16 %v2671, %v2655
    %v3680 = vpack.c.b16 %v2672, %v2656
    %v3681 = vpack.c.b16 %v2673, %v2657
    %v3682 = vpack.c.b16 %v2674, %v2658
    %v3683 = vpack.c.b16 %v2675, %v2659
    %v3684 = vpack.c.b16 %v2676, %v2660
    %v3685 = vpack.c.b16 %v2677, %v2661
    %v3686 = vpack.c.b16 %v2678, %v2662
    %v3687 = vpack.c.b16 %v2679, %v2663
    %v3688 = vpack.c.b16 %v2680, %v2664
    %v3689 = vpack.c.b16 %v2681, %v2665
    %v3690 = vpack.c.b16 %v2682, %v2666
    %v3691 = vpack.c.b16 %v2683, %v2667
    %v3692 = vpack.c.b16 %v2700, %v2684
    %v3693 = vpack.c.b16 %v2701, %v2685
    %v3694 = vpack.c.b16 %v2702, %v2686
    %v3695 = vpack.c.b16 %v2703, %v2687
    %v3696 = vpack.c.b16 %v2704, %v2688
    %v3697 = vpack.c.b16 %v2705, %v2689
    %v3698 = vpack.c.b16 %v2706, %v2690
    %v3699 = vpack.c.b16 %v2707, %v2691
    %v3700 = vpack.c.b16 %v2708, %v2692
    %v3701 = vpack.c.b16 %v2709, %v2693
    %v3702 = vpack.c.b16 %v2710, %v2694
    %v3703 = vpack.c.b16 %v2711, %v2695
    %v3704 = vpack.c.b16 %v2712, %v2696
    %v3705 = vpack.c.b16 %v2713, %v2697
    %v3706 = vpack.c.b16 %v2714, %v2698
    %v3707 = vpack.c.b16 %v2715, %v2699
    %v3708 = vpack.c.b16 %v2732, %v2716
    %v3709 = vpack.c.b16 %v2733, %v2717
    %v3710 = vpack.c.b16 %v2734, %v2718
    %v3711 = vpack.c.b16 %v2735, %v2719
    %v3712 = vpack.c.b16 %v2736, %v2720
    %v3713 = vpack.c.b16 %v2737, %v2721
    %v3714 = vpack.c.b16 %v2738, %v2722
    %v3715 = vpack.c.b16 %v2739, %v2723
    %v3716 = vpack.c.b16 %v2740, %v2724
    %v3717 = vpack.c.b16 %v2741, %v2725
    %v3718 = vpack.c.b16 %v2742, %v2726
    %v3719 = vpack.c.b16 %v2743, %v2727
    %v3720 = vpack.c.b16 %v2744, %v2728
    %v3721 = vpack.c.b16 %v2745, %v2729
    %v3722 = vpack.c.b16 %v2746, %v2730
    %v3723 = vpack.c.b16 %v2747, %v2731
    %v3724 = vpack.c.b16 %v2764, %v2748
    %v3725 = vpack.c.b16 %v2765, %v2749
    %v3726 = vpack.c.b16 %v2766, %v2750
    %v3727 = vpack.c.b16 %v2767, %v2751
    %v3728 = vpack.c.b16 %v2768, %v2752
    %v3729 = vpack.c.b16 %v2769, %v2753
    %v3730 = vpack.c.b16 %v2770, %v2754
    %v3731 = vpack.c.b16 %v2771, %v2755
    %v3732 = vpack.c.b16 %v2772, %v2756
    %v3733 = vpack.c.b16 %v2773, %v2757
    %v3734 = vpack.c.b16 %v2774, %v2758
    %v3735 = vpack.c.b16 %v2775, %v2759
    %v3736 = vpack.c.b16 %v2776, %v2760
    %v3737 = vpack.c.b16 %v2777, %v2761
    %v3738 = vpack.c.b16 %v2778, %v2762
    %v3739 = vpack.c.b16 %v2779, %v2763
    %v3740 = vpack.c.b16 %v2796, %v2780
    %v3741 = vpack.c.b16 %v2797, %v2781
    %v3742 = vpack.c.b16 %v2798, %v2782
    %v3743 = vpack.c.b16 %v2799, %v2783
    %v3744 = vpack.c.b16 %v2800, %v2784
    %v3745 = vpack.c.b16 %v2801, %v2785
    %v3746 = vpack.c.b16 %v2802, %v2786
    %v3747 = vpack.c.b16 %v2803, %v2787
    %v3748 = vpack.c.b16 %v2804, %v2788
    %v3749 = vpack.c.b16 %v2805, %v2789
    %v3750 = vpack.c.b16 %v2806, %v2790
    %v3751 = vpack.c.b16 %v2807, %v2791
    %v3752 = vpack.c.b16 %v2808, %v2792
    %v3753 = vpack.c.b16 %v2809, %v2793
    %v3754 = vpack.c.b16 %v2810, %v2794
    %v3755 = vpack.c.b16 %v2811, %v2795
    %v3756 = vpack.c.b16 %v2828, %v2812
    %v3757 = vpack.c.b16 %v2829, %v2813
    %v3758 = vpack.c.b16 %v2830, %v2814
    %v3759 = vpack.c.b16 %v2831, %v2815
    %v3760 = vpack.c.b16 %v2832, %v2816
    %v3761 = vpack.c.b16 %v2833, %v2817
    %v3762 = vpack.c.b16 %v2834, %v2818
    %v3763 = vpack.c.b16 %v2835, %v2819
    %v3764 = vpack.c.b16 %v2836, %v2820
    %v3765 = vpack.c.b16 %v2837, %v2821
    %v3766 = vpack.c.b16 %v2838, %v2822
    %v3767 = vpack.c.b16 %v2839, %v2823
    %v3768 = vpack.c.b16 %v2840, %v2824
    %v3769 = vpack.c.b16 %v2841, %v2825
    %v3770 = vpack.c.b16 %v2842, %v2826
    %v3771 = vpack.c.b16 %v2843, %v2827
    %v3772 = vpack.c.b16 %v2860, %v2844
    %v3773 = vpack.c.b16 %v2861, %v2845
    %v3774 = vpack.c.b16 %v2862, %v2846
    %v3775 = vpack.c.b16 %v2863, %v2847
    %v3776 = vpack.c.b16 %v2864, %v2848
    %v3777 = vpack.c.b16 %v2865, %v2849
    %v3778 = vpack.c.b16 %v2866, %v2850
    %v3779 = vpack.c.b16 %v2867, %v2851
    %v3780 = vpack.c.b16 %v2868, %v2852
    %v3781 = vpack.c.b16 %v2869, %v2853
    %v3782 = vpack.c.b16 %v2870, %v2854
    %v3783 = vpack.c.b16 %v2871, %v2855
    %v3784 = vpack.c.b16 %v2872, %v2856
    %v3785 = vpack.c.b16 %v2873, %v2857
    %v3786 = vpack.c.b16 %v2874, %v2858
    %v3787 = vpack.c.b16 %v2875, %v2859
    %v3788 = vpack.c.b16 %v2892, %v2876
    %v3789 = vpack.c.b16 %v2893, %v2877
    %v3790 = vpack.c.b16 %v2894, %v2878
    %v3791 = vpack.c.b16 %v2895, %v2879
    %v3792 = vpack.c.b16 %v2896, %v2880
    %v3793 = vpack.c.b16 %v2897, %v2881
    %v3794 = vpack.c.b16 %v2898, %v2882
    %v3795 = vpack.c.b16 %v2899, %v2883
    %v3796 = vpack.c.b16 %v2900, %v2884
    %v3797 = vpack.c.b16 %v2901, %v2885
    %v3798 = vpack.c.b16 %v2902, %v2886
    %v3799 = vpack.c.b16 %v2903, %v2887
    %v3800 = vpack.c.b16 %v2904, %v2888
    %v3801 = vpack.c.b16 %v2905, %v2889
    %v3802 = vpack.c.b16 %v2906, %v2890
    %v3803 = vpack.c.b16 %v2907, %v2891
    %v3804 = vpack.c.b16 %v2924, %v2908
    %v3805 = vpack.c.b16 %v2925, %v2909
    %v3806 = vpack.c.b16 %v2926, %v2910
    %v3807 = vpack.c.b16 %v2927, %v2911
    %v3808 = vpack.c.b16 %v2928, %v2912
    %v3809 = vpack.c.b16 %v2929, %v2913
    %v3810 = vpack.c.b16 %v2930, %v2914
    %v3811 = vpack.c.b16 %v2931, %v2915
    %v3812 = vpack.c.b16 %v2932, %v2916
    %v3813 = vpack.c.b16 %v2933, %v2917
    %v3814 = vpack.c.b16 %v2934, %v2918
    %v3815 = vpack.c.b16 %v2935, %v2919
    %v3816 = vpack.c.b16 %v2936, %v2920
    %v3817 = vpack.c.b16 %v2937, %v2921
    %v3818 = vpack.c.b16 %v2938, %v2922
    %v3819 = vpack.c.b16 %v2939, %v2923
    %v3820 = vpack.c.b16 %v2956, %v2940
    %v3821 = vpack.c.b16 %v2957, %v2941
    %v3822 = vpack.c.b16 %v2958, %v2942
    %v3823 = vpack.c.b16 %v2959, %v2943
    %v3824 = vpack.c.b16 %v2960, %v2944
    %v3825 = vpack.c.b16 %v2961, %v2945
    %v3826 = vpack.c.b16 %v2962, %v2946
    %v3827 = vpack.c.b16 %v2963, %v2947
    %v3828 = vpack.c.b16 %v2964, %v2948
    %v3829 = vpack.c.b16 %v2965, %v2949
    %v3830 = vpack.c.b16 %v2966, %v2950
    %v3831 = vpack.c.b16 %v2967, %v2951
    %v3832 = vpack.c.b16 %v2968, %v2952
    %v3833 = vpack.c.b16 %v2969, %v2953
    %v3834 = vpack.c.b16 %v2970, %v2954
    %v3835 = vpack.c.b16 %v2971, %v2955
    %v3836 = vpack.c.b16 %v2988, %v2972
    %v3837 = vpack.c.b16 %v2989, %v2973
    %v3838 = vpack.c.b16 %v2990, %v2974
    %v3839 = vpack.c.b16 %v2991, %v2975
    %v3840 = vpack.c.b16 %v2992, %v2976
    %v3841 = vpack.c.b16 %v2993, %v2977
    %v3842 = vpack.c.b16 %v2994, %v2978
    %v3843 = vpack.c.b16 %v2995, %v2979
    %v3844 = vpack.c.b16 %v2996, %v2980
    %v3845 = vpack.c.b16 %v2997, %v2981
    %v3846 = vpack.c.b16 %v2998, %v2982
    %v3847 = vpack.c.b16 %v2999, %v2983
    %v3848 = vpack.c.b16 %v3000, %v2984
    %v3849 = vpack.c.b16 %v3001, %v2985
    %v3850 = vpack.c.b16 %v3002, %v2986
    %v3851 = vpack.c.b16 %v3003, %v2987
    %v3852 = vpack.c.b16 %v3020, %v3004
    %v3853 = vpack.c.b16 %v3021, %v3005
    %v3854 = vpack.c.b16 %v3022, %v3006
    %v3855 = vpack.c.b16 %v3023, %v3007
    %v3856 = vpack.c.b16 %v3024, %v3008
    %v3857 = vpack.c.b16 %v3025, %v3009
    %v3858 = vpack.c.b16 %v3026, %v3010
    %v3859 = vpack.c.b16 %v3027, %v3011
    %v3860 = vpack.c.b16 %v3028, %v3012
    %v3861 = vpack.c.b16 %v3029, %v3013
    %v3862 = vpack.c.b16 %v3030, %v3014
    %v3863 = vpack.c.b16 %v3031, %v3015
    %v3864 = vpack.c.b16 %v3032, %v3016
    %v3865 = vpack.c.b16 %v3033, %v3017
    %v3866 = vpack.c.b16 %v3034, %v3018
    %v3867 = vpack.c.b16 %v3035, %v3019
    %v3868 = vpack.c.b16 %v3052, %v3036
    %v3869 = vpack.c.b16 %v3053, %v3037
    %v3870 = vpack.c.b16 %v3054, %v3038
    %v3871 = vpack.c.b16 %v3055, %v3039
    %v3872 = vpack.c.b16 %v3056, %v3040
    %v3873 = vpack.c.b16 %v3057, %v3041
    %v3874 = vpack.c.b16 %v3058, %v3042
    %v3875 = vpack.c.b16 %v3059, %v3043
    %v3876 = vpack.c.b16 %v3060, %v3044
    %v3877 = vpack.c.b16 %v3061, %v3045
    %v3878 = vpack.c.b16 %v3062, %v3046
    %v3879 = vpack.c.b16 %v3063, %v3047
    %v3880 = vpack.c.b16 %v3064, %v3048
    %v3881 = vpack.c.b16 %v3065, %v3049
    %v3882 = vpack.c.b16 %v3066, %v3050
    %v3883 = vpack.c.b16 %v3067, %v3051
    %v3884 = vpack.c.b16 %v3084, %v3068
    %v3885 = vpack.c.b16 %v3085, %v3069
    %v3886 = vpack.c.b16 %v3086, %v3070
    %v3887 = vpack.c.b16 %v3087, %v3071
    %v3888 = vpack.c.b16 %v3088, %v3072
    %v3889 = vpack.c.b16 %v3089, %v3073
    %v3890 = vpack.c.b16 %v3090, %v3074
    %v3891 = vpack.c.b16 %v3091, %v3075
    %v3892 = vpack.c.b16 %v3092, %v3076
    %v3893 = vpack.c.b16 %v3093, %v3077
    %v3894 = vpack.c.b16 %v3094, %v3078
    %v3895 = vpack.c.b16 %v3095, %v3079
    %v3896 = vpack.c.b16 %v3096, %v3080
    %v3897 = vpack.c.b16 %v3097, %v3081
    %v3898 = vpack.c.b16 %v3098, %v3082
    %v3899 = vpack.c.b16 %v3099, %v3083
    %v3900 = vpack.c.b16 %v3116, %v3100
    %v3901 = vpack.c.b16 %v3117, %v3101
    %v3902 = vpack.c.b16 %v3118, %v3102
    %v3903 = vpack.c.b16 %v3119, %v3103
    %v3904 = vpack.c.b16 %v3120, %v3104
    %v3905 = vpack.c.b16 %v3121, %v3105
    %v3906 = vpack.c.b16 %v3122, %v3106
    %v3907 = vpack.c.b16 %v3123, %v3107
    %v3908 = vpack.c.b16 %v3124, %v3108
    %v3909 = vpack.c.b16 %v3125, %v3109
    %v3910 = vpack.c.b16 %v3126, %v3110
    %v3911 = vpack.c.b16 %v3127, %v3111
    %v3912 = vpack.c.b16 %v3128, %v3112
    %v3913 = vpack.c.b16 %v3129, %v3113
    %v3914 = vpack.c.b16 %v3130, %v3114
    %v3915 = vpack.c.b16 %v3131, %v3115
    %v3916 = vpack.c.b16 %v3148, %v3132
    %v3917 = vpack.c.b16 %v3149, %v3133
    %v3918 = vpack.c.b16 %v3150, %v3134
    %v3919 = vpack.c.b16 %v3151, %v3135
    %v3920 = vpack.c.b16 %v3152, %v3136
    %v3921 = vpack.c.b16 %v3153, %v3137
    %v3922 = vpack.c.b16 %v3154, %v3138
    %v3923 = vpack.c.b16 %v3155, %v3139
    %v3924 = vpack.c.b16 %v3156, %v3140
    %v3925 = vpack.c.b16 %v3157, %v3141
    %v3926 = vpack.c.b16 %v3158, %v3142
    %v3927 = vpack.c.b16 %v3159, %v3143
    %v3928 = vpack.c.b16 %v3160, %v3144
    %v3929 = vpack.c.b16 %v3161, %v3145
    %v3930 = vpack.c.b16 %v3162, %v3146
    %v3931 = vpack.c.b16 %v3163, %v3147
    %v4702 = vlaneseq
    %v4703 = vshrl.u32 %v4702, 7
    %v4704 = vsub.s32 0, %v4703
    %v4705 = vrot.slane %v858, %v4704
    %v4706 = vlaneseq
    %v4707 = vshrl.u32 %v4706, 7
    %v4708 = vsub.s32 1, %v4707
    %v4709 = vrot.slane %v858, %v4708
    %v4710 = vlaneseq
    %v4711 = vshrl.u32 %v4710, 7
    %v4712 = vsub.s32 2, %v4711
    %v4713 = vrot.slane %v858, %v4712
    %v4714 = vlaneseq
    %v4715 = vshrl.u32 %v4714, 7
    %v4716 = vsub.s32 3, %v4715
    %v4717 = vrot.slane %v858, %v4716
    %v4718 = vlaneseq
    %v4719 = vshrl.u32 %v4718, 7
    %v4720 = vsub.s32 4, %v4719
    %v4721 = vrot.slane %v858, %v4720
    %v4722 = vlaneseq
    %v4723 = vshrl.u32 %v4722, 7
    %v4724 = vsub.s32 5, %v4723
    %v4725 = vrot.slane %v858, %v4724
    %v4726 = vlaneseq
    %v4727 = vshrl.u32 %v4726, 7
    %v4728 = vsub.s32 6, %v4727
    %v4729 = vrot.slane %v858, %v4728
    %v4730 = vlaneseq
    %v4731 = vshrl.u32 %v4730, 7
    %v4732 = vsub.s32 7, %v4731
    %v4733 = vrot.slane %v858, %v4732
    %v4734 = vlaneseq
    %v4735 = vshrl.u32 %v4734, 7
    %v4736 = vsub.s32 0, %v4735
    %v4737 = vrot.slane %v859, %v4736
    %v4738 = vlaneseq
    %v4739 = vshrl.u32 %v4738, 7
    %v4740 = vsub.s32 1, %v4739
    %v4741 = vrot.slane %v859, %v4740
    %v4742 = vlaneseq
    %v4743 = vshrl.u32 %v4742, 7
    %v4744 = vsub.s32 2, %v4743
    %v4745 = vrot.slane %v859, %v4744
    %v4746 = vlaneseq
    %v4747 = vshrl.u32 %v4746, 7
    %v4748 = vsub.s32 3, %v4747
    %v4749 = vrot.slane %v859, %v4748
    %v4750 = vlaneseq
    %v4751 = vshrl.u32 %v4750, 7
    %v4752 = vsub.s32 4, %v4751
    %v4753 = vrot.slane %v859, %v4752
    %v4754 = vlaneseq
    %v4755 = vshrl.u32 %v4754, 7
    %v4756 = vsub.s32 5, %v4755
    %v4757 = vrot.slane %v859, %v4756
    %v4758 = vlaneseq
    %v4759 = vshrl.u32 %v4758, 7
    %v4760 = vsub.s32 6, %v4759
    %v4761 = vrot.slane %v859, %v4760
    %v4762 = vlaneseq
    %v4763 = vshrl.u32 %v4762, 7
    %v4764 = vsub.s32 7, %v4763
    %v4765 = vrot.slane %v859, %v4764
    %4782 = vmatprep.subr.bf16.mxu0 %v3165
    %4783 = vmatpush1.bf16.msra.mxu0 %v3164
    %4784 = vmatprep.subr.bf16.mxu0 %v3181
    %4785 = vmatpush1.bf16.msra.mxu0 %v3180
    %4786 = vmatprep.subr.bf16.mxu0 %v3197
    %4787 = vmatpush1.bf16.msra.mxu0 %v3196
    %4788 = vmatprep.subr.bf16.mxu0 %v3213
    %4789 = vmatpush1.bf16.msra.mxu0 %v3212
    %4790 = vmatprep.subr.bf16.mxu0 %v3229
    %4791 = vmatpush1.bf16.msra.mxu0 %v3228
    %4792 = vmatprep.subr.bf16.mxu0 %v3245
    %4793 = vmatpush1.bf16.msra.mxu0 %v3244
    %4794 = vmatprep.subr.bf16.mxu0 %v3261
    %4795 = vmatpush1.bf16.msra.mxu0 %v3260
    %4796 = vmatprep.subr.bf16.mxu0 %v3277
    %4797 = vmatpush1.bf16.msra.mxu0 %v3276
    %4798 = vmatprep.subr.bf16.mxu0 %v3293
    %4799 = vmatpush1.bf16.msra.mxu0 %v3292
    %4800 = vmatprep.subr.bf16.mxu0 %v3309
    %4801 = vmatpush1.bf16.msra.mxu0 %v3308
    %4802 = vmatprep.subr.bf16.mxu0 %v3325
    %4803 = vmatpush1.bf16.msra.mxu0 %v3324
    %4804 = vmatprep.subr.bf16.mxu0 %v3341
    %4805 = vmatpush1.bf16.msra.mxu0 %v3340
    %4806 = vmatprep.subr.bf16.mxu0 %v3357
    %4807 = vmatpush1.bf16.msra.mxu0 %v3356
    %4808 = vmatprep.subr.bf16.mxu0 %v3373
    %4809 = vmatpush1.bf16.msra.mxu0 %v3372
    %4810 = vmatprep.subr.bf16.mxu0 %v3389
    %4811 = vmatpush1.bf16.msra.mxu0 %v3388
    %4812 = vmatprep.subr.bf16.mxu0 %v3405
    %4813 = vmatpush1.bf16.msra.mxu0 %v3404
    %4814 = vmatprep.mubr.bf16.mxu0 %v85
    %4815 = vmatmul.mubr.bf16.gmra.mrb[0].mxu0 %v84
    %v4816 = vpop.f32.mrb[0].mxu0
    %v4817 = vadd.f32 %v4705, %v4816
    %v4818 = vpop.f32.mrb[0].mxu0
    %v4819 = vadd.f32 %v4709, %v4818
    %v4820 = vpop.f32.mrb[0].mxu0
    %v4821 = vpop.f32.mrb[0].mxu0
    %4822 = vdwg.mxu0
    %4823 = vmatprep.subr.bf16.mxu0 %v3421
    %4824 = vmatpush1.bf16.msra.mxu0 %v3420
    %4825 = vmatprep.subr.bf16.mxu0 %v3437
    %4826 = vmatpush1.bf16.msra.mxu0 %v3436
    %4827 = vmatprep.subr.bf16.mxu0 %v3453
    %4828 = vmatpush1.bf16.msra.mxu0 %v3452
    %4829 = vmatprep.subr.bf16.mxu0 %v3469
    %4830 = vmatpush1.bf16.msra.mxu0 %v3468
    %4831 = vmatprep.subr.bf16.mxu0 %v3485
    %4832 = vmatpush1.bf16.msra.mxu0 %v3484
    %4833 = vmatprep.subr.bf16.mxu0 %v3501
    %4834 = vmatpush1.bf16.msra.mxu0 %v3500
    %4835 = vmatprep.subr.bf16.mxu0 %v3517
    %4836 = vmatpush1.bf16.msra.mxu0 %v3516
    %4837 = vmatprep.subr.bf16.mxu0 %v3533
    %4838 = vmatpush1.bf16.msra.mxu0 %v3532
    %4839 = vmatprep.subr.bf16.mxu0 %v3549
    %4840 = vmatpush1.bf16.msra.mxu0 %v3548
    %4841 = vmatprep.subr.bf16.mxu0 %v3565
    %4842 = vmatpush1.bf16.msra.mxu0 %v3564
    %4843 = vmatprep.subr.bf16.mxu0 %v3581
    %4844 = vmatpush1.bf16.msra.mxu0 %v3580
    %4845 = vmatprep.subr.bf16.mxu0 %v3597
    %4846 = vmatpush1.bf16.msra.mxu0 %v3596
    %4847 = vmatprep.subr.bf16.mxu0 %v3613
    %4848 = vmatpush1.bf16.msra.mxu0 %v3612
    %4849 = vmatprep.subr.bf16.mxu0 %v3629
    %4850 = vmatpush1.bf16.msra.mxu0 %v3628
    %4851 = vmatprep.subr.bf16.mxu0 %v3645
    %4852 = vmatpush1.bf16.msra.mxu0 %v3644
    %4853 = vmatprep.subr.bf16.mxu0 %v3661
    %4854 = vmatpush1.bf16.msra.mxu0 %v3660
    %4855 = vmatprep.mubr.bf16.mxu0 %v87
    %4856 = vmatmul.mubr.bf16.gmra.mrb[0].mxu0 %v86
    %v4857 = vpop.f32.mrb[0].mxu0
    %v4858 = vadd.f32 %v4817, %v4857
    %v4859 = vpop.f32.mrb[0].mxu0
    %v4860 = vadd.f32 %v4819, %v4859
    %v4861 = vpop.f32.mrb[0].mxu0
    %v4862 = vpop.f32.mrb[0].mxu0
    %4863 = vdwg.mxu0
    %4864 = vmatprep.subr.bf16.mxu0 %v3677
    %4865 = vmatpush1.bf16.msra.mxu0 %v3676
    %4866 = vmatprep.subr.bf16.mxu0 %v3693
    %4867 = vmatpush1.bf16.msra.mxu0 %v3692
    %4868 = vmatprep.subr.bf16.mxu0 %v3709
    %4869 = vmatpush1.bf16.msra.mxu0 %v3708
    %4870 = vmatprep.subr.bf16.mxu0 %v3725
    %4871 = vmatpush1.bf16.msra.mxu0 %v3724
    %4872 = vmatprep.subr.bf16.mxu0 %v3741
    %4873 = vmatpush1.bf16.msra.mxu0 %v3740
    %4874 = vmatprep.subr.bf16.mxu0 %v3757
    %4875 = vmatpush1.bf16.msra.mxu0 %v3756
    %4876 = vmatprep.subr.bf16.mxu0 %v3773
    %4877 = vmatpush1.bf16.msra.mxu0 %v3772
    %4878 = vmatprep.subr.bf16.mxu0 %v3789
    %4879 = vmatpush1.bf16.msra.mxu0 %v3788
    %4880 = vmatprep.subr.bf16.mxu0 %v3805
    %4881 = vmatpush1.bf16.msra.mxu0 %v3804
    %4882 = vmatprep.subr.bf16.mxu0 %v3821
    %4883 = vmatpush1.bf16.msra.mxu0 %v3820
    %4884 = vmatprep.subr.bf16.mxu0 %v3837
    %4885 = vmatpush1.bf16.msra.mxu0 %v3836
    %4886 = vmatprep.subr.bf16.mxu0 %v3853
    %4887 = vmatpush1.bf16.msra.mxu0 %v3852
    %4888 = vmatprep.subr.bf16.mxu0 %v3869
    %4889 = vmatpush1.bf16.msra.mxu0 %v3868
    %4890 = vmatprep.subr.bf16.mxu0 %v3885
    %4891 = vmatpush1.bf16.msra.mxu0 %v3884
    %4892 = vmatprep.subr.bf16.mxu0 %v3901
    %4893 = vmatpush1.bf16.msra.mxu0 %v3900
    %4894 = vmatprep.subr.bf16.mxu0 %v3917
    %4895 = vmatpush1.bf16.msra.mxu0 %v3916
    %4896 = vmatprep.mubr.bf16.mxu0 %v89
    %4897 = vmatmul.mubr.bf16.gmra.mrb[0].mxu0 %v88
    %v4898 = vpop.f32.mrb[0].mxu0
    %v4899 = vadd.f32 %v4858, %v4898
    %v4900 = vpop.f32.mrb[0].mxu0
    %v4901 = vadd.f32 %v4860, %v4900
    %v4902 = vpop.f32.mrb[0].mxu0
    %v4903 = vpop.f32.mrb[0].mxu0
    %4904 = vdwg.mxu0
    %4905 = vmatprep.subr.bf16.mxu0 %v3167
    %4906 = vmatpush1.bf16.msra.mxu0 %v3166
    %4907 = vmatprep.subr.bf16.mxu0 %v3183
    %4908 = vmatpush1.bf16.msra.mxu0 %v3182
    %4909 = vmatprep.subr.bf16.mxu0 %v3199
    %4910 = vmatpush1.bf16.msra.mxu0 %v3198
    %4911 = vmatprep.subr.bf16.mxu0 %v3215
    %4912 = vmatpush1.bf16.msra.mxu0 %v3214
    %4913 = vmatprep.subr.bf16.mxu0 %v3231
    %4914 = vmatpush1.bf16.msra.mxu0 %v3230
    %4915 = vmatprep.subr.bf16.mxu0 %v3247
    %4916 = vmatpush1.bf16.msra.mxu0 %v3246
    %4917 = vmatprep.subr.bf16.mxu0 %v3263
    %4918 = vmatpush1.bf16.msra.mxu0 %v3262
    %4919 = vmatprep.subr.bf16.mxu0 %v3279
    %4920 = vmatpush1.bf16.msra.mxu0 %v3278
    %4921 = vmatprep.subr.bf16.mxu0 %v3295
    %4922 = vmatpush1.bf16.msra.mxu0 %v3294
    %4923 = vmatprep.subr.bf16.mxu0 %v3311
    %4924 = vmatpush1.bf16.msra.mxu0 %v3310
    %4925 = vmatprep.subr.bf16.mxu0 %v3327
    %4926 = vmatpush1.bf16.msra.mxu0 %v3326
    %4927 = vmatprep.subr.bf16.mxu0 %v3343
    %4928 = vmatpush1.bf16.msra.mxu0 %v3342
    %4929 = vmatprep.subr.bf16.mxu0 %v3359
    %4930 = vmatpush1.bf16.msra.mxu0 %v3358
    %4931 = vmatprep.subr.bf16.mxu0 %v3375
    %4932 = vmatpush1.bf16.msra.mxu0 %v3374
    %4933 = vmatprep.subr.bf16.mxu0 %v3391
    %4934 = vmatpush1.bf16.msra.mxu0 %v3390
    %4935 = vmatprep.subr.bf16.mxu0 %v3407
    %4936 = vmatpush1.bf16.msra.mxu0 %v3406
    %4937 = vmatprep.mubr.bf16.mxu0 %v85
    %4938 = vmatmul.mubr.bf16.gmra.mrb[0].mxu0 %v84
    %v4939 = vpop.f32.mrb[0].mxu0
    %v4940 = vadd.f32 %v4713, %v4939
    %v4941 = vpop.f32.mrb[0].mxu0
    %v4942 = vadd.f32 %v4717, %v4941
    %v4943 = vpop.f32.mrb[0].mxu0
    %v4944 = vpop.f32.mrb[0].mxu0
    %4945 = vdwg.mxu0
    %4946 = vmatprep.subr.bf16.mxu0 %v3423
    %4947 = vmatpush1.bf16.msra.mxu0 %v3422
    %4948 = vmatprep.subr.bf16.mxu0 %v3439
    %4949 = vmatpush1.bf16.msra.mxu0 %v3438
    %4950 = vmatprep.subr.bf16.mxu0 %v3455
    %4951 = vmatpush1.bf16.msra.mxu0 %v3454
    %4952 = vmatprep.subr.bf16.mxu0 %v3471
    %4953 = vmatpush1.bf16.msra.mxu0 %v3470
    %4954 = vmatprep.subr.bf16.mxu0 %v3487
    %4955 = vmatpush1.bf16.msra.mxu0 %v3486
    %4956 = vmatprep.subr.bf16.mxu0 %v3503
    %4957 = vmatpush1.bf16.msra.mxu0 %v3502
    %4958 = vmatprep.subr.bf16.mxu0 %v3519
    %4959 = vmatpush1.bf16.msra.mxu0 %v3518
    %4960 = vmatprep.subr.bf16.mxu0 %v3535
    %4961 = vmatpush1.bf16.msra.mxu0 %v3534
    %4962 = vmatprep.subr.bf16.mxu0 %v3551
    %4963 = vmatpush1.bf16.msra.mxu0 %v3550
    %4964 = vmatprep.subr.bf16.mxu0 %v3567
    %4965 = vmatpush1.bf16.msra.mxu0 %v3566
    %4966 = vmatprep.subr.bf16.mxu0 %v3583
    %4967 = vmatpush1.bf16.msra.mxu0 %v3582
    %4968 = vmatprep.subr.bf16.mxu0 %v3599
    %4969 = vmatpush1.bf16.msra.mxu0 %v3598
    %4970 = vmatprep.subr.bf16.mxu0 %v3615
    %4971 = vmatpush1.bf16.msra.mxu0 %v3614
    %4972 = vmatprep.subr.bf16.mxu0 %v3631
    %4973 = vmatpush1.bf16.msra.mxu0 %v3630
    %4974 = vmatprep.subr.bf16.mxu0 %v3647
    %4975 = vmatpush1.bf16.msra.mxu0 %v3646
    %4976 = vmatprep.subr.bf16.mxu0 %v3663
    %4977 = vmatpush1.bf16.msra.mxu0 %v3662
    %4978 = vmatprep.mubr.bf16.mxu0 %v87
    %4979 = vmatmul.mubr.bf16.gmra.mrb[0].mxu0 %v86
    %v4980 = vpop.f32.mrb[0].mxu0
    %v4981 = vadd.f32 %v4940, %v4980
    %v4982 = vpop.f32.mrb[0].mxu0
    %v4983 = vadd.f32 %v4942, %v4982
    %v4984 = vpop.f32.mrb[0].mxu0
    %v4985 = vpop.f32.mrb[0].mxu0
    %4986 = vdwg.mxu0
    %4987 = vmatprep.subr.bf16.mxu0 %v3679
    %4988 = vmatpush1.bf16.msra.mxu0 %v3678
    %4989 = vmatprep.subr.bf16.mxu0 %v3695
    %4990 = vmatpush1.bf16.msra.mxu0 %v3694
    %4991 = vmatprep.subr.bf16.mxu0 %v3711
    %4992 = vmatpush1.bf16.msra.mxu0 %v3710
    %4993 = vmatprep.subr.bf16.mxu0 %v3727
    %4994 = vmatpush1.bf16.msra.mxu0 %v3726
    %4995 = vmatprep.subr.bf16.mxu0 %v3743
    %4996 = vmatpush1.bf16.msra.mxu0 %v3742
    %4997 = vmatprep.subr.bf16.mxu0 %v3759
    %4998 = vmatpush1.bf16.msra.mxu0 %v3758
    %4999 = vmatprep.subr.bf16.mxu0 %v3775
    %5000 = vmatpush1.bf16.msra.mxu0 %v3774
    %5001 = vmatprep.subr.bf16.mxu0 %v3791
    %5002 = vmatpush1.bf16.msra.mxu0 %v3790
    %5003 = vmatprep.subr.bf16.mxu0 %v3807
    %5004 = vmatpush1.bf16.msra.mxu0 %v3806
    %5005 = vmatprep.subr.bf16.mxu0 %v3823
    %5006 = vmatpush1.bf16.msra.mxu0 %v3822
    %5007 = vmatprep.subr.bf16.mxu0 %v3839
    %5008 = vmatpush1.bf16.msra.mxu0 %v3838
    %5009 = vmatprep.subr.bf16.mxu0 %v3855
    %5010 = vmatpush1.bf16.msra.mxu0 %v3854
    %5011 = vmatprep.subr.bf16.mxu0 %v3871
    %5012 = vmatpush1.bf16.msra.mxu0 %v3870
    %5013 = vmatprep.subr.bf16.mxu0 %v3887
    %5014 = vmatpush1.bf16.msra.mxu0 %v3886
    %5015 = vmatprep.subr.bf16.mxu0 %v3903
    %5016 = vmatpush1.bf16.msra.mxu0 %v3902
    %5017 = vmatprep.subr.bf16.mxu0 %v3919
    %5018 = vmatpush1.bf16.msra.mxu0 %v3918
    %5019 = vmatprep.mubr.bf16.mxu0 %v89
    %5020 = vmatmul.mubr.bf16.gmra.mrb[0].mxu0 %v88
    %v5021 = vpop.f32.mrb[0].mxu0
    %v5022 = vadd.f32 %v4981, %v5021
    %v5023 = vpop.f32.mrb[0].mxu0
    %v5024 = vadd.f32 %v4983, %v5023
    %v5025 = vpop.f32.mrb[0].mxu0
    %v5026 = vpop.f32.mrb[0].mxu0
    %5027 = vdwg.mxu0
    %5028 = vmatprep.subr.bf16.mxu0 %v3169
    %5029 = vmatpush1.bf16.msra.mxu0 %v3168
    %5030 = vmatprep.subr.bf16.mxu0 %v3185
    %5031 = vmatpush1.bf16.msra.mxu0 %v3184
    %5032 = vmatprep.subr.bf16.mxu0 %v3201
    %5033 = vmatpush1.bf16.msra.mxu0 %v3200
    %5034 = vmatprep.subr.bf16.mxu0 %v3217
    %5035 = vmatpush1.bf16.msra.mxu0 %v3216
    %5036 = vmatprep.subr.bf16.mxu0 %v3233
    %5037 = vmatpush1.bf16.msra.mxu0 %v3232
    %5038 = vmatprep.subr.bf16.mxu0 %v3249
    %5039 = vmatpush1.bf16.msra.mxu0 %v3248
    %5040 = vmatprep.subr.bf16.mxu0 %v3265
    %5041 = vmatpush1.bf16.msra.mxu0 %v3264
    %5042 = vmatprep.subr.bf16.mxu0 %v3281
    %5043 = vmatpush1.bf16.msra.mxu0 %v3280
    %5044 = vmatprep.subr.bf16.mxu0 %v3297
    %5045 = vmatpush1.bf16.msra.mxu0 %v3296
    %5046 = vmatprep.subr.bf16.mxu0 %v3313
    %5047 = vmatpush1.bf16.msra.mxu0 %v3312
    %5048 = vmatprep.subr.bf16.mxu0 %v3329
    %5049 = vmatpush1.bf16.msra.mxu0 %v3328
    %5050 = vmatprep.subr.bf16.mxu0 %v3345
    %5051 = vmatpush1.bf16.msra.mxu0 %v3344
    %5052 = vmatprep.subr.bf16.mxu0 %v3361
    %5053 = vmatpush1.bf16.msra.mxu0 %v3360
    %5054 = vmatprep.subr.bf16.mxu0 %v3377
    %5055 = vmatpush1.bf16.msra.mxu0 %v3376
    %5056 = vmatprep.subr.bf16.mxu0 %v3393
    %5057 = vmatpush1.bf16.msra.mxu0 %v3392
    %5058 = vmatprep.subr.bf16.mxu0 %v3409
    %5059 = vmatpush1.bf16.msra.mxu0 %v3408
    %5060 = vmatprep.mubr.bf16.mxu0 %v85
    %5061 = vmatmul.mubr.bf16.gmra.mrb[0].mxu0 %v84
    %v5062 = vpop.f32.mrb[0].mxu0
    %v5063 = vadd.f32 %v4721, %v5062
    %v5064 = vpop.f32.mrb[0].mxu0
    %v5065 = vadd.f32 %v4725, %v5064
    %v5066 = vpop.f32.mrb[0].mxu0
    %v5067 = vpop.f32.mrb[0].mxu0
    %5068 = vdwg.mxu0
    %5069 = vmatprep.subr.bf16.mxu0 %v3425
    %5070 = vmatpush1.bf16.msra.mxu0 %v3424
    %5071 = vmatprep.subr.bf16.mxu0 %v3441
    %5072 = vmatpush1.bf16.msra.mxu0 %v3440
    %5073 = vmatprep.subr.bf16.mxu0 %v3457
    %5074 = vmatpush1.bf16.msra.mxu0 %v3456
    %5075 = vmatprep.subr.bf16.mxu0 %v3473
    %5076 = vmatpush1.bf16.msra.mxu0 %v3472
    %5077 = vmatprep.subr.bf16.mxu0 %v3489
    %5078 = vmatpush1.bf16.msra.mxu0 %v3488
    %5079 = vmatprep.subr.bf16.mxu0 %v3505
    %5080 = vmatpush1.bf16.msra.mxu0 %v3504
    %5081 = vmatprep.subr.bf16.mxu0 %v3521
    %5082 = vmatpush1.bf16.msra.mxu0 %v3520
    %5083 = vmatprep.subr.bf16.mxu0 %v3537
    %5084 = vmatpush1.bf16.msra.mxu0 %v3536
    %5085 = vmatprep.subr.bf16.mxu0 %v3553
    %5086 = vmatpush1.bf16.msra.mxu0 %v3552
    %5087 = vmatprep.subr.bf16.mxu0 %v3569
    %5088 = vmatpush1.bf16.msra.mxu0 %v3568
    %5089 = vmatprep.subr.bf16.mxu0 %v3585
    %5090 = vmatpush1.bf16.msra.mxu0 %v3584
    %5091 = vmatprep.subr.bf16.mxu0 %v3601
    %5092 = vmatpush1.bf16.msra.mxu0 %v3600
    %5093 = vmatprep.subr.bf16.mxu0 %v3617
    %5094 = vmatpush1.bf16.msra.mxu0 %v3616
    %5095 = vmatprep.subr.bf16.mxu0 %v3633
    %5096 = vmatpush1.bf16.msra.mxu0 %v3632
    %5097 = vmatprep.subr.bf16.mxu0 %v3649
    %5098 = vmatpush1.bf16.msra.mxu0 %v3648
    %5099 = vmatprep.subr.bf16.mxu0 %v3665
    %5100 = vmatpush1.bf16.msra.mxu0 %v3664
    %5101 = vmatprep.mubr.bf16.mxu0 %v87
    %5102 = vmatmul.mubr.bf16.gmra.mrb[0].mxu0 %v86
    %v5103 = vpop.f32.mrb[0].mxu0
    %v5104 = vadd.f32 %v5063, %v5103
    %v5105 = vpop.f32.mrb[0].mxu0
    %v5106 = vadd.f32 %v5065, %v5105
    %v5107 = vpop.f32.mrb[0].mxu0
    %v5108 = vpop.f32.mrb[0].mxu0
    %5109 = vdwg.mxu0
    %5110 = vmatprep.subr.bf16.mxu0 %v3681
    %5111 = vmatpush1.bf16.msra.mxu0 %v3680
    %5112 = vmatprep.subr.bf16.mxu0 %v3697
    %5113 = vmatpush1.bf16.msra.mxu0 %v3696
    %5114 = vmatprep.subr.bf16.mxu0 %v3713
    %5115 = vmatpush1.bf16.msra.mxu0 %v3712
    %5116 = vmatprep.subr.bf16.mxu0 %v3729
    %5117 = vmatpush1.bf16.msra.mxu0 %v3728
    %5118 = vmatprep.subr.bf16.mxu0 %v3745
    %5119 = vmatpush1.bf16.msra.mxu0 %v3744
    %5120 = vmatprep.subr.bf16.mxu0 %v3761
    %5121 = vmatpush1.bf16.msra.mxu0 %v3760
    %5122 = vmatprep.subr.bf16.mxu0 %v3777
    %5123 = vmatpush1.bf16.msra.mxu0 %v3776
    %5124 = vmatprep.subr.bf16.mxu0 %v3793
    %5125 = vmatpush1.bf16.msra.mxu0 %v3792
    %5126 = vmatprep.subr.bf16.mxu0 %v3809
    %5127 = vmatpush1.bf16.msra.mxu0 %v3808
    %5128 = vmatprep.subr.bf16.mxu0 %v3825
    %5129 = vmatpush1.bf16.msra.mxu0 %v3824
    %5130 = vmatprep.subr.bf16.mxu0 %v3841
    %5131 = vmatpush1.bf16.msra.mxu0 %v3840
    %5132 = vmatprep.subr.bf16.mxu0 %v3857
    %5133 = vmatpush1.bf16.msra.mxu0 %v3856
    %5134 = vmatprep.subr.bf16.mxu0 %v3873
    %5135 = vmatpush1.bf16.msra.mxu0 %v3872
    %5136 = vmatprep.subr.bf16.mxu0 %v3889
    %5137 = vmatpush1.bf16.msra.mxu0 %v3888
    %5138 = vmatprep.subr.bf16.mxu0 %v3905
    %5139 = vmatpush1.bf16.msra.mxu0 %v3904
    %5140 = vmatprep.subr.bf16.mxu0 %v3921
    %5141 = vmatpush1.bf16.msra.mxu0 %v3920
    %5142 = vmatprep.mubr.bf16.mxu0 %v89
    %5143 = vmatmul.mubr.bf16.gmra.mrb[0].mxu0 %v88
    %v5144 = vpop.f32.mrb[0].mxu0
    %v5145 = vadd.f32 %v5104, %v5144
    %v5146 = vpop.f32.mrb[0].mxu0
    %v5147 = vadd.f32 %v5106, %v5146
    %v5148 = vpop.f32.mrb[0].mxu0
    %v5149 = vpop.f32.mrb[0].mxu0
    %5150 = vdwg.mxu0
    %5151 = vmatprep.subr.bf16.mxu0 %v3171
    %5152 = vmatpush1.bf16.msra.mxu0 %v3170
    %5153 = vmatprep.subr.bf16.mxu0 %v3187
    %5154 = vmatpush1.bf16.msra.mxu0 %v3186
    %5155 = vmatprep.subr.bf16.mxu0 %v3203
    %5156 = vmatpush1.bf16.msra.mxu0 %v3202
    %5157 = vmatprep.subr.bf16.mxu0 %v3219
    %5158 = vmatpush1.bf16.msra.mxu0 %v3218
    %5159 = vmatprep.subr.bf16.mxu0 %v3235
    %5160 = vmatpush1.bf16.msra.mxu0 %v3234
    %5161 = vmatprep.subr.bf16.mxu0 %v3251
    %5162 = vmatpush1.bf16.msra.mxu0 %v3250
    %5163 = vmatprep.subr.bf16.mxu0 %v3267
    %5164 = vmatpush1.bf16.msra.mxu0 %v3266
    %5165 = vmatprep.subr.bf16.mxu0 %v3283
    %5166 = vmatpush1.bf16.msra.mxu0 %v3282
    %5167 = vmatprep.subr.bf16.mxu0 %v3299
    %5168 = vmatpush1.bf16.msra.mxu0 %v3298
    %5169 = vmatprep.subr.bf16.mxu0 %v3315
    %5170 = vmatpush1.bf16.msra.mxu0 %v3314
    %5171 = vmatprep.subr.bf16.mxu0 %v3331
    %5172 = vmatpush1.bf16.msra.mxu0 %v3330
    %5173 = vmatprep.subr.bf16.mxu0 %v3347
    %5174 = vmatpush1.bf16.msra.mxu0 %v3346
    %5175 = vmatprep.subr.bf16.mxu0 %v3363
    %5176 = vmatpush1.bf16.msra.mxu0 %v3362
    %5177 = vmatprep.subr.bf16.mxu0 %v3379
    %5178 = vmatpush1.bf16.msra.mxu0 %v3378
    %5179 = vmatprep.subr.bf16.mxu0 %v3395
    %5180 = vmatpush1.bf16.msra.mxu0 %v3394
    %5181 = vmatprep.subr.bf16.mxu0 %v3411
    %5182 = vmatpush1.bf16.msra.mxu0 %v3410
    %5183 = vmatprep.mubr.bf16.mxu0 %v85
    %5184 = vmatmul.mubr.bf16.gmra.mrb[0].mxu0 %v84
    %v5185 = vpop.f32.mrb[0].mxu0
    %v5186 = vadd.f32 %v4729, %v5185
    %v5187 = vpop.f32.mrb[0].mxu0
    %v5188 = vadd.f32 %v4733, %v5187
    %v5189 = vpop.f32.mrb[0].mxu0
    %v5190 = vpop.f32.mrb[0].mxu0
    %5191 = vdwg.mxu0
    %5192 = vmatprep.subr.bf16.mxu0 %v3427
    %5193 = vmatpush1.bf16.msra.mxu0 %v3426
    %5194 = vmatprep.subr.bf16.mxu0 %v3443
    %5195 = vmatpush1.bf16.msra.mxu0 %v3442
    %5196 = vmatprep.subr.bf16.mxu0 %v3459
    %5197 = vmatpush1.bf16.msra.mxu0 %v3458
    %5198 = vmatprep.subr.bf16.mxu0 %v3475
    %5199 = vmatpush1.bf16.msra.mxu0 %v3474
    %5200 = vmatprep.subr.bf16.mxu0 %v3491
    %5201 = vmatpush1.bf16.msra.mxu0 %v3490
    %5202 = vmatprep.subr.bf16.mxu0 %v3507
    %5203 = vmatpush1.bf16.msra.mxu0 %v3506
    %5204 = vmatprep.subr.bf16.mxu0 %v3523
    %5205 = vmatpush1.bf16.msra.mxu0 %v3522
    %5206 = vmatprep.subr.bf16.mxu0 %v3539
    %5207 = vmatpush1.bf16.msra.mxu0 %v3538
    %5208 = vmatprep.subr.bf16.mxu0 %v3555
    %5209 = vmatpush1.bf16.msra.mxu0 %v3554
    %5210 = vmatprep.subr.bf16.mxu0 %v3571
    %5211 = vmatpush1.bf16.msra.mxu0 %v3570
    %5212 = vmatprep.subr.bf16.mxu0 %v3587
    %5213 = vmatpush1.bf16.msra.mxu0 %v3586
    %5214 = vmatprep.subr.bf16.mxu0 %v3603
    %5215 = vmatpush1.bf16.msra.mxu0 %v3602
    %5216 = vmatprep.subr.bf16.mxu0 %v3619
    %5217 = vmatpush1.bf16.msra.mxu0 %v3618
    %5218 = vmatprep.subr.bf16.mxu0 %v3635
    %5219 = vmatpush1.bf16.msra.mxu0 %v3634
    %5220 = vmatprep.subr.bf16.mxu0 %v3651
    %5221 = vmatpush1.bf16.msra.mxu0 %v3650
    %5222 = vmatprep.subr.bf16.mxu0 %v3667
    %5223 = vmatpush1.bf16.msra.mxu0 %v3666
    %5224 = vmatprep.mubr.bf16.mxu0 %v87
    %5225 = vmatmul.mubr.bf16.gmra.mrb[0].mxu0 %v86
    %v5226 = vpop.f32.mrb[0].mxu0
    %v5227 = vadd.f32 %v5186, %v5226
    %v5228 = vpop.f32.mrb[0].mxu0
    %v5229 = vadd.f32 %v5188, %v5228
    %v5230 = vpop.f32.mrb[0].mxu0
    %v5231 = vpop.f32.mrb[0].mxu0
    %5232 = vdwg.mxu0
    %5233 = vmatprep.subr.bf16.mxu0 %v3683
    %5234 = vmatpush1.bf16.msra.mxu0 %v3682
    %5235 = vmatprep.subr.bf16.mxu0 %v3699
    %5236 = vmatpush1.bf16.msra.mxu0 %v3698
    %5237 = vmatprep.subr.bf16.mxu0 %v3715
    %5238 = vmatpush1.bf16.msra.mxu0 %v3714
    %5239 = vmatprep.subr.bf16.mxu0 %v3731
    %5240 = vmatpush1.bf16.msra.mxu0 %v3730
    %5241 = vmatprep.subr.bf16.mxu0 %v3747
    %5242 = vmatpush1.bf16.msra.mxu0 %v3746
    %5243 = vmatprep.subr.bf16.mxu0 %v3763
    %5244 = vmatpush1.bf16.msra.mxu0 %v3762
    %5245 = vmatprep.subr.bf16.mxu0 %v3779
    %5246 = vmatpush1.bf16.msra.mxu0 %v3778
    %5247 = vmatprep.subr.bf16.mxu0 %v3795
    %5248 = vmatpush1.bf16.msra.mxu0 %v3794
    %5249 = vmatprep.subr.bf16.mxu0 %v3811
    %5250 = vmatpush1.bf16.msra.mxu0 %v3810
    %5251 = vmatprep.subr.bf16.mxu0 %v3827
    %5252 = vmatpush1.bf16.msra.mxu0 %v3826
    %5253 = vmatprep.subr.bf16.mxu0 %v3843
    %5254 = vmatpush1.bf16.msra.mxu0 %v3842
    %5255 = vmatprep.subr.bf16.mxu0 %v3859
    %5256 = vmatpush1.bf16.msra.mxu0 %v3858
    %5257 = vmatprep.subr.bf16.mxu0 %v3875
    %5258 = vmatpush1.bf16.msra.mxu0 %v3874
    %5259 = vmatprep.subr.bf16.mxu0 %v3891
    %5260 = vmatpush1.bf16.msra.mxu0 %v3890
    %5261 = vmatprep.subr.bf16.mxu0 %v3907
    %5262 = vmatpush1.bf16.msra.mxu0 %v3906
    %5263 = vmatprep.subr.bf16.mxu0 %v3923
    %5264 = vmatpush1.bf16.msra.mxu0 %v3922
    %5265 = vmatprep.mubr.bf16.mxu0 %v89
    %5266 = vmatmul.mubr.bf16.gmra.mrb[0].mxu0 %v88
    %v5267 = vpop.f32.mrb[0].mxu0
    %v5268 = vadd.f32 %v5227, %v5267
    %v5269 = vpop.f32.mrb[0].mxu0
    %v5270 = vadd.f32 %v5229, %v5269
    %v5271 = vpop.f32.mrb[0].mxu0
    %v5272 = vpop.f32.mrb[0].mxu0
    %5273 = vdwg.mxu0
    %5274 = vmatprep.subr.bf16.mxu0 %v3173
    %5275 = vmatpush1.bf16.msra.mxu0 %v3172
    %5276 = vmatprep.subr.bf16.mxu0 %v3189
    %5277 = vmatpush1.bf16.msra.mxu0 %v3188
    %5278 = vmatprep.subr.bf16.mxu0 %v3205
    %5279 = vmatpush1.bf16.msra.mxu0 %v3204
    %5280 = vmatprep.subr.bf16.mxu0 %v3221
    %5281 = vmatpush1.bf16.msra.mxu0 %v3220
    %5282 = vmatprep.subr.bf16.mxu0 %v3237
    %5283 = vmatpush1.bf16.msra.mxu0 %v3236
    %5284 = vmatprep.subr.bf16.mxu0 %v3253
    %5285 = vmatpush1.bf16.msra.mxu0 %v3252
    %5286 = vmatprep.subr.bf16.mxu0 %v3269
    %5287 = vmatpush1.bf16.msra.mxu0 %v3268
    %5288 = vmatprep.subr.bf16.mxu0 %v3285
    %5289 = vmatpush1.bf16.msra.mxu0 %v3284
    %5290 = vmatprep.subr.bf16.mxu0 %v3301
    %5291 = vmatpush1.bf16.msra.mxu0 %v3300
    %5292 = vmatprep.subr.bf16.mxu0 %v3317
    %5293 = vmatpush1.bf16.msra.mxu0 %v3316
    %5294 = vmatprep.subr.bf16.mxu0 %v3333
    %5295 = vmatpush1.bf16.msra.mxu0 %v3332
    %5296 = vmatprep.subr.bf16.mxu0 %v3349
    %5297 = vmatpush1.bf16.msra.mxu0 %v3348
    %5298 = vmatprep.subr.bf16.mxu0 %v3365
    %5299 = vmatpush1.bf16.msra.mxu0 %v3364
    %5300 = vmatprep.subr.bf16.mxu0 %v3381
    %5301 = vmatpush1.bf16.msra.mxu0 %v3380
    %5302 = vmatprep.subr.bf16.mxu0 %v3397
    %5303 = vmatpush1.bf16.msra.mxu0 %v3396
    %5304 = vmatprep.subr.bf16.mxu0 %v3413
    %5305 = vmatpush1.bf16.msra.mxu0 %v3412
    %5306 = vmatprep.mubr.bf16.mxu0 %v85
    %5307 = vmatmul.mubr.bf16.gmra.mrb[0].mxu0 %v84
    %v5308 = vpop.f32.mrb[0].mxu0
    %v5309 = vadd.f32 %v4737, %v5308
    %v5310 = vpop.f32.mrb[0].mxu0
    %v5311 = vadd.f32 %v4741, %v5310
    %v5312 = vpop.f32.mrb[0].mxu0
    %v5313 = vpop.f32.mrb[0].mxu0
    %5314 = vdwg.mxu0
    %5315 = vmatprep.subr.bf16.mxu0 %v3429
    %5316 = vmatpush1.bf16.msra.mxu0 %v3428
    %5317 = vmatprep.subr.bf16.mxu0 %v3445
    %5318 = vmatpush1.bf16.msra.mxu0 %v3444
    %5319 = vmatprep.subr.bf16.mxu0 %v3461
    %5320 = vmatpush1.bf16.msra.mxu0 %v3460
    %5321 = vmatprep.subr.bf16.mxu0 %v3477
    %5322 = vmatpush1.bf16.msra.mxu0 %v3476
    %5323 = vmatprep.subr.bf16.mxu0 %v3493
    %5324 = vmatpush1.bf16.msra.mxu0 %v3492
    %5325 = vmatprep.subr.bf16.mxu0 %v3509
    %5326 = vmatpush1.bf16.msra.mxu0 %v3508
    %5327 = vmatprep.subr.bf16.mxu0 %v3525
    %5328 = vmatpush1.bf16.msra.mxu0 %v3524
    %5329 = vmatprep.subr.bf16.mxu0 %v3541
    %5330 = vmatpush1.bf16.msra.mxu0 %v3540
    %5331 = vmatprep.subr.bf16.mxu0 %v3557
    %5332 = vmatpush1.bf16.msra.mxu0 %v3556
    %5333 = vmatprep.subr.bf16.mxu0 %v3573
    %5334 = vmatpush1.bf16.msra.mxu0 %v3572
    %5335 = vmatprep.subr.bf16.mxu0 %v3589
    %5336 = vmatpush1.bf16.msra.mxu0 %v3588
    %5337 = vmatprep.subr.bf16.mxu0 %v3605
    %5338 = vmatpush1.bf16.msra.mxu0 %v3604
    %5339 = vmatprep.subr.bf16.mxu0 %v3621
    %5340 = vmatpush1.bf16.msra.mxu0 %v3620
    %5341 = vmatprep.subr.bf16.mxu0 %v3637
    %5342 = vmatpush1.bf16.msra.mxu0 %v3636
    %5343 = vmatprep.subr.bf16.mxu0 %v3653
    %5344 = vmatpush1.bf16.msra.mxu0 %v3652
    %5345 = vmatprep.subr.bf16.mxu0 %v3669
    %5346 = vmatpush1.bf16.msra.mxu0 %v3668
    %5347 = vmatprep.mubr.bf16.mxu0 %v87
    %5348 = vmatmul.mubr.bf16.gmra.mrb[0].mxu0 %v86
    %v5349 = vpop.f32.mrb[0].mxu0
    %v5350 = vadd.f32 %v5309, %v5349
    %v5351 = vpop.f32.mrb[0].mxu0
    %v5352 = vadd.f32 %v5311, %v5351
    %v5353 = vpop.f32.mrb[0].mxu0
    %v5354 = vpop.f32.mrb[0].mxu0
    %5355 = vdwg.mxu0
    %5356 = vmatprep.subr.bf16.mxu0 %v3685
    %5357 = vmatpush1.bf16.msra.mxu0 %v3684
    %5358 = vmatprep.subr.bf16.mxu0 %v3701
    %5359 = vmatpush1.bf16.msra.mxu0 %v3700
    %5360 = vmatprep.subr.bf16.mxu0 %v3717
    %5361 = vmatpush1.bf16.msra.mxu0 %v3716
    %5362 = vmatprep.subr.bf16.mxu0 %v3733
    %5363 = vmatpush1.bf16.msra.mxu0 %v3732
    %5364 = vmatprep.subr.bf16.mxu0 %v3749
    %5365 = vmatpush1.bf16.msra.mxu0 %v3748
    %5366 = vmatprep.subr.bf16.mxu0 %v3765
    %5367 = vmatpush1.bf16.msra.mxu0 %v3764
    %5368 = vmatprep.subr.bf16.mxu0 %v3781
    %5369 = vmatpush1.bf16.msra.mxu0 %v3780
    %5370 = vmatprep.subr.bf16.mxu0 %v3797
    %5371 = vmatpush1.bf16.msra.mxu0 %v3796
    %5372 = vmatprep.subr.bf16.mxu0 %v3813
    %5373 = vmatpush1.bf16.msra.mxu0 %v3812
    %5374 = vmatprep.subr.bf16.mxu0 %v3829
    %5375 = vmatpush1.bf16.msra.mxu0 %v3828
    %5376 = vmatprep.subr.bf16.mxu0 %v3845
    %5377 = vmatpush1.bf16.msra.mxu0 %v3844
    %5378 = vmatprep.subr.bf16.mxu0 %v3861
    %5379 = vmatpush1.bf16.msra.mxu0 %v3860
    %5380 = vmatprep.subr.bf16.mxu0 %v3877
    %5381 = vmatpush1.bf16.msra.mxu0 %v3876
    %5382 = vmatprep.subr.bf16.mxu0 %v3893
    %5383 = vmatpush1.bf16.msra.mxu0 %v3892
    %5384 = vmatprep.subr.bf16.mxu0 %v3909
    %5385 = vmatpush1.bf16.msra.mxu0 %v3908
    %5386 = vmatprep.subr.bf16.mxu0 %v3925
    %5387 = vmatpush1.bf16.msra.mxu0 %v3924
    %5388 = vmatprep.mubr.bf16.mxu0 %v89
    %5389 = vmatmul.mubr.bf16.gmra.mrb[0].mxu0 %v88
    %v5390 = vpop.f32.mrb[0].mxu0
    %v5391 = vadd.f32 %v5350, %v5390
    %v5392 = vpop.f32.mrb[0].mxu0
    %v5393 = vadd.f32 %v5352, %v5392
    %v5394 = vpop.f32.mrb[0].mxu0
    %v5395 = vpop.f32.mrb[0].mxu0
    %5396 = vdwg.mxu0
    %5397 = vmatprep.subr.bf16.mxu0 %v3175
    %5398 = vmatpush1.bf16.msra.mxu0 %v3174
    %5399 = vmatprep.subr.bf16.mxu0 %v3191
    %5400 = vmatpush1.bf16.msra.mxu0 %v3190
    %5401 = vmatprep.subr.bf16.mxu0 %v3207
    %5402 = vmatpush1.bf16.msra.mxu0 %v3206
    %5403 = vmatprep.subr.bf16.mxu0 %v3223
    %5404 = vmatpush1.bf16.msra.mxu0 %v3222
    %5405 = vmatprep.subr.bf16.mxu0 %v3239
    %5406 = vmatpush1.bf16.msra.mxu0 %v3238
    %5407 = vmatprep.subr.bf16.mxu0 %v3255
    %5408 = vmatpush1.bf16.msra.mxu0 %v3254
    %5409 = vmatprep.subr.bf16.mxu0 %v3271
    %5410 = vmatpush1.bf16.msra.mxu0 %v3270
    %5411 = vmatprep.subr.bf16.mxu0 %v3287
    %5412 = vmatpush1.bf16.msra.mxu0 %v3286
    %5413 = vmatprep.subr.bf16.mxu0 %v3303
    %5414 = vmatpush1.bf16.msra.mxu0 %v3302
    %5415 = vmatprep.subr.bf16.mxu0 %v3319
    %5416 = vmatpush1.bf16.msra.mxu0 %v3318
    %5417 = vmatprep.subr.bf16.mxu0 %v3335
    %5418 = vmatpush1.bf16.msra.mxu0 %v3334
    %5419 = vmatprep.subr.bf16.mxu0 %v3351
    %5420 = vmatpush1.bf16.msra.mxu0 %v3350
    %5421 = vmatprep.subr.bf16.mxu0 %v3367
    %5422 = vmatpush1.bf16.msra.mxu0 %v3366
    %5423 = vmatprep.subr.bf16.mxu0 %v3383
    %5424 = vmatpush1.bf16.msra.mxu0 %v3382
    %5425 = vmatprep.subr.bf16.mxu0 %v3399
    %5426 = vmatpush1.bf16.msra.mxu0 %v3398
    %5427 = vmatprep.subr.bf16.mxu0 %v3415
    %5428 = vmatpush1.bf16.msra.mxu0 %v3414
    %5429 = vmatprep.mubr.bf16.mxu0 %v85
    %5430 = vmatmul.mubr.bf16.gmra.mrb[0].mxu0 %v84
    %v5431 = vpop.f32.mrb[0].mxu0
    %v5432 = vadd.f32 %v4745, %v5431
    %v5433 = vpop.f32.mrb[0].mxu0
    %v5434 = vadd.f32 %v4749, %v5433
    %v5435 = vpop.f32.mrb[0].mxu0
    %v5436 = vpop.f32.mrb[0].mxu0
    %5437 = vdwg.mxu0
    %5438 = vmatprep.subr.bf16.mxu0 %v3431
    %5439 = vmatpush1.bf16.msra.mxu0 %v3430
    %5440 = vmatprep.subr.bf16.mxu0 %v3447
    %5441 = vmatpush1.bf16.msra.mxu0 %v3446
    %5442 = vmatprep.subr.bf16.mxu0 %v3463
    %5443 = vmatpush1.bf16.msra.mxu0 %v3462
    %5444 = vmatprep.subr.bf16.mxu0 %v3479
    %5445 = vmatpush1.bf16.msra.mxu0 %v3478
    %5446 = vmatprep.subr.bf16.mxu0 %v3495
    %5447 = vmatpush1.bf16.msra.mxu0 %v3494
    %5448 = vmatprep.subr.bf16.mxu0 %v3511
    %5449 = vmatpush1.bf16.msra.mxu0 %v3510
    %5450 = vmatprep.subr.bf16.mxu0 %v3527
    %5451 = vmatpush1.bf16.msra.mxu0 %v3526
    %5452 = vmatprep.subr.bf16.mxu0 %v3543
    %5453 = vmatpush1.bf16.msra.mxu0 %v3542
    %5454 = vmatprep.subr.bf16.mxu0 %v3559
    %5455 = vmatpush1.bf16.msra.mxu0 %v3558
    %5456 = vmatprep.subr.bf16.mxu0 %v3575
    %5457 = vmatpush1.bf16.msra.mxu0 %v3574
    %5458 = vmatprep.subr.bf16.mxu0 %v3591
    %5459 = vmatpush1.bf16.msra.mxu0 %v3590
    %5460 = vmatprep.subr.bf16.mxu0 %v3607
    %5461 = vmatpush1.bf16.msra.mxu0 %v3606
    %5462 = vmatprep.subr.bf16.mxu0 %v3623
    %5463 = vmatpush1.bf16.msra.mxu0 %v3622
    %5464 = vmatprep.subr.bf16.mxu0 %v3639
    %5465 = vmatpush1.bf16.msra.mxu0 %v3638
    %5466 = vmatprep.subr.bf16.mxu0 %v3655
    %5467 = vmatpush1.bf16.msra.mxu0 %v3654
    %5468 = vmatprep.subr.bf16.mxu0 %v3671
    %5469 = vmatpush1.bf16.msra.mxu0 %v3670
    %5470 = vmatprep.mubr.bf16.mxu0 %v87
    %5471 = vmatmul.mubr.bf16.gmra.mrb[0].mxu0 %v86
    %v5472 = vpop.f32.mrb[0].mxu0
    %v5473 = vadd.f32 %v5432, %v5472
    %v5474 = vpop.f32.mrb[0].mxu0
    %v5475 = vadd.f32 %v5434, %v5474
    %v5476 = vpop.f32.mrb[0].mxu0
    %v5477 = vpop.f32.mrb[0].mxu0
    %5478 = vdwg.mxu0
    %5479 = vmatprep.subr.bf16.mxu0 %v3687
    %5480 = vmatpush1.bf16.msra.mxu0 %v3686
    %5481 = vmatprep.subr.bf16.mxu0 %v3703
    %5482 = vmatpush1.bf16.msra.mxu0 %v3702
    %5483 = vmatprep.subr.bf16.mxu0 %v3719
    %5484 = vmatpush1.bf16.msra.mxu0 %v3718
    %5485 = vmatprep.subr.bf16.mxu0 %v3735
    %5486 = vmatpush1.bf16.msra.mxu0 %v3734
    %5487 = vmatprep.subr.bf16.mxu0 %v3751
    %5488 = vmatpush1.bf16.msra.mxu0 %v3750
    %5489 = vmatprep.subr.bf16.mxu0 %v3767
    %5490 = vmatpush1.bf16.msra.mxu0 %v3766
    %5491 = vmatprep.subr.bf16.mxu0 %v3783
    %5492 = vmatpush1.bf16.msra.mxu0 %v3782
    %5493 = vmatprep.subr.bf16.mxu0 %v3799
    %5494 = vmatpush1.bf16.msra.mxu0 %v3798
    %5495 = vmatprep.subr.bf16.mxu0 %v3815
    %5496 = vmatpush1.bf16.msra.mxu0 %v3814
    %5497 = vmatprep.subr.bf16.mxu0 %v3831
    %5498 = vmatpush1.bf16.msra.mxu0 %v3830
    %5499 = vmatprep.subr.bf16.mxu0 %v3847
    %5500 = vmatpush1.bf16.msra.mxu0 %v3846
    %5501 = vmatprep.subr.bf16.mxu0 %v3863
    %5502 = vmatpush1.bf16.msra.mxu0 %v3862
    %5503 = vmatprep.subr.bf16.mxu0 %v3879
    %5504 = vmatpush1.bf16.msra.mxu0 %v3878
    %5505 = vmatprep.subr.bf16.mxu0 %v3895
    %5506 = vmatpush1.bf16.msra.mxu0 %v3894
    %5507 = vmatprep.subr.bf16.mxu0 %v3911
    %5508 = vmatpush1.bf16.msra.mxu0 %v3910
    %5509 = vmatprep.subr.bf16.mxu0 %v3927
    %5510 = vmatpush1.bf16.msra.mxu0 %v3926
    %5511 = vmatprep.mubr.bf16.mxu0 %v89
    %5512 = vmatmul.mubr.bf16.gmra.mrb[0].mxu0 %v88
    %v5513 = vpop.f32.mrb[0].mxu0
    %v5514 = vadd.f32 %v5473, %v5513
    %v5515 = vpop.f32.mrb[0].mxu0
    %v5516 = vadd.f32 %v5475, %v5515
    %v5517 = vpop.f32.mrb[0].mxu0
    %v5518 = vpop.f32.mrb[0].mxu0
    %5519 = vdwg.mxu0
    %5520 = vmatprep.subr.bf16.mxu0 %v3177
    %5521 = vmatpush1.bf16.msra.mxu0 %v3176
    %5522 = vmatprep.subr.bf16.mxu0 %v3193
    %5523 = vmatpush1.bf16.msra.mxu0 %v3192
    %5524 = vmatprep.subr.bf16.mxu0 %v3209
    %5525 = vmatpush1.bf16.msra.mxu0 %v3208
    %5526 = vmatprep.subr.bf16.mxu0 %v3225
    %5527 = vmatpush1.bf16.msra.mxu0 %v3224
    %5528 = vmatprep.subr.bf16.mxu0 %v3241
    %5529 = vmatpush1.bf16.msra.mxu0 %v3240
    %5530 = vmatprep.subr.bf16.mxu0 %v3257
    %5531 = vmatpush1.bf16.msra.mxu0 %v3256
    %5532 = vmatprep.subr.bf16.mxu0 %v3273
    %5533 = vmatpush1.bf16.msra.mxu0 %v3272
    %5534 = vmatprep.subr.bf16.mxu0 %v3289
    %5535 = vmatpush1.bf16.msra.mxu0 %v3288
    %5536 = vmatprep.subr.bf16.mxu0 %v3305
    %5537 = vmatpush1.bf16.msra.mxu0 %v3304
    %5538 = vmatprep.subr.bf16.mxu0 %v3321
    %5539 = vmatpush1.bf16.msra.mxu0 %v3320
    %5540 = vmatprep.subr.bf16.mxu0 %v3337
    %5541 = vmatpush1.bf16.msra.mxu0 %v3336
    %5542 = vmatprep.subr.bf16.mxu0 %v3353
    %5543 = vmatpush1.bf16.msra.mxu0 %v3352
    %5544 = vmatprep.subr.bf16.mxu0 %v3369
    %5545 = vmatpush1.bf16.msra.mxu0 %v3368
    %5546 = vmatprep.subr.bf16.mxu0 %v3385
    %5547 = vmatpush1.bf16.msra.mxu0 %v3384
    %5548 = vmatprep.subr.bf16.mxu0 %v3401
    %5549 = vmatpush1.bf16.msra.mxu0 %v3400
    %5550 = vmatprep.subr.bf16.mxu0 %v3417
    %5551 = vmatpush1.bf16.msra.mxu0 %v3416
    %5552 = vmatprep.mubr.bf16.mxu0 %v85
    %5553 = vmatmul.mubr.bf16.gmra.mrb[0].mxu0 %v84
    %v5554 = vpop.f32.mrb[0].mxu0
    %v5555 = vadd.f32 %v4753, %v5554
    %v5556 = vpop.f32.mrb[0].mxu0
    %v5557 = vadd.f32 %v4757, %v5556
    %v5558 = vpop.f32.mrb[0].mxu0
    %v5559 = vpop.f32.mrb[0].mxu0
    %5560 = vdwg.mxu0
    %5561 = vmatprep.subr.bf16.mxu0 %v3433
    %5562 = vmatpush1.bf16.msra.mxu0 %v3432
    %5563 = vmatprep.subr.bf16.mxu0 %v3449
    %5564 = vmatpush1.bf16.msra.mxu0 %v3448
    %5565 = vmatprep.subr.bf16.mxu0 %v3465
    %5566 = vmatpush1.bf16.msra.mxu0 %v3464
    %5567 = vmatprep.subr.bf16.mxu0 %v3481
    %5568 = vmatpush1.bf16.msra.mxu0 %v3480
    %5569 = vmatprep.subr.bf16.mxu0 %v3497
    %5570 = vmatpush1.bf16.msra.mxu0 %v3496
    %5571 = vmatprep.subr.bf16.mxu0 %v3513
    %5572 = vmatpush1.bf16.msra.mxu0 %v3512
    %5573 = vmatprep.subr.bf16.mxu0 %v3529
    %5574 = vmatpush1.bf16.msra.mxu0 %v3528
    %5575 = vmatprep.subr.bf16.mxu0 %v3545
    %5576 = vmatpush1.bf16.msra.mxu0 %v3544
    %5577 = vmatprep.subr.bf16.mxu0 %v3561
    %5578 = vmatpush1.bf16.msra.mxu0 %v3560
    %5579 = vmatprep.subr.bf16.mxu0 %v3577
    %5580 = vmatpush1.bf16.msra.mxu0 %v3576
    %5581 = vmatprep.subr.bf16.mxu0 %v3593
    %5582 = vmatpush1.bf16.msra.mxu0 %v3592
    %5583 = vmatprep.subr.bf16.mxu0 %v3609
    %5584 = vmatpush1.bf16.msra.mxu0 %v3608
    %5585 = vmatprep.subr.bf16.mxu0 %v3625
    %5586 = vmatpush1.bf16.msra.mxu0 %v3624
    %5587 = vmatprep.subr.bf16.mxu0 %v3641
    %5588 = vmatpush1.bf16.msra.mxu0 %v3640
    %5589 = vmatprep.subr.bf16.mxu0 %v3657
    %5590 = vmatpush1.bf16.msra.mxu0 %v3656
    %5591 = vmatprep.subr.bf16.mxu0 %v3673
    %5592 = vmatpush1.bf16.msra.mxu0 %v3672
    %5593 = vmatprep.mubr.bf16.mxu0 %v87
    %5594 = vmatmul.mubr.bf16.gmra.mrb[0].mxu0 %v86
    %v5595 = vpop.f32.mrb[0].mxu0
    %v5596 = vadd.f32 %v5555, %v5595
    %v5597 = vpop.f32.mrb[0].mxu0
    %v5598 = vadd.f32 %v5557, %v5597
    %v5599 = vpop.f32.mrb[0].mxu0
    %v5600 = vpop.f32.mrb[0].mxu0
    %5601 = vdwg.mxu0
    %5602 = vmatprep.subr.bf16.mxu0 %v3689
    %5603 = vmatpush1.bf16.msra.mxu0 %v3688
    %5604 = vmatprep.subr.bf16.mxu0 %v3705
    %5605 = vmatpush1.bf16.msra.mxu0 %v3704
    %5606 = vmatprep.subr.bf16.mxu0 %v3721
    %5607 = vmatpush1.bf16.msra.mxu0 %v3720
    %5608 = vmatprep.subr.bf16.mxu0 %v3737
    %5609 = vmatpush1.bf16.msra.mxu0 %v3736
    %5610 = vmatprep.subr.bf16.mxu0 %v3753
    %5611 = vmatpush1.bf16.msra.mxu0 %v3752
    %5612 = vmatprep.subr.bf16.mxu0 %v3769
    %5613 = vmatpush1.bf16.msra.mxu0 %v3768
    %5614 = vmatprep.subr.bf16.mxu0 %v3785
    %5615 = vmatpush1.bf16.msra.mxu0 %v3784
    %5616 = vmatprep.subr.bf16.mxu0 %v3801
    %5617 = vmatpush1.bf16.msra.mxu0 %v3800
    %5618 = vmatprep.subr.bf16.mxu0 %v3817
    %5619 = vmatpush1.bf16.msra.mxu0 %v3816
    %5620 = vmatprep.subr.bf16.mxu0 %v3833
    %5621 = vmatpush1.bf16.msra.mxu0 %v3832
    %5622 = vmatprep.subr.bf16.mxu0 %v3849
    %5623 = vmatpush1.bf16.msra.mxu0 %v3848
    %5624 = vmatprep.subr.bf16.mxu0 %v3865
    %5625 = vmatpush1.bf16.msra.mxu0 %v3864
    %5626 = vmatprep.subr.bf16.mxu0 %v3881
    %5627 = vmatpush1.bf16.msra.mxu0 %v3880
    %5628 = vmatprep.subr.bf16.mxu0 %v3897
    %5629 = vmatpush1.bf16.msra.mxu0 %v3896
    %5630 = vmatprep.subr.bf16.mxu0 %v3913
    %5631 = vmatpush1.bf16.msra.mxu0 %v3912
    %5632 = vmatprep.subr.bf16.mxu0 %v3929
    %5633 = vmatpush1.bf16.msra.mxu0 %v3928
    %5634 = vmatprep.mubr.bf16.mxu0 %v89
    %5635 = vmatmul.mubr.bf16.gmra.mrb[0].mxu0 %v88
    %v5636 = vpop.f32.mrb[0].mxu0
    %v5637 = vadd.f32 %v5596, %v5636
    %v5638 = vpop.f32.mrb[0].mxu0
    %v5639 = vadd.f32 %v5598, %v5638
    %v5640 = vpop.f32.mrb[0].mxu0
    %v5641 = vpop.f32.mrb[0].mxu0
    %5642 = vdwg.mxu0
    %5643 = vmatprep.subr.bf16.mxu0 %v3179
    %5644 = vmatpush1.bf16.msra.mxu0 %v3178
    %5645 = vmatprep.subr.bf16.mxu0 %v3195
    %5646 = vmatpush1.bf16.msra.mxu0 %v3194
    %5647 = vmatprep.subr.bf16.mxu0 %v3211
    %5648 = vmatpush1.bf16.msra.mxu0 %v3210
    %5649 = vmatprep.subr.bf16.mxu0 %v3227
    %5650 = vmatpush1.bf16.msra.mxu0 %v3226
    %5651 = vmatprep.subr.bf16.mxu0 %v3243
    %5652 = vmatpush1.bf16.msra.mxu0 %v3242
    %5653 = vmatprep.subr.bf16.mxu0 %v3259
    %5654 = vmatpush1.bf16.msra.mxu0 %v3258
    %5655 = vmatprep.subr.bf16.mxu0 %v3275
    %5656 = vmatpush1.bf16.msra.mxu0 %v3274
    %5657 = vmatprep.subr.bf16.mxu0 %v3291
    %5658 = vmatpush1.bf16.msra.mxu0 %v3290
    %5659 = vmatprep.subr.bf16.mxu0 %v3307
    %5660 = vmatpush1.bf16.msra.mxu0 %v3306
    %5661 = vmatprep.subr.bf16.mxu0 %v3323
    %5662 = vmatpush1.bf16.msra.mxu0 %v3322
    %5663 = vmatprep.subr.bf16.mxu0 %v3339
    %5664 = vmatpush1.bf16.msra.mxu0 %v3338
    %5665 = vmatprep.subr.bf16.mxu0 %v3355
    %5666 = vmatpush1.bf16.msra.mxu0 %v3354
    %5667 = vmatprep.subr.bf16.mxu0 %v3371
    %5668 = vmatpush1.bf16.msra.mxu0 %v3370
    %5669 = vmatprep.subr.bf16.mxu0 %v3387
    %5670 = vmatpush1.bf16.msra.mxu0 %v3386
    %5671 = vmatprep.subr.bf16.mxu0 %v3403
    %5672 = vmatpush1.bf16.msra.mxu0 %v3402
    %5673 = vmatprep.subr.bf16.mxu0 %v3419
    %5674 = vmatpush1.bf16.msra.mxu0 %v3418
    %5675 = vmatprep.mubr.bf16.mxu0 %v85
    %5676 = vmatmul.mubr.bf16.gmra.mrb[0].mxu0 %v84
    %v5677 = vpop.f32.mrb[0].mxu0
    %v5678 = vadd.f32 %v4761, %v5677
    %v5679 = vpop.f32.mrb[0].mxu0
    %v5680 = vadd.f32 %v4765, %v5679
    %v5681 = vpop.f32.mrb[0].mxu0
    %v5682 = vpop.f32.mrb[0].mxu0
    %5683 = vdwg.mxu0
    %5684 = vmatprep.subr.bf16.mxu0 %v3435
    %5685 = vmatpush1.bf16.msra.mxu0 %v3434
    %5686 = vmatprep.subr.bf16.mxu0 %v3451
    %5687 = vmatpush1.bf16.msra.mxu0 %v3450
    %5688 = vmatprep.subr.bf16.mxu0 %v3467
    %5689 = vmatpush1.bf16.msra.mxu0 %v3466
    %5690 = vmatprep.subr.bf16.mxu0 %v3483
    %5691 = vmatpush1.bf16.msra.mxu0 %v3482
    %5692 = vmatprep.subr.bf16.mxu0 %v3499
    %5693 = vmatpush1.bf16.msra.mxu0 %v3498
    %5694 = vmatprep.subr.bf16.mxu0 %v3515
    %5695 = vmatpush1.bf16.msra.mxu0 %v3514
    %5696 = vmatprep.subr.bf16.mxu0 %v3531
    %5697 = vmatpush1.bf16.msra.mxu0 %v3530
    %5698 = vmatprep.subr.bf16.mxu0 %v3547
    %5699 = vmatpush1.bf16.msra.mxu0 %v3546
    %5700 = vmatprep.subr.bf16.mxu0 %v3563
    %5701 = vmatpush1.bf16.msra.mxu0 %v3562
    %5702 = vmatprep.subr.bf16.mxu0 %v3579
    %5703 = vmatpush1.bf16.msra.mxu0 %v3578
    %5704 = vmatprep.subr.bf16.mxu0 %v3595
    %5705 = vmatpush1.bf16.msra.mxu0 %v3594
    %5706 = vmatprep.subr.bf16.mxu0 %v3611
    %5707 = vmatpush1.bf16.msra.mxu0 %v3610
    %5708 = vmatprep.subr.bf16.mxu0 %v3627
    %5709 = vmatpush1.bf16.msra.mxu0 %v3626
    %5710 = vmatprep.subr.bf16.mxu0 %v3643
    %5711 = vmatpush1.bf16.msra.mxu0 %v3642
    %5712 = vmatprep.subr.bf16.mxu0 %v3659
    %5713 = vmatpush1.bf16.msra.mxu0 %v3658
    %5714 = vmatprep.subr.bf16.mxu0 %v3675
    %5715 = vmatpush1.bf16.msra.mxu0 %v3674
    %5716 = vmatprep.mubr.bf16.mxu0 %v87
    %5717 = vmatmul.mubr.bf16.gmra.mrb[0].mxu0 %v86
    %v5718 = vpop.f32.mrb[0].mxu0
    %v5719 = vadd.f32 %v5678, %v5718
    %v5720 = vpop.f32.mrb[0].mxu0
    %v5721 = vadd.f32 %v5680, %v5720
    %v5722 = vpop.f32.mrb[0].mxu0
    %v5723 = vpop.f32.mrb[0].mxu0
    %5724 = vdwg.mxu0
    %5725 = vmatprep.subr.bf16.mxu0 %v3691
    %5726 = vmatpush1.bf16.msra.mxu0 %v3690
    %5727 = vmatprep.subr.bf16.mxu0 %v3707
    %5728 = vmatpush1.bf16.msra.mxu0 %v3706
    %5729 = vmatprep.subr.bf16.mxu0 %v3723
    %5730 = vmatpush1.bf16.msra.mxu0 %v3722
    %5731 = vmatprep.subr.bf16.mxu0 %v3739
    %5732 = vmatpush1.bf16.msra.mxu0 %v3738
    %5733 = vmatprep.subr.bf16.mxu0 %v3755
    %5734 = vmatpush1.bf16.msra.mxu0 %v3754
    %5735 = vmatprep.subr.bf16.mxu0 %v3771
    %5736 = vmatpush1.bf16.msra.mxu0 %v3770
    %5737 = vmatprep.subr.bf16.mxu0 %v3787
    %5738 = vmatpush1.bf16.msra.mxu0 %v3786
    %5739 = vmatprep.subr.bf16.mxu0 %v3803
    %5740 = vmatpush1.bf16.msra.mxu0 %v3802
    %5741 = vmatprep.subr.bf16.mxu0 %v3819
    %5742 = vmatpush1.bf16.msra.mxu0 %v3818
    %5743 = vmatprep.subr.bf16.mxu0 %v3835
    %5744 = vmatpush1.bf16.msra.mxu0 %v3834
    %5745 = vmatprep.subr.bf16.mxu0 %v3851
    %5746 = vmatpush1.bf16.msra.mxu0 %v3850
    %5747 = vmatprep.subr.bf16.mxu0 %v3867
    %5748 = vmatpush1.bf16.msra.mxu0 %v3866
    %5749 = vmatprep.subr.bf16.mxu0 %v3883
    %5750 = vmatpush1.bf16.msra.mxu0 %v3882
    %5751 = vmatprep.subr.bf16.mxu0 %v3899
    %5752 = vmatpush1.bf16.msra.mxu0 %v3898
    %5753 = vmatprep.subr.bf16.mxu0 %v3915
    %5754 = vmatpush1.bf16.msra.mxu0 %v3914
    %5755 = vmatprep.subr.bf16.mxu0 %v3931
    %5756 = vmatpush1.bf16.msra.mxu0 %v3930
    %5757 = vmatprep.mubr.bf16.mxu0 %v89
    %5758 = vmatmul.mubr.bf16.gmra.mrb[0].mxu0 %v88
    %v5759 = vpop.f32.mrb[0].mxu0
    %v5760 = vadd.f32 %v5719, %v5759
    %v5761 = vpop.f32.mrb[0].mxu0
    %v5762 = vadd.f32 %v5721, %v5761
    %v5763 = vpop.f32.mrb[0].mxu0
    %v5764 = vpop.f32.mrb[0].mxu0
    %5765 = vdwg.mxu0
    %v5766 = vmax.f32 %v4899, 0.0
    %v5767 = vmax.f32 %v4901, 0.0
    %v5768 = vmax.f32 %v5022, 0.0
    %v5769 = vmax.f32 %v5024, 0.0
    %v5770 = vmax.f32 %v5145, 0.0
    %v5771 = vmax.f32 %v5147, 0.0
    %v5772 = vmax.f32 %v5268, 0.0
    %v5773 = vmax.f32 %v5270, 0.0
    %v5774 = vmax.f32 %v5391, 0.0
    %v5775 = vmax.f32 %v5393, 0.0
    %v5776 = vmax.f32 %v5514, 0.0
    %v5777 = vmax.f32 %v5516, 0.0
    %v5778 = vmax.f32 %v5637, 0.0
    %v5779 = vmax.f32 %v5639, 0.0
    %v5780 = vmax.f32 %v5760, 0.0
    %v5781 = vmax.f32 %v5762, 0.0
    %v5798 = vcombine.low %v5766, %v5767
    %v5799 = vcombine.low %v5768, %v5769
    %v5800 = vcombine.low %v5770, %v5771
    %v5801 = vcombine.low %v5772, %v5773
    %v5803 = vunpack.c.l.s4 1966171168
    %v5804 = vunpack.c.0.s8 %v5803
    %v5805 = vlaneseq
    %v5806 = vshrl.u32 %v5805, 7
    %v5807 = vsub.s32 %v5804, %v5806
    %v5808 = vrot.slane %v5798, %v5807
    %v5810 = vunpack.c.l.s4 1966171168
    %v5811 = vunpack.c.0.s8 %v5810
    %v5812 = vlaneseq
    %v5813 = vshrl.u32 %v5812, 7
    %v5814 = vsub.s32 %v5811, %v5813
    %v5815 = vrot.slane %v5799, %v5814
    %v5817 = vunpack.c.l.s4 1966171168
    %v5818 = vunpack.c.0.s8 %v5817
    %v5819 = vlaneseq
    %v5820 = vshrl.u32 %v5819, 7
    %v5821 = vsub.s32 %v5818, %v5820
    %v5822 = vrot.slane %v5800, %v5821
    %v5824 = vunpack.c.l.s4 1966171168
    %v5825 = vunpack.c.0.s8 %v5824
    %v5826 = vlaneseq
    %v5827 = vshrl.u32 %v5826, 7
    %v5828 = vsub.s32 %v5825, %v5827
    %v5829 = vrot.slane %v5801, %v5828
    %v5830 = vcombine.low %v5808, %v5815
    %v5831 = vcombine.low %v5822, %v5829
    %v5833 = vunpack.c.l.s4 1966171168
    %v5834 = vunpack.c.0.s8 %v5833
    %v5835 = vlaneseq
    %v5836 = vshrl.u32 %v5835, 7
    %v5837 = vsub.s32 %v5834, %v5836
    %v5838 = vrot.slane %v5830, %v5837
    %v5840 = vunpack.c.l.s4 1966171168
    %v5841 = vunpack.c.0.s8 %v5840
    %v5842 = vlaneseq
    %v5843 = vshrl.u32 %v5842, 7
    %v5844 = vsub.s32 %v5841, %v5843
    %v5845 = vrot.slane %v5831, %v5844
    %v5846 = vcombine.low %v5838, %v5845
    %v5847 = vcombine.low %v5774, %v5775
    %v5848 = vcombine.low %v5776, %v5777
    %v5849 = vcombine.low %v5778, %v5779
    %v5850 = vcombine.low %v5780, %v5781
    %v5852 = vunpack.c.l.s4 1966171168
    %v5853 = vunpack.c.0.s8 %v5852
    %v5854 = vlaneseq
    %v5855 = vshrl.u32 %v5854, 7
    %v5856 = vsub.s32 %v5853, %v5855
    %v5857 = vrot.slane %v5847, %v5856
    %v5859 = vunpack.c.l.s4 1966171168
    %v5860 = vunpack.c.0.s8 %v5859
    %v5861 = vlaneseq
    %v5862 = vshrl.u32 %v5861, 7
    %v5863 = vsub.s32 %v5860, %v5862
    %v5864 = vrot.slane %v5848, %v5863
    %v5866 = vunpack.c.l.s4 1966171168
    %v5867 = vunpack.c.0.s8 %v5866
    %v5868 = vlaneseq
    %v5869 = vshrl.u32 %v5868, 7
    %v5870 = vsub.s32 %v5867, %v5869
    %v5871 = vrot.slane %v5849, %v5870
    %v5873 = vunpack.c.l.s4 1966171168
    %v5874 = vunpack.c.0.s8 %v5873
    %v5875 = vlaneseq
    %v5876 = vshrl.u32 %v5875, 7
    %v5877 = vsub.s32 %v5874, %v5876
    %v5878 = vrot.slane %v5850, %v5877
    %v5879 = vcombine.low %v5857, %v5864
    %v5880 = vcombine.low %v5871, %v5878
    %v5882 = vunpack.c.l.s4 1966171168
    %v5883 = vunpack.c.0.s8 %v5882
    %v5884 = vlaneseq
    %v5885 = vshrl.u32 %v5884, 7
    %v5886 = vsub.s32 %v5883, %v5885
    %v5887 = vrot.slane %v5879, %v5886
    %v5889 = vunpack.c.l.s4 1966171168
    %v5890 = vunpack.c.0.s8 %v5889
    %v5891 = vlaneseq
    %v5892 = vshrl.u32 %v5891, 7
    %v5893 = vsub.s32 %v5890, %v5892
    %v5894 = vrot.slane %v5880, %v5893
    %v5895 = vcombine.low %v5887, %v5894
    %5898 = vst [vmem:[#allocation8] sm:$0xff] %v5846
    %5899 = vst [vmem:[#allocation8 + $0x8] sm:$0xff] %v5895
    // Predicated region
    $region26: #{linear_add_relu.1} parent=1 // pred_check
      _
    $region27: #{linear_add_relu.1} parent=1 // pred_check_branch
      %5901 = sbr.rel (0) target = $region29
    $region28: #{linear_add_relu.1} parent=1 // pred_region
      %s5903 = ssub.s32 256, 256
      %5904 = vsyncadd [#allocation4], %s5903
      %s5906 = sshll.u32 [#allocation8], 4
      %s5907 = int_to_ptr.vmem [resolvable:$true] %s5906
      %5909 = dma.vmem_to_hbm [thread:$0]  %s5907, 256, %s3, [#allocation4]
    $region29: #{linear_add_relu.1} parent=1 // pred_fallthru
      _
    // Predicated region
    $region30: #{linear_add_relu.1} parent=1 // pred_check
      _
    $region31: #{linear_add_relu.1} parent=1 // pred_check_branch
      %5911 = sbr.rel (0) target = $region33
    $region32: #{linear_add_relu.1} parent=1 // pred_region
      %5912 = dma.done [#allocation4], 256
    $region33: #{linear_add_relu.1} parent=1 // pred_fallthru
      _
    %5913 = vsyncpa [#allocation3], 1
    %5914 = vsyncpa [#allocation6], 1
    %5915 = vsyncpa [#allocation4], 1

</llo_original>
